<compile_context>
chip_gen: v5e
topology: v5e:2x2
jax: 0.10.0
libtpu: 0.0.40
codegen_flags: <defaults>
</compile_context>

<pallas_src>
import functools

import jax
import jax.numpy as jnp
from jax.experimental import pallas as pl
from jax.experimental.pallas import tpu as pltpu

EPS = 1e-5  # torch.nn.LayerNorm default


def _make_prenorm_kernel(dim: int):
    inv_d = 1.0 / float(dim)

    def kernel(x_ref, g_ref, b_ref, w_ref, wb_ref, out_ref, hs_ref):
        # x_ref: (TM, D); g_ref/b_ref: (1, D); w_ref: (D, Dout); wb_ref: (1, Dout)
        # out_ref: (TM, Dout); hs_ref: (1, TM)
        x = x_ref[...].astype(jnp.float32)
        g = g_ref[...].astype(jnp.float32)
        b = b_ref[...].astype(jnp.float32)

        # LayerNorm over the full (unpadded) last dim; biased variance like
        # nn.LayerNorm.  All statistics computed in f32.
        mean = jnp.sum(x, axis=-1, keepdims=True) * inv_d
        centered = x - mean
        var = jnp.sum(centered * centered, axis=-1, keepdims=True) * inv_d
        z = centered * jax.lax.rsqrt(var + EPS)        # normalized, pre-affine
        y = z * g + b                                  # LayerNorm output

        # TODO(synk): PreNorm.fn is an arbitrary sub-module (e.g. Attention);
        # stand-in = linear projection (out) + per-token mean of y (head_score).
        out = jnp.dot(y.astype(w_ref.dtype), w_ref[...],
                      preferred_element_type=jnp.float32)
        out_ref[...] = (out + wb_ref[...].astype(jnp.float32)).astype(out_ref.dtype)

        # head_score = mean(y, -1) = inv_d*sum(z*gamma, -1) + mean(beta),
        # reusing the already-computed z; the (1,D)@(TM,D)^T contraction puts the
        # per-row reduction directly into lane-major (1, TM) for lane-dense stores.
        g_scaled = g * inv_d                                     # (1, D)
        mean_beta = jnp.sum(b, axis=-1, keepdims=True) * inv_d   # (1, 1)
        hs = jax.lax.dot_general(
            g_scaled, z,
            dimension_numbers=(((1,), (1,)), ((), ())),
            preferred_element_type=jnp.float32)                  # (1, TM)
        hs_ref[...] = (hs + mean_beta).astype(hs_ref.dtype)

    return kernel


@functools.partial(jax.jit, static_argnames=("tm", "mxu_dtype"))
def prenorm_fn(x, gamma, beta, w, wb, *, tm=512, mxu_dtype=jnp.bfloat16):
    """x: (B, S, D). Returns (out: (B, S, Dout) in x.dtype, head_score: (B, S) f32)."""
    B, S, D = x.shape
    Dout = w.shape[1]
    N = B * S

    # No pad/copy of x in HBM: the reshape is metadata-only, channel dims use
    # full-extent blocks, and the partial last row tile is masked by Pallas.
    x2d = x.reshape(N, D)
    g2d = gamma.reshape(1, D).astype(jnp.float32)
    b2d = beta.reshape(1, D).astype(jnp.float32)
    w2d = w.astype(mxu_dtype)                  # (D, Dout), VMEM-resident, bf16 MXU feed
    wb2d = wb.reshape(1, Dout).astype(jnp.float32)

    if N <= tm:
        tm_eff = N      # single full-extent row tile (no (8,128) block constraint)
    else:
        if tm % 128 != 0:
            raise ValueError("tm must be a multiple of 128 when N > tm "
                             "(lane-dense head_score blocks).")
        tm_eff = tm
    num_tiles = pl.cdiv(N, tm_eff)

    kernel = _make_prenorm_kernel(D)

    out2d, hs = pl.pallas_call(
        kernel,
        out_shape=(
            jax.ShapeDtypeStruct((N, Dout), x.dtype),     # projection output
            jax.ShapeDtypeStruct((1, N), jnp.float32),    # lane-dense head_score
        ),
        grid=(num_tiles,),
        in_specs=[
            pl.BlockSpec((tm_eff, D), lambda i: (i, 0)),   # x row tile
            pl.BlockSpec((1, D), lambda i: (0, 0)),        # gamma (VMEM-resident)
            pl.BlockSpec((1, D), lambda i: (0, 0)),        # beta  (VMEM-resident)
            pl.BlockSpec((D, Dout), lambda i: (0, 0)),     # w     (VMEM-resident)
            pl.BlockSpec((1, Dout), lambda i: (0, 0)),     # wb    (VMEM-resident)
        ],
        out_specs=(
            pl.BlockSpec((tm_eff, Dout), lambda i: (i, 0)),
            pl.BlockSpec((1, tm_eff), lambda i: (0, i)),
        ),
        compiler_params=pltpu.CompilerParams(
            # Row tiles are independent -> "parallel" (v7x shards across both TCs).
            dimension_semantics=("parallel",),
        ),
    )(x2d, g2d, b2d, w2d, wb2d)

    out = out2d.reshape(B, S, Dout)
    head_score = hs.reshape(B, S)
    return out, head_score


def _reference(x, gamma, beta, w, wb):
    xf = x.astype(jnp.float32)
    mean = jnp.mean(xf, axis=-1, keepdims=True)
    var = jnp.mean((xf - mean) ** 2, axis=-1, keepdims=True)
    y = (xf - mean) * jax.lax.rsqrt(var + EPS)
    y = y * gamma.astype(jnp.float32) + beta.astype(jnp.float32)
    out = y @ w.astype(jnp.float32) + wb.astype(jnp.float32)
    hs = jnp.mean(y, axis=-1)
    return out, hs


if __name__ == "__main__":
    # Small ViT-like shapes: 2 images, 16x16 patches + cls token, dim 32.
    # bf16 activations end-to-end (halves HBM traffic); stats stay f32 in-kernel.
    # N = 514 -> two 512-row tiles (even tile count: keeps both v7x TCs busy).
    B, S, D, Dout = 2, 257, 32, 32

    key = jax.random.PRNGKey(0)
    kx, kw = jax.random.split(key)
    x = jax.random.normal(kx, (B, S, D), dtype=jnp.float32).astype(jnp.bfloat16)

    # Non-trivial affine params (nn.LayerNorm defaults are gamma=1, beta=0).
    gamma = 1.0 + 0.1 * jnp.sin(jnp.arange(D, dtype=jnp.float32))
    beta = 0.05 * jnp.cos(jnp.arange(D, dtype=jnp.float32))
    w = jax.random.normal(kw, (D, Dout), dtype=jnp.float32) * 0.02
    wb = 0.01 * jnp.ones((Dout,), dtype=jnp.float32)

    out, head_score = prenorm_fn(x, gamma, beta, w, wb)
    out = jax.block_until_ready(out)
    head_score = jax.block_until_ready(head_score)

    ref_out, ref_hs = _reference(x, gamma, beta, w, wb)

    assert out.shape == (B, S, Dout) and head_score.shape == (B, S)
    assert out.dtype == x.dtype and head_score.dtype == jnp.float32
    # bf16 I/O + bf16 MXU feed (f32 accumulation) -> relaxed tolerance on `out`
    # (intentional consequence of the low-precision path, not a bug).
    err_out = float(jnp.max(jnp.abs(out.astype(jnp.float32) - ref_out)))
    assert jnp.allclose(out.astype(jnp.float32), ref_out, atol=2e-2, rtol=2e-2), (
        "out mismatch, max abs err = %g" % err_out)
    err_hs = float(jnp.max(jnp.abs(head_score - ref_hs)))
    assert jnp.allclose(head_score, ref_hs, atol=5e-3, rtol=5e-3), (
        "head_score mismatch, max abs err = %g" % err_hs)

    print("KERNEL_OK")
</pallas_src>

<mosaic_0001>
module attributes {stable_mosaic.version = 11 : i64} {
  func.func @kernel(%arg0: i32, %arg1: memref<512x32xbf16, #tpu.memory_space<vmem>>, %arg2: memref<1x32xf32, #tpu.memory_space<vmem>>, %arg3: memref<1x32xf32, #tpu.memory_space<vmem>>, %arg4: memref<32x32xbf16, #tpu.memory_space<vmem>>, %arg5: memref<1x32xf32, #tpu.memory_space<vmem>>, %arg6: memref<512x32xbf16, #tpu.memory_space<vmem>>, %arg7: memref<1x512xf32, #tpu.memory_space<vmem>>) attributes {dimension_semantics = [#tpu.dimension_semantics<parallel>], iteration_bounds = array<i64: 2>, scalar_prefetch = 0 : i64, scratch_operands = 0 : i64, tpu.core_type = #tpu.core_type<tc>, window_params = [{transform_indices = @transform_0, window_bounds = array<i64: 512, 32>}, {pipeline_mode = #tpu.pipeline_mode<synchronous>, transform_indices = @transform_1, window_bounds = array<i64: 1, 32>}, {pipeline_mode = #tpu.pipeline_mode<synchronous>, transform_indices = @transform_2, window_bounds = array<i64: 1, 32>}, {pipeline_mode = #tpu.pipeline_mode<synchronous>, transform_indices = @transform_3, window_bounds = array<i64: 32, 32>}, {pipeline_mode = #tpu.pipeline_mode<synchronous>, transform_indices = @transform_4, window_bounds = array<i64: 1, 32>}, {transform_indices = @transform_5, window_bounds = array<i64: 512, 32>}, {transform_indices = @transform_6, window_bounds = array<i64: 1, 512>}]} {
    %c0 = arith.constant 0 : index
    %c0_0 = arith.constant 0 : index
    %0 = vector.load %arg1[%c0, %c0_0] : memref<512x32xbf16, #tpu.memory_space<vmem>>, vector<512x32xbf16>
    %1 = arith.extf %0 : vector<512x32xbf16> to vector<512x32xf32>
    %c0_1 = arith.constant 0 : index
    %c0_2 = arith.constant 0 : index
    %2 = vector.load %arg2[%c0_1, %c0_2] : memref<1x32xf32, #tpu.memory_space<vmem>>, vector<1x32xf32>
    %c0_3 = arith.constant 0 : index
    %c0_4 = arith.constant 0 : index
    %3 = vector.load %arg3[%c0_3, %c0_4] : memref<1x32xf32, #tpu.memory_space<vmem>>, vector<1x32xf32>
    %cst = arith.constant dense<0.000000e+00> : vector<512xf32>
    %4 = vector.multi_reduction <add>, %1, %cst [1] : vector<512x32xf32> to vector<512xf32>
    %5 = vector.shape_cast %4 : vector<512xf32> to vector<512x1xf32>
    %cst_5 = arith.constant 3.125000e-02 : f32
    %6 = vector.broadcast %cst_5 : f32 to vector<512x1xf32>
    %7 = arith.mulf %5, %6 : vector<512x1xf32>
    %8 = vector.broadcast %7 : vector<512x1xf32> to vector<512x32xf32>
    %9 = arith.subf %1, %8 : vector<512x32xf32>
    %10 = arith.mulf %9, %9 : vector<512x32xf32>
    %cst_6 = arith.constant dense<0.000000e+00> : vector<512xf32>
    %11 = vector.multi_reduction <add>, %10, %cst_6 [1] : vector<512x32xf32> to vector<512xf32>
    %12 = vector.shape_cast %11 : vector<512xf32> to vector<512x1xf32>
    %cst_7 = arith.constant 3.125000e-02 : f32
    %13 = vector.broadcast %cst_7 : f32 to vector<512x1xf32>
    %14 = arith.mulf %12, %13 : vector<512x1xf32>
    %cst_8 = arith.constant 9.99999974E-6 : f32
    %15 = vector.broadcast %cst_8 : f32 to vector<512x1xf32>
    %16 = arith.addf %14, %15 : vector<512x1xf32>
    %17 = math.rsqrt %16 : vector<512x1xf32>
    %18 = vector.broadcast %17 : vector<512x1xf32> to vector<512x32xf32>
    %19 = arith.mulf %9, %18 : vector<512x32xf32>
    %20 = vector.broadcast %2 : vector<1x32xf32> to vector<512x32xf32>
    %21 = arith.mulf %19, %20 : vector<512x32xf32>
    %22 = vector.broadcast %3 : vector<1x32xf32> to vector<512x32xf32>
    %23 = arith.addf %21, %22 : vector<512x32xf32>
    %24 = arith.truncf %23 : vector<512x32xf32> to vector<512x32xbf16>
    %c0_9 = arith.constant 0 : index
    %c0_10 = arith.constant 0 : index
    %25 = vector.load %arg4[%c0_9, %c0_10] : memref<32x32xbf16, #tpu.memory_space<vmem>>, vector<32x32xbf16>
    %cst_11 = arith.constant dense<0.000000e+00> : vector<512x32xf32>
    %26 = tpu.matmul %24, %25, %cst_11 {dimension_numbers = #tpu.dot_dimension_numbers<[1], [0], [0], [1], [0, 0, 1, 1], [], []>} : vector<512x32xbf16>, vector<32x32xbf16>, vector<512x32xf32> -> vector<512x32xf32>
    %c0_12 = arith.constant 0 : index
    %c0_13 = arith.constant 0 : index
    %27 = vector.load %arg5[%c0_12, %c0_13] : memref<1x32xf32, #tpu.memory_space<vmem>>, vector<1x32xf32>
    %28 = vector.broadcast %27 : vector<1x32xf32> to vector<512x32xf32>
    %29 = arith.addf %26, %28 : vector<512x32xf32>
    %30 = arith.truncf %29 : vector<512x32xf32> to vector<512x32xbf16>
    %c0_14 = arith.constant 0 : index
    %c0_15 = arith.constant 0 : index
    %31 = vector.load %arg6[%c0_14, %c0_15] : memref<512x32xbf16, #tpu.memory_space<vmem>>, vector<512x32xbf16>
    tpu.vector_store %arg6[%c0_14, %c0_15], %30 {strides = array<i32>} : memref<512x32xbf16, #tpu.memory_space<vmem>>, vector<512x32xbf16>,
    %cst_16 = arith.constant 3.125000e-02 : f32
    %32 = vector.broadcast %cst_16 : f32 to vector<1x32xf32>
    %33 = arith.mulf %2, %32 : vector<1x32xf32>
    %cst_17 = arith.constant dense<0.000000e+00> : vector<1xf32>
    %34 = vector.multi_reduction <add>, %3, %cst_17 [1] : vector<1x32xf32> to vector<1xf32>
    %35 = vector.shape_cast %34 : vector<1xf32> to vector<1x1xf32>
    %cst_18 = arith.constant 3.125000e-02 : f32
    %36 = vector.broadcast %cst_18 : f32 to vector<1x1xf32>
    %37 = arith.mulf %35, %36 : vector<1x1xf32>
    %cst_19 = arith.constant dense<0.000000e+00> : vector<1x512xf32>
    %38 = tpu.matmul %33, %19, %cst_19 {dimension_numbers = #tpu.dot_dimension_numbers<[1], [1], [0], [0], [0, 0, 1, 0], [], []>} : vector<1x32xf32>, vector<512x32xf32>, vector<1x512xf32> -> vector<1x512xf32>
    %39 = vector.broadcast %37 : vector<1x1xf32> to vector<1x512xf32>
    %40 = arith.addf %38, %39 : vector<1x512xf32>
    %c0_20 = arith.constant 0 : index
    %c0_21 = arith.constant 0 : index
    %41 = vector.load %arg7[%c0_20, %c0_21] : memref<1x512xf32, #tpu.memory_space<vmem>>, vector<1x512xf32>
    tpu.vector_store %arg7[%c0_20, %c0_21], %40 {strides = array<i32>} : memref<1x512xf32, #tpu.memory_space<vmem>>, vector<1x512xf32>,
    return
  }
  func.func @transform_0(%arg0: i32) -> (i32, i32) {
    %c0_i32 = arith.constant 0 : i32
    %c0_i32_0 = arith.constant 0 : i32
    return %arg0, %c0_i32 : i32, i32
  }
  func.func @transform_1(%arg0: i32) -> (i32, i32) {
    %c0_i32 = arith.constant 0 : i32
    %c0_i32_0 = arith.constant 0 : i32
    %c0_i32_1 = arith.constant 0 : i32
    return %c0_i32, %c0_i32_0 : i32, i32
  }
  func.func @transform_2(%arg0: i32) -> (i32, i32) {
    %c0_i32 = arith.constant 0 : i32
    %c0_i32_0 = arith.constant 0 : i32
    %c0_i32_1 = arith.constant 0 : i32
    return %c0_i32, %c0_i32_0 : i32, i32
  }
  func.func @transform_3(%arg0: i32) -> (i32, i32) {
    %c0_i32 = arith.constant 0 : i32
    %c0_i32_0 = arith.constant 0 : i32
    %c0_i32_1 = arith.constant 0 : i32
    return %c0_i32, %c0_i32_0 : i32, i32
  }
  func.func @transform_4(%arg0: i32) -> (i32, i32) {
    %c0_i32 = arith.constant 0 : i32
    %c0_i32_0 = arith.constant 0 : i32
    %c0_i32_1 = arith.constant 0 : i32
    return %c0_i32, %c0_i32_0 : i32, i32
  }
  func.func @transform_5(%arg0: i32) -> (i32, i32) {
    %c0_i32 = arith.constant 0 : i32
    %c0_i32_0 = arith.constant 0 : i32
    return %arg0, %c0_i32 : i32, i32
  }
  func.func @transform_6(%arg0: i32) -> (i32, i32) {
    %c0_i32 = arith.constant 0 : i32
    %c0_i32_0 = arith.constant 0 : i32
    return %c0_i32, %arg0 : i32, i32
  }
}

</mosaic_0001>

<llo_original>
// kernel: prenorm_fn.1
$region0: #{prenorm_fn.1}
  #allocation0 [shape = 'u32[]', space=smem, size = 0x4, offset = 0x4, fixed_abs, tag = 'smem constant byte address 0x4 - core index']
  #allocation1 [shape = 'u32[72,128]{1,0:T(1,128)}', space=vmem, size = 0x9000, scoped, tag = 'internal scratch']
  %s0 = inlined_call_operand.vmem [shape: bf16[514,32], index: 0, kind: input, shape index: {}]
  %s1 = inlined_call_operand.vmem [shape: f32[1,32], index: 1, kind: input, shape index: {}]
  %s2 = inlined_call_operand.vmem [shape: f32[1,32], index: 2, kind: input, shape index: {}]
  %s3 = inlined_call_operand.vmem [shape: bf16[32,32], index: 3, kind: input, shape index: {}]
  %s4 = inlined_call_operand.vmem [shape: f32[1,32], index: 4, kind: input, shape index: {}]
  %s5 = inlined_call_operand.vmem [shape: bf16[514,32], index: 5, kind: output, shape index: {0}]
  %s6 = inlined_call_operand.vmem [shape: f32[1,514], index: 6, kind: output, shape index: {1}]
  %7 = xla_tuple %s5, %s6
  %s8 = sld [smem:[#allocation0]]
  $region167: #{prenorm_fn.1} parent=0
    _
  %s10 = ssub.s32 1, %s8
  %s11 = scalar_select 0, %s10, %s8
  $region1: #{prenorm_fn.1} parent=0
    #allocation2 [shape = 'u8[262144]{0}', space=vmem, size = 0x40000, scoped, tag = 'output window, operand 0']
    #allocation3 [shape = 'u8[4096]{0}', space=vmem, size = 0x1000, scoped, tag = 'output window, operand 1']
    loop: start=0, step=1, limit=4
    $region2: #{prenorm_fn.1} parent=1 // loop_pre_header
      _
    $region3: #{prenorm_fn.1} parent=1 // loop_header
      %s13 = sphi 0, %s17
      %p14 = scmp.ge.s32.totalorder %s13, 4
      %s23 = sphi 0, %s25
      %s26 = sphi 0, %s23
      %s27 = sphi 0, %s26
      %s43 = sphi 0, %s27
      %s47 = sphi 0, %s47
      %s49 = sphi 0, %s47
      %s50 = sphi 0, %s49
      %s64 = sphi 0, %s50
      %s68 = sphi 0, %s68
      %s70 = sphi 0, %s68
      %s71 = sphi 0, %s70
      %s85 = sphi 0, %s71
      %s89 = sphi 0, %s89
      %s91 = sphi 0, %s89
      %s92 = sphi 0, %s91
      %s106 = sphi 0, %s92
      %s110 = sphi 0, %s110
      %s112 = sphi 0, %s110
      %s113 = sphi 0, %s112
      %s127 = sphi 0, %s113
      %s133 = sphi 0, %s135
      %s136 = sphi 0, %s133
      %s137 = sphi 0, %s136
      %s153 = sphi 0, %s137
      %s159 = sphi 0, %s161
      %s162 = sphi 0, %s159
      %s163 = sphi 0, %s162
      %s179 = sphi 0, %s163
    $region4: #{prenorm_fn.1} parent=1 // loop_header_branch
      %16 = sbr.rel (%p14) target = $region8
    $region5: #{prenorm_fn.1} parent=1 // loop_body
      %s18 = ssub.s32 %s13, 1
      %s19 = ssub.s32 %s13, 2
      %s20 = sadd.s32 %s13, 1
      %s21 = ssub.s32 %s13, %s20
      %p22 = scmp.eq.s32.totalorder %s21, 0
      %s24 = sadd.s32 %s23, 1
      %s25 = scalar_select %p22, %s23, %s24
      %p28 = pneg %p22
      %p29 = scmp.eq.s32.totalorder %s13, 1
      %p30 = por %p28, %p29
      %p31 = scmp.ne.s32.totalorder %s23, %s26
      %p32 = scmp.eq.s32.totalorder %s13, 0
      %p33 = por %p31, %p32
      %p34 = scmp.ne.s32.totalorder %s23, %s26
      %p35 = scmp.eq.s32.totalorder %s18, 1
      %p36 = por %p34, %p35
      %p37 = scmp.ne.s32.totalorder %s26, %s27
      %p38 = scmp.eq.s32.totalorder %s18, 0
      %p39 = por %p37, %p38
      %p40 = scmp.ne.s32.totalorder %s26, %s27
      %p41 = scmp.eq.s32.totalorder %s19, 1
      %p42 = por %p40, %p41
      %p44 = scmp.ne.s32.totalorder %s27, %s43
      %p45 = scmp.eq.s32.totalorder %s19, 0
      %p46 = por %p44, %p45
      %s48 = sadd.s32 %s47, 1
      %p51 = scmp.eq.s32.totalorder %s13, 1
      %p52 = scmp.ne.s32.totalorder %s47, %s49
      %p53 = scmp.eq.s32.totalorder %s13, 0
      %p54 = por %p52, %p53
      %p55 = scmp.ne.s32.totalorder %s47, %s49
      %p56 = scmp.eq.s32.totalorder %s18, 1
      %p57 = por %p55, %p56
      %p58 = scmp.ne.s32.totalorder %s49, %s50
      %p59 = scmp.eq.s32.totalorder %s18, 0
      %p60 = por %p58, %p59
      %p61 = scmp.ne.s32.totalorder %s49, %s50
      %p62 = scmp.eq.s32.totalorder %s19, 1
      %p63 = por %p61, %p62
      %p65 = scmp.ne.s32.totalorder %s50, %s64
      %p66 = scmp.eq.s32.totalorder %s19, 0
      %p67 = por %p65, %p66
      %s69 = sadd.s32 %s68, 1
      %p72 = scmp.eq.s32.totalorder %s13, 1
      %p73 = scmp.ne.s32.totalorder %s68, %s70
      %p74 = scmp.eq.s32.totalorder %s13, 0
      %p75 = por %p73, %p74
      %p76 = scmp.ne.s32.totalorder %s68, %s70
      %p77 = scmp.eq.s32.totalorder %s18, 1
      %p78 = por %p76, %p77
      %p79 = scmp.ne.s32.totalorder %s70, %s71
      %p80 = scmp.eq.s32.totalorder %s18, 0
      %p81 = por %p79, %p80
      %p82 = scmp.ne.s32.totalorder %s70, %s71
      %p83 = scmp.eq.s32.totalorder %s19, 1
      %p84 = por %p82, %p83
      %p86 = scmp.ne.s32.totalorder %s71, %s85
      %p87 = scmp.eq.s32.totalorder %s19, 0
      %p88 = por %p86, %p87
      %s90 = sadd.s32 %s89, 1
      %p93 = scmp.eq.s32.totalorder %s13, 1
      %p94 = scmp.ne.s32.totalorder %s89, %s91
      %p95 = scmp.eq.s32.totalorder %s13, 0
      %p96 = por %p94, %p95
      %p97 = scmp.ne.s32.totalorder %s89, %s91
      %p98 = scmp.eq.s32.totalorder %s18, 1
      %p99 = por %p97, %p98
      %p100 = scmp.ne.s32.totalorder %s91, %s92
      %p101 = scmp.eq.s32.totalorder %s18, 0
      %p102 = por %p100, %p101
      %p103 = scmp.ne.s32.totalorder %s91, %s92
      %p104 = scmp.eq.s32.totalorder %s19, 1
      %p105 = por %p103, %p104
      %p107 = scmp.ne.s32.totalorder %s92, %s106
      %p108 = scmp.eq.s32.totalorder %s19, 0
      %p109 = por %p107, %p108
      %s111 = sadd.s32 %s110, 1
      %p114 = scmp.eq.s32.totalorder %s13, 1
      %p115 = scmp.ne.s32.totalorder %s110, %s112
      %p116 = scmp.eq.s32.totalorder %s13, 0
      %p117 = por %p115, %p116
      %p118 = scmp.ne.s32.totalorder %s110, %s112
      %p119 = scmp.eq.s32.totalorder %s18, 1
      %p120 = por %p118, %p119
      %p121 = scmp.ne.s32.totalorder %s112, %s113
      %p122 = scmp.eq.s32.totalorder %s18, 0
      %p123 = por %p121, %p122
      %p124 = scmp.ne.s32.totalorder %s112, %s113
      %p125 = scmp.eq.s32.totalorder %s19, 1
      %p126 = por %p124, %p125
      %p128 = scmp.ne.s32.totalorder %s113, %s127
      %p129 = scmp.eq.s32.totalorder %s19, 0
      %p130 = por %p128, %p129
      %s131 = ssub.s32 %s13, %s20
      %p132 = scmp.eq.s32.totalorder %s131, 0
      %s134 = sadd.s32 %s133, 1
      %s135 = scalar_select %p132, %s133, %s134
      %p138 = pneg %p132
      %p139 = scmp.eq.s32.totalorder %s13, 1
      %p140 = por %p138, %p139
      %p141 = scmp.ne.s32.totalorder %s133, %s136
      %p142 = scmp.eq.s32.totalorder %s13, 0
      %p143 = por %p141, %p142
      %p144 = scmp.ne.s32.totalorder %s133, %s136
      %p145 = scmp.eq.s32.totalorder %s18, 1
      %p146 = por %p144, %p145
      %p147 = scmp.ne.s32.totalorder %s136, %s137
      %p148 = scmp.eq.s32.totalorder %s18, 0
      %p149 = por %p147, %p148
      %p150 = scmp.ne.s32.totalorder %s136, %s137
      %p151 = scmp.eq.s32.totalorder %s19, 1
      %p152 = por %p150, %p151
      %p154 = scmp.ne.s32.totalorder %s137, %s153
      %p155 = scmp.eq.s32.totalorder %s19, 0
      %p156 = por %p154, %p155
      %s157 = ssub.s32 %s13, %s20
      %p158 = scmp.eq.s32.totalorder %s157, 0
      %s160 = sadd.s32 %s159, 1
      %s161 = scalar_select %p158, %s159, %s160
      %p164 = pneg %p158
      %p165 = scmp.eq.s32.totalorder %s13, 1
      %p166 = por %p164, %p165
      %p167 = scmp.ne.s32.totalorder %s159, %s162
      %p168 = scmp.eq.s32.totalorder %s13, 0
      %p169 = por %p167, %p168
      %p170 = scmp.ne.s32.totalorder %s159, %s162
      %p171 = scmp.eq.s32.totalorder %s18, 1
      %p172 = por %p170, %p171
      %p173 = scmp.ne.s32.totalorder %s162, %s163
      %p174 = scmp.eq.s32.totalorder %s18, 0
      %p175 = por %p173, %p174
      %p176 = scmp.ne.s32.totalorder %s162, %s163
      %p177 = scmp.eq.s32.totalorder %s19, 1
      %p178 = por %p176, %p177
      %p180 = scmp.ne.s32.totalorder %s163, %s179
      %p181 = scmp.eq.s32.totalorder %s19, 0
      %p182 = por %p180, %p181
      %p183 = scmp.le.s32.totalorder 1, %s13
      %p184 = scmp.lt.s32.totalorder %s13, 3
      %p185 = pnand %p183, %p184
      %p186 = pneg %p185
      // Predicated region
      $region9: #{prenorm_fn.1} parent=5 // pred_check
        _
      $region10: #{prenorm_fn.1} parent=5 // pred_check_branch
        %188 = sbr.rel (%p185) target = $region12
      $region11: #{prenorm_fn.1} parent=5 // pred_region
        %s189 = ssub.s32 %s13, 1
        // Predicated region
        $region13: #{prenorm_fn.1} parent=11 // pred_check
          %p190 = pneg %p60
        $region14: #{prenorm_fn.1} parent=11 // pred_check_branch
          %192 = sbr.rel (%p190) target = $region16
        $region15: #{prenorm_fn.1} parent=11 // pred_region
          _
        $region16: #{prenorm_fn.1} parent=11 // pred_fallthru
          _
        // Predicated region
        $region17: #{prenorm_fn.1} parent=11 // pred_check
          %p193 = pneg %p81
        $region18: #{prenorm_fn.1} parent=11 // pred_check_branch
          %195 = sbr.rel (%p193) target = $region20
        $region19: #{prenorm_fn.1} parent=11 // pred_region
          _
        $region20: #{prenorm_fn.1} parent=11 // pred_fallthru
          _
        // Predicated region
        $region21: #{prenorm_fn.1} parent=11 // pred_check
          %p196 = pneg %p102
        $region22: #{prenorm_fn.1} parent=11 // pred_check_branch
          %198 = sbr.rel (%p196) target = $region24
        $region23: #{prenorm_fn.1} parent=11 // pred_region
          _
        $region24: #{prenorm_fn.1} parent=11 // pred_fallthru
          _
        // Predicated region
        $region25: #{prenorm_fn.1} parent=11 // pred_check
          %p199 = pneg %p123
        $region26: #{prenorm_fn.1} parent=11 // pred_check_branch
          %201 = sbr.rel (%p199) target = $region28
        $region27: #{prenorm_fn.1} parent=11 // pred_region
          _
        $region28: #{prenorm_fn.1} parent=11 // pred_fallthru
          _
      $region12: #{prenorm_fn.1} parent=5 // pred_fallthru
        _
      %p202 = scmp.lt.s32.totalorder %s13, 2
      // Predicated region
      $region29: #{prenorm_fn.1} parent=5 // pred_check
        %p203 = pneg %p202
      $region30: #{prenorm_fn.1} parent=5 // pred_check_branch
        %205 = sbr.rel (%p203) target = $region32
      $region31: #{prenorm_fn.1} parent=5 // pred_region
        // Predicated region
        $region33: #{prenorm_fn.1} parent=31 // pred_check
          %p206 = pneg %p33
        $region34: #{prenorm_fn.1} parent=31 // pred_check_branch
          %208 = sbr.rel (%p206) target = $region36
        $region35: #{prenorm_fn.1} parent=31 // pred_region
          %s209 = smul.u32 64, %s13
          %s210 = ssub.s32 65, %s209
          %p211 = scmp.lt.s32.totalorder %s210, 64
          %s212 = scalar_select %p211, %s210, 64
          %s213 = smul.u32 4, %s212
          %p214 = scmp.lt.s32.totalorder %s209, 64
          %s215 = scalar_select %p214, %s209, 64
          %s216 = smul.addr %s215, 4
          %s217 = scalar_lea.vmem %s0, %s216
          %s218 = smul.u32 64, %s13
          %s219 = ssub.s32 65, %s218
          %p220 = scmp.lt.s32.totalorder %s219, 64
          %s221 = scalar_select %p220, %s219, 64
          %s222 = smul.u32 4, %s221
        $region36: #{prenorm_fn.1} parent=31 // pred_fallthru
          _
      $region32: #{prenorm_fn.1} parent=5 // pred_fallthru
        _
      %p223 = scmp.le.s32.totalorder 1, %s13
      %p224 = scmp.lt.s32.totalorder %s13, 3
      %p225 = pnand %p223, %p224
      %p226 = pneg %p225
      // Predicated region
      $region37: #{prenorm_fn.1} parent=5 // pred_check
        _
      $region38: #{prenorm_fn.1} parent=5 // pred_check_branch
        %228 = sbr.rel (%p225) target = $region40
      $region39: #{prenorm_fn.1} parent=5 // pred_region
        %s229 = ssub.s32 %s13, 1
        %s230 = smul.u32 64, %s18
        %s231 = ssub.s32 65, %s230
        %p232 = scmp.lt.s32.totalorder %s231, 64
        %s233 = scalar_select %p232, %s231, 64
        %s234 = smul.u32 4, %s233
        %p235 = scmp.lt.s32.totalorder %s230, 64
        %s236 = scalar_select %p235, %s230, 64
        %s237 = smul.addr %s236, 4
        %s238 = scalar_lea.vmem %s0, %s237
        %p239 = pneg %p39
        %p240 = pneg %p36
        %p241 = pneg %p60
        %p242 = pneg %p57
        %p243 = pneg %p81
        %p244 = pneg %p78
        %p245 = pneg %p102
        %p246 = pneg %p99
        %p247 = pneg %p123
        %p248 = pneg %p120
        %p249 = pneg %p149
        %p250 = pneg %p146
        %s251 = sand.u32 %s136, 1
        %s252 = sand.u32 %s136, 1
        %s253 = smul.addr %s252, 256
        %s254 = scalar_lea.vmem [#allocation2], %s253
        %p255 = pneg %p175
        %p256 = pneg %p172
        %s257 = sand.u32 %s162, 1
        %s258 = sand.u32 %s162, 1
        %s259 = smul.addr %s258, 4
        %s260 = scalar_lea.vmem [#allocation3], %s259
        %s261 = smul.u32 64, %s18
        %s262 = ssub.s32 65, %s261
        %p263 = scmp.lt.s32.totalorder %s262, 64
        %s264 = scalar_select %p263, %s262, 64
        %s265 = smul.u32 4, %s264
        %p266 = scmp.lt.s32.totalorder %s261, 64
        %s267 = scalar_select %p266, %s261, 64
        %s268 = smul.addr %s267, 4
        %s269 = scalar_lea.vmem %s0, %s268
        %s270 = smul.u32 64, %s18
        %s271 = ssub.s32 65, %s270
        %p272 = scmp.lt.s32.totalorder %s271, 64
        %s273 = scalar_select %p272, %s271, 64
        %s274 = smul.u32 4, %s273
        %s275 = smul.u32 64, %s18
        %s276 = ssub.s32 65, %s275
        %p277 = scmp.lt.s32.totalorder %s276, 64
        %s278 = scalar_select %p277, %s276, 64
        %s279 = smul.u32 4, %s278
        %s280 = smul.u32 4, %s18
        %s281 = ssub.s32 5, %s280
        %p282 = scmp.lt.s32.totalorder %s281, 4
        %s283 = scalar_select %p282, %s281, 4
        %v285 = vld [vmem:[%s269] sm:$0xf]
        %v286 = vld [vmem:[%s269 + $0x4] sm:$0xf]
        %v287 = vld [vmem:[%s269 + $0x8] sm:$0xf]
        %v288 = vld [vmem:[%s269 + $0xc] sm:$0xf]
        %v289 = vld [vmem:[%s269 + $0x10] sm:$0xf]
        %v290 = vld [vmem:[%s269 + $0x14] sm:$0xf]
        %v291 = vld [vmem:[%s269 + $0x18] sm:$0xf]
        %v292 = vld [vmem:[%s269 + $0x1c] sm:$0xf]
        %v293 = vld [vmem:[%s269 + $0x20] sm:$0xf]
        %v294 = vld [vmem:[%s269 + $0x24] sm:$0xf]
        %v295 = vld [vmem:[%s269 + $0x28] sm:$0xf]
        %v296 = vld [vmem:[%s269 + $0x2c] sm:$0xf]
        %v297 = vld [vmem:[%s269 + $0x30] sm:$0xf]
        %v298 = vld [vmem:[%s269 + $0x34] sm:$0xf]
        %v299 = vld [vmem:[%s269 + $0x38] sm:$0xf]
        %v300 = vld [vmem:[%s269 + $0x3c] sm:$0xf]
        %v301 = vld [vmem:[%s269 + $0x40] sm:$0xf]
        %v302 = vld [vmem:[%s269 + $0x44] sm:$0xf]
        %v303 = vld [vmem:[%s269 + $0x48] sm:$0xf]
        %v304 = vld [vmem:[%s269 + $0x4c] sm:$0xf]
        %v305 = vld [vmem:[%s269 + $0x50] sm:$0xf]
        %v306 = vld [vmem:[%s269 + $0x54] sm:$0xf]
        %v307 = vld [vmem:[%s269 + $0x58] sm:$0xf]
        %v308 = vld [vmem:[%s269 + $0x5c] sm:$0xf]
        %v309 = vld [vmem:[%s269 + $0x60] sm:$0xf]
        %v310 = vld [vmem:[%s269 + $0x64] sm:$0xf]
        %v311 = vld [vmem:[%s269 + $0x68] sm:$0xf]
        %v312 = vld [vmem:[%s269 + $0x6c] sm:$0xf]
        %v313 = vld [vmem:[%s269 + $0x70] sm:$0xf]
        %v314 = vld [vmem:[%s269 + $0x74] sm:$0xf]
        %v315 = vld [vmem:[%s269 + $0x78] sm:$0xf]
        %v316 = vld [vmem:[%s269 + $0x7c] sm:$0xf]
        %v317 = vld [vmem:[%s269 + $0x80] sm:$0xf]
        %v318 = vld [vmem:[%s269 + $0x84] sm:$0xf]
        %v319 = vld [vmem:[%s269 + $0x88] sm:$0xf]
        %v320 = vld [vmem:[%s269 + $0x8c] sm:$0xf]
        %v321 = vld [vmem:[%s269 + $0x90] sm:$0xf]
        %v322 = vld [vmem:[%s269 + $0x94] sm:$0xf]
        %v323 = vld [vmem:[%s269 + $0x98] sm:$0xf]
        %v324 = vld [vmem:[%s269 + $0x9c] sm:$0xf]
        %v325 = vld [vmem:[%s269 + $0xa0] sm:$0xf]
        %v326 = vld [vmem:[%s269 + $0xa4] sm:$0xf]
        %v327 = vld [vmem:[%s269 + $0xa8] sm:$0xf]
        %v328 = vld [vmem:[%s269 + $0xac] sm:$0xf]
        %v329 = vld [vmem:[%s269 + $0xb0] sm:$0xf]
        %v330 = vld [vmem:[%s269 + $0xb4] sm:$0xf]
        %v331 = vld [vmem:[%s269 + $0xb8] sm:$0xf]
        %v332 = vld [vmem:[%s269 + $0xbc] sm:$0xf]
        %v333 = vld [vmem:[%s269 + $0xc0] sm:$0xf]
        %v334 = vld [vmem:[%s269 + $0xc4] sm:$0xf]
        %v335 = vld [vmem:[%s269 + $0xc8] sm:$0xf]
        %v336 = vld [vmem:[%s269 + $0xcc] sm:$0xf]
        %v337 = vld [vmem:[%s269 + $0xd0] sm:$0xf]
        %v338 = vld [vmem:[%s269 + $0xd4] sm:$0xf]
        %v339 = vld [vmem:[%s269 + $0xd8] sm:$0xf]
        %v340 = vld [vmem:[%s269 + $0xdc] sm:$0xf]
        %v341 = vld [vmem:[%s269 + $0xe0] sm:$0xf]
        %v342 = vld [vmem:[%s269 + $0xe4] sm:$0xf]
        %v343 = vld [vmem:[%s269 + $0xe8] sm:$0xf]
        %v344 = vld [vmem:[%s269 + $0xec] sm:$0xf]
        %v345 = vld [vmem:[%s269 + $0xf0] sm:$0xf]
        %v346 = vld [vmem:[%s269 + $0xf4] sm:$0xf]
        %v347 = vld [vmem:[%s269 + $0xf8] sm:$0xf]
        %v348 = vld [vmem:[%s269 + $0xfc] sm:$0xf]
        %v349 = vunpack.c.l.bf16 %v285
        %v350 = vunpack.c.l.bf16 %v286
        %v351 = vunpack.c.l.bf16 %v287
        %v352 = vunpack.c.l.bf16 %v288
        %v353 = vunpack.c.l.bf16 %v289
        %v354 = vunpack.c.l.bf16 %v290
        %v355 = vunpack.c.l.bf16 %v291
        %v356 = vunpack.c.l.bf16 %v292
        %v357 = vunpack.c.l.bf16 %v293
        %v358 = vunpack.c.l.bf16 %v294
        %v359 = vunpack.c.l.bf16 %v295
        %v360 = vunpack.c.l.bf16 %v296
        %v361 = vunpack.c.l.bf16 %v297
        %v362 = vunpack.c.l.bf16 %v298
        %v363 = vunpack.c.l.bf16 %v299
        %v364 = vunpack.c.l.bf16 %v300
        %v365 = vunpack.c.l.bf16 %v301
        %v366 = vunpack.c.l.bf16 %v302
        %v367 = vunpack.c.l.bf16 %v303
        %v368 = vunpack.c.l.bf16 %v304
        %v369 = vunpack.c.l.bf16 %v305
        %v370 = vunpack.c.l.bf16 %v306
        %v371 = vunpack.c.l.bf16 %v307
        %v372 = vunpack.c.l.bf16 %v308
        %v373 = vunpack.c.l.bf16 %v309
        %v374 = vunpack.c.l.bf16 %v310
        %v375 = vunpack.c.l.bf16 %v311
        %v376 = vunpack.c.l.bf16 %v312
        %v377 = vunpack.c.l.bf16 %v313
        %v378 = vunpack.c.l.bf16 %v314
        %v379 = vunpack.c.l.bf16 %v315
        %v380 = vunpack.c.l.bf16 %v316
        %v381 = vunpack.c.l.bf16 %v317
        %v382 = vunpack.c.l.bf16 %v318
        %v383 = vunpack.c.l.bf16 %v319
        %v384 = vunpack.c.l.bf16 %v320
        %v385 = vunpack.c.l.bf16 %v321
        %v386 = vunpack.c.l.bf16 %v322
        %v387 = vunpack.c.l.bf16 %v323
        %v388 = vunpack.c.l.bf16 %v324
        %v389 = vunpack.c.l.bf16 %v325
        %v390 = vunpack.c.l.bf16 %v326
        %v391 = vunpack.c.l.bf16 %v327
        %v392 = vunpack.c.l.bf16 %v328
        %v393 = vunpack.c.l.bf16 %v329
        %v394 = vunpack.c.l.bf16 %v330
        %v395 = vunpack.c.l.bf16 %v331
        %v396 = vunpack.c.l.bf16 %v332
        %v397 = vunpack.c.l.bf16 %v333
        %v398 = vunpack.c.l.bf16 %v334
        %v399 = vunpack.c.l.bf16 %v335
        %v400 = vunpack.c.l.bf16 %v336
        %v401 = vunpack.c.l.bf16 %v337
        %v402 = vunpack.c.l.bf16 %v338
        %v403 = vunpack.c.l.bf16 %v339
        %v404 = vunpack.c.l.bf16 %v340
        %v405 = vunpack.c.l.bf16 %v341
        %v406 = vunpack.c.l.bf16 %v342
        %v407 = vunpack.c.l.bf16 %v343
        %v408 = vunpack.c.l.bf16 %v344
        %v409 = vunpack.c.l.bf16 %v345
        %v410 = vunpack.c.l.bf16 %v346
        %v411 = vunpack.c.l.bf16 %v347
        %v412 = vunpack.c.l.bf16 %v348
        %v413 = vld [vmem:[%s1] sm:$0x1]
        %v414 = vld [vmem:[%s2] sm:$0x1]
        %vm415 = vcmask 261120
        %v416 = vsel %vm415, %v349, 0.0
        %417 = vadd.xlane.f32.xlu0 %v416
        %v418 = vpop.xlane.xlu0 %417
        %v419 = vsel %vm415, %v350, 0.0
        %420 = vadd.xlane.f32.xlu0 %v419
        %v421 = vpop.xlane.xlu0 %420
        %v422 = vsel %vm415, %v351, 0.0
        %423 = vadd.xlane.f32.xlu0 %v422
        %v424 = vpop.xlane.xlu0 %423
        %v425 = vsel %vm415, %v352, 0.0
        %426 = vadd.xlane.f32.xlu0 %v425
        %v427 = vpop.xlane.xlu0 %426
        %v428 = vsel %vm415, %v353, 0.0
        %429 = vadd.xlane.f32.xlu0 %v428
        %v430 = vpop.xlane.xlu0 %429
        %v431 = vsel %vm415, %v354, 0.0
        %432 = vadd.xlane.f32.xlu0 %v431
        %v433 = vpop.xlane.xlu0 %432
        %v434 = vsel %vm415, %v355, 0.0
        %435 = vadd.xlane.f32.xlu0 %v434
        %v436 = vpop.xlane.xlu0 %435
        %v437 = vsel %vm415, %v356, 0.0
        %438 = vadd.xlane.f32.xlu0 %v437
        %v439 = vpop.xlane.xlu0 %438
        %v440 = vsel %vm415, %v357, 0.0
        %441 = vadd.xlane.f32.xlu0 %v440
        %v442 = vpop.xlane.xlu0 %441
        %v443 = vsel %vm415, %v358, 0.0
        %444 = vadd.xlane.f32.xlu0 %v443
        %v445 = vpop.xlane.xlu0 %444
        %v446 = vsel %vm415, %v359, 0.0
        %447 = vadd.xlane.f32.xlu0 %v446
        %v448 = vpop.xlane.xlu0 %447
        %v449 = vsel %vm415, %v360, 0.0
        %450 = vadd.xlane.f32.xlu0 %v449
        %v451 = vpop.xlane.xlu0 %450
        %v452 = vsel %vm415, %v361, 0.0
        %453 = vadd.xlane.f32.xlu0 %v452
        %v454 = vpop.xlane.xlu0 %453
        %v455 = vsel %vm415, %v362, 0.0
        %456 = vadd.xlane.f32.xlu0 %v455
        %v457 = vpop.xlane.xlu0 %456
        %v458 = vsel %vm415, %v363, 0.0
        %459 = vadd.xlane.f32.xlu0 %v458
        %v460 = vpop.xlane.xlu0 %459
        %v461 = vsel %vm415, %v364, 0.0
        %462 = vadd.xlane.f32.xlu0 %v461
        %v463 = vpop.xlane.xlu0 %462
        %v464 = vsel %vm415, %v365, 0.0
        %465 = vadd.xlane.f32.xlu0 %v464
        %v466 = vpop.xlane.xlu0 %465
        %v467 = vsel %vm415, %v366, 0.0
        %468 = vadd.xlane.f32.xlu0 %v467
        %v469 = vpop.xlane.xlu0 %468
        %v470 = vsel %vm415, %v367, 0.0
        %471 = vadd.xlane.f32.xlu0 %v470
        %v472 = vpop.xlane.xlu0 %471
        %v473 = vsel %vm415, %v368, 0.0
        %474 = vadd.xlane.f32.xlu0 %v473
        %v475 = vpop.xlane.xlu0 %474
        %v476 = vsel %vm415, %v369, 0.0
        %477 = vadd.xlane.f32.xlu0 %v476
        %v478 = vpop.xlane.xlu0 %477
        %v479 = vsel %vm415, %v370, 0.0
        %480 = vadd.xlane.f32.xlu0 %v479
        %v481 = vpop.xlane.xlu0 %480
        %v482 = vsel %vm415, %v371, 0.0
        %483 = vadd.xlane.f32.xlu0 %v482
        %v484 = vpop.xlane.xlu0 %483
        %v485 = vsel %vm415, %v372, 0.0
        %486 = vadd.xlane.f32.xlu0 %v485
        %v487 = vpop.xlane.xlu0 %486
        %v488 = vsel %vm415, %v373, 0.0
        %489 = vadd.xlane.f32.xlu0 %v488
        %v490 = vpop.xlane.xlu0 %489
        %v491 = vsel %vm415, %v374, 0.0
        %492 = vadd.xlane.f32.xlu0 %v491
        %v493 = vpop.xlane.xlu0 %492
        %v494 = vsel %vm415, %v375, 0.0
        %495 = vadd.xlane.f32.xlu0 %v494
        %v496 = vpop.xlane.xlu0 %495
        %v497 = vsel %vm415, %v376, 0.0
        %498 = vadd.xlane.f32.xlu0 %v497
        %v499 = vpop.xlane.xlu0 %498
        %v500 = vsel %vm415, %v377, 0.0
        %501 = vadd.xlane.f32.xlu0 %v500
        %v502 = vpop.xlane.xlu0 %501
        %v503 = vsel %vm415, %v378, 0.0
        %504 = vadd.xlane.f32.xlu0 %v503
        %v505 = vpop.xlane.xlu0 %504
        %v506 = vsel %vm415, %v379, 0.0
        %507 = vadd.xlane.f32.xlu0 %v506
        %v508 = vpop.xlane.xlu0 %507
        %v509 = vsel %vm415, %v380, 0.0
        %510 = vadd.xlane.f32.xlu0 %v509
        %v511 = vpop.xlane.xlu0 %510
        %v512 = vsel %vm415, %v381, 0.0
        %513 = vadd.xlane.f32.xlu0 %v512
        %v514 = vpop.xlane.xlu0 %513
        %v515 = vsel %vm415, %v382, 0.0
        %516 = vadd.xlane.f32.xlu0 %v515
        %v517 = vpop.xlane.xlu0 %516
        %v518 = vsel %vm415, %v383, 0.0
        %519 = vadd.xlane.f32.xlu0 %v518
        %v520 = vpop.xlane.xlu0 %519
        %v521 = vsel %vm415, %v384, 0.0
        %522 = vadd.xlane.f32.xlu0 %v521
        %v523 = vpop.xlane.xlu0 %522
        %v524 = vsel %vm415, %v385, 0.0
        %525 = vadd.xlane.f32.xlu0 %v524
        %v526 = vpop.xlane.xlu0 %525
        %v527 = vsel %vm415, %v386, 0.0
        %528 = vadd.xlane.f32.xlu0 %v527
        %v529 = vpop.xlane.xlu0 %528
        %v530 = vsel %vm415, %v387, 0.0
        %531 = vadd.xlane.f32.xlu0 %v530
        %v532 = vpop.xlane.xlu0 %531
        %v533 = vsel %vm415, %v388, 0.0
        %534 = vadd.xlane.f32.xlu0 %v533
        %v535 = vpop.xlane.xlu0 %534
        %v536 = vsel %vm415, %v389, 0.0
        %537 = vadd.xlane.f32.xlu0 %v536
        %v538 = vpop.xlane.xlu0 %537
        %v539 = vsel %vm415, %v390, 0.0
        %540 = vadd.xlane.f32.xlu0 %v539
        %v541 = vpop.xlane.xlu0 %540
        %v542 = vsel %vm415, %v391, 0.0
        %543 = vadd.xlane.f32.xlu0 %v542
        %v544 = vpop.xlane.xlu0 %543
        %v545 = vsel %vm415, %v392, 0.0
        %546 = vadd.xlane.f32.xlu0 %v545
        %v547 = vpop.xlane.xlu0 %546
        %v548 = vsel %vm415, %v393, 0.0
        %549 = vadd.xlane.f32.xlu0 %v548
        %v550 = vpop.xlane.xlu0 %549
        %v551 = vsel %vm415, %v394, 0.0
        %552 = vadd.xlane.f32.xlu0 %v551
        %v553 = vpop.xlane.xlu0 %552
        %v554 = vsel %vm415, %v395, 0.0
        %555 = vadd.xlane.f32.xlu0 %v554
        %v556 = vpop.xlane.xlu0 %555
        %v557 = vsel %vm415, %v396, 0.0
        %558 = vadd.xlane.f32.xlu0 %v557
        %v559 = vpop.xlane.xlu0 %558
        %v560 = vsel %vm415, %v397, 0.0
        %561 = vadd.xlane.f32.xlu0 %v560
        %v562 = vpop.xlane.xlu0 %561
        %v563 = vsel %vm415, %v398, 0.0
        %564 = vadd.xlane.f32.xlu0 %v563
        %v565 = vpop.xlane.xlu0 %564
        %v566 = vsel %vm415, %v399, 0.0
        %567 = vadd.xlane.f32.xlu0 %v566
        %v568 = vpop.xlane.xlu0 %567
        %v569 = vsel %vm415, %v400, 0.0
        %570 = vadd.xlane.f32.xlu0 %v569
        %v571 = vpop.xlane.xlu0 %570
        %v572 = vsel %vm415, %v401, 0.0
        %573 = vadd.xlane.f32.xlu0 %v572
        %v574 = vpop.xlane.xlu0 %573
        %v575 = vsel %vm415, %v402, 0.0
        %576 = vadd.xlane.f32.xlu0 %v575
        %v577 = vpop.xlane.xlu0 %576
        %v578 = vsel %vm415, %v403, 0.0
        %579 = vadd.xlane.f32.xlu0 %v578
        %v580 = vpop.xlane.xlu0 %579
        %v581 = vsel %vm415, %v404, 0.0
        %582 = vadd.xlane.f32.xlu0 %v581
        %v583 = vpop.xlane.xlu0 %582
        %v584 = vsel %vm415, %v405, 0.0
        %585 = vadd.xlane.f32.xlu0 %v584
        %v586 = vpop.xlane.xlu0 %585
        %v587 = vsel %vm415, %v406, 0.0
        %588 = vadd.xlane.f32.xlu0 %v587
        %v589 = vpop.xlane.xlu0 %588
        %v590 = vsel %vm415, %v407, 0.0
        %591 = vadd.xlane.f32.xlu0 %v590
        %v592 = vpop.xlane.xlu0 %591
        %v593 = vsel %vm415, %v408, 0.0
        %594 = vadd.xlane.f32.xlu0 %v593
        %v595 = vpop.xlane.xlu0 %594
        %v596 = vsel %vm415, %v409, 0.0
        %597 = vadd.xlane.f32.xlu0 %v596
        %v598 = vpop.xlane.xlu0 %597
        %v599 = vsel %vm415, %v410, 0.0
        %600 = vadd.xlane.f32.xlu0 %v599
        %v601 = vpop.xlane.xlu0 %600
        %v602 = vsel %vm415, %v411, 0.0
        %603 = vadd.xlane.f32.xlu0 %v602
        %v604 = vpop.xlane.xlu0 %603
        %v605 = vsel %vm415, %v412, 0.0
        %606 = vadd.xlane.f32.xlu0 %v605
        %v607 = vpop.xlane.xlu0 %606
        %v608 = vmul.f32 %v418, 0.03125
        %v609 = vmul.f32 %v421, 0.03125
        %v610 = vmul.f32 %v424, 0.03125
        %v611 = vmul.f32 %v427, 0.03125
        %v612 = vmul.f32 %v430, 0.03125
        %v613 = vmul.f32 %v433, 0.03125
        %v614 = vmul.f32 %v436, 0.03125
        %v615 = vmul.f32 %v439, 0.03125
        %v616 = vmul.f32 %v442, 0.03125
        %v617 = vmul.f32 %v445, 0.03125
        %v618 = vmul.f32 %v448, 0.03125
        %v619 = vmul.f32 %v451, 0.03125
        %v620 = vmul.f32 %v454, 0.03125
        %v621 = vmul.f32 %v457, 0.03125
        %v622 = vmul.f32 %v460, 0.03125
        %v623 = vmul.f32 %v463, 0.03125
        %v624 = vmul.f32 %v466, 0.03125
        %v625 = vmul.f32 %v469, 0.03125
        %v626 = vmul.f32 %v472, 0.03125
        %v627 = vmul.f32 %v475, 0.03125
        %v628 = vmul.f32 %v478, 0.03125
        %v629 = vmul.f32 %v481, 0.03125
        %v630 = vmul.f32 %v484, 0.03125
        %v631 = vmul.f32 %v487, 0.03125
        %v632 = vmul.f32 %v490, 0.03125
        %v633 = vmul.f32 %v493, 0.03125
        %v634 = vmul.f32 %v496, 0.03125
        %v635 = vmul.f32 %v499, 0.03125
        %v636 = vmul.f32 %v502, 0.03125
        %v637 = vmul.f32 %v505, 0.03125
        %v638 = vmul.f32 %v508, 0.03125
        %v639 = vmul.f32 %v511, 0.03125
        %v640 = vmul.f32 %v514, 0.03125
        %v641 = vmul.f32 %v517, 0.03125
        %v642 = vmul.f32 %v520, 0.03125
        %v643 = vmul.f32 %v523, 0.03125
        %v644 = vmul.f32 %v526, 0.03125
        %v645 = vmul.f32 %v529, 0.03125
        %v646 = vmul.f32 %v532, 0.03125
        %v647 = vmul.f32 %v535, 0.03125
        %v648 = vmul.f32 %v538, 0.03125
        %v649 = vmul.f32 %v541, 0.03125
        %v650 = vmul.f32 %v544, 0.03125
        %v651 = vmul.f32 %v547, 0.03125
        %v652 = vmul.f32 %v550, 0.03125
        %v653 = vmul.f32 %v553, 0.03125
        %v654 = vmul.f32 %v556, 0.03125
        %v655 = vmul.f32 %v559, 0.03125
        %v656 = vmul.f32 %v562, 0.03125
        %v657 = vmul.f32 %v565, 0.03125
        %v658 = vmul.f32 %v568, 0.03125
        %v659 = vmul.f32 %v571, 0.03125
        %v660 = vmul.f32 %v574, 0.03125
        %v661 = vmul.f32 %v577, 0.03125
        %v662 = vmul.f32 %v580, 0.03125
        %v663 = vmul.f32 %v583, 0.03125
        %v664 = vmul.f32 %v586, 0.03125
        %v665 = vmul.f32 %v589, 0.03125
        %v666 = vmul.f32 %v592, 0.03125
        %v667 = vmul.f32 %v595, 0.03125
        %v668 = vmul.f32 %v598, 0.03125
        %v669 = vmul.f32 %v601, 0.03125
        %v670 = vmul.f32 %v604, 0.03125
        %v671 = vmul.f32 %v607, 0.03125
        %v672 = vsub.f32 %v349, %v608
        %v673 = vsub.f32 %v350, %v609
        %v674 = vsub.f32 %v351, %v610
        %v675 = vsub.f32 %v352, %v611
        %v676 = vsub.f32 %v353, %v612
        %v677 = vsub.f32 %v354, %v613
        %v678 = vsub.f32 %v355, %v614
        %v679 = vsub.f32 %v356, %v615
        %v680 = vsub.f32 %v357, %v616
        %v681 = vsub.f32 %v358, %v617
        %v682 = vsub.f32 %v359, %v618
        %v683 = vsub.f32 %v360, %v619
        %v684 = vsub.f32 %v361, %v620
        %v685 = vsub.f32 %v362, %v621
        %v686 = vsub.f32 %v363, %v622
        %v687 = vsub.f32 %v364, %v623
        %v688 = vsub.f32 %v365, %v624
        %v689 = vsub.f32 %v366, %v625
        %v690 = vsub.f32 %v367, %v626
        %v691 = vsub.f32 %v368, %v627
        %v692 = vsub.f32 %v369, %v628
        %v693 = vsub.f32 %v370, %v629
        %v694 = vsub.f32 %v371, %v630
        %v695 = vsub.f32 %v372, %v631
        %v696 = vsub.f32 %v373, %v632
        %v697 = vsub.f32 %v374, %v633
        %v698 = vsub.f32 %v375, %v634
        %v699 = vsub.f32 %v376, %v635
        %v700 = vsub.f32 %v377, %v636
        %v701 = vsub.f32 %v378, %v637
        %v702 = vsub.f32 %v379, %v638
        %v703 = vsub.f32 %v380, %v639
        %v704 = vsub.f32 %v381, %v640
        %v705 = vsub.f32 %v382, %v641
        %v706 = vsub.f32 %v383, %v642
        %v707 = vsub.f32 %v384, %v643
        %v708 = vsub.f32 %v385, %v644
        %v709 = vsub.f32 %v386, %v645
        %v710 = vsub.f32 %v387, %v646
        %v711 = vsub.f32 %v388, %v647
        %v712 = vsub.f32 %v389, %v648
        %v713 = vsub.f32 %v390, %v649
        %v714 = vsub.f32 %v391, %v650
        %v715 = vsub.f32 %v392, %v651
        %v716 = vsub.f32 %v393, %v652
        %v717 = vsub.f32 %v394, %v653
        %v718 = vsub.f32 %v395, %v654
        %v719 = vsub.f32 %v396, %v655
        %v720 = vsub.f32 %v397, %v656
        %v721 = vsub.f32 %v398, %v657
        %v722 = vsub.f32 %v399, %v658
        %v723 = vsub.f32 %v400, %v659
        %v724 = vsub.f32 %v401, %v660
        %v725 = vsub.f32 %v402, %v661
        %v726 = vsub.f32 %v403, %v662
        %v727 = vsub.f32 %v404, %v663
        %v728 = vsub.f32 %v405, %v664
        %v729 = vsub.f32 %v406, %v665
        %v730 = vsub.f32 %v407, %v666
        %v731 = vsub.f32 %v408, %v667
        %v732 = vsub.f32 %v409, %v668
        %v733 = vsub.f32 %v410, %v669
        %v734 = vsub.f32 %v411, %v670
        %v735 = vsub.f32 %v412, %v671
        %v736 = vmul.f32 %v672, %v672
        %v737 = vmul.f32 %v673, %v673
        %v738 = vmul.f32 %v674, %v674
        %v739 = vmul.f32 %v675, %v675
        %v740 = vmul.f32 %v676, %v676
        %v741 = vmul.f32 %v677, %v677
        %v742 = vmul.f32 %v678, %v678
        %v743 = vmul.f32 %v679, %v679
        %v744 = vmul.f32 %v680, %v680
        %v745 = vmul.f32 %v681, %v681
        %v746 = vmul.f32 %v682, %v682
        %v747 = vmul.f32 %v683, %v683
        %v748 = vmul.f32 %v684, %v684
        %v749 = vmul.f32 %v685, %v685
        %v750 = vmul.f32 %v686, %v686
        %v751 = vmul.f32 %v687, %v687
        %v752 = vmul.f32 %v688, %v688
        %v753 = vmul.f32 %v689, %v689
        %v754 = vmul.f32 %v690, %v690
        %v755 = vmul.f32 %v691, %v691
        %v756 = vmul.f32 %v692, %v692
        %v757 = vmul.f32 %v693, %v693
        %v758 = vmul.f32 %v694, %v694
        %v759 = vmul.f32 %v695, %v695
        %v760 = vmul.f32 %v696, %v696
        %v761 = vmul.f32 %v697, %v697
        %v762 = vmul.f32 %v698, %v698
        %v763 = vmul.f32 %v699, %v699
        %v764 = vmul.f32 %v700, %v700
        %v765 = vmul.f32 %v701, %v701
        %v766 = vmul.f32 %v702, %v702
        %v767 = vmul.f32 %v703, %v703
        %v768 = vmul.f32 %v704, %v704
        %v769 = vmul.f32 %v705, %v705
        %v770 = vmul.f32 %v706, %v706
        %v771 = vmul.f32 %v707, %v707
        %v772 = vmul.f32 %v708, %v708
        %v773 = vmul.f32 %v709, %v709
        %v774 = vmul.f32 %v710, %v710
        %v775 = vmul.f32 %v711, %v711
        %v776 = vmul.f32 %v712, %v712
        %v777 = vmul.f32 %v713, %v713
        %v778 = vmul.f32 %v714, %v714
        %v779 = vmul.f32 %v715, %v715
        %v780 = vmul.f32 %v716, %v716
        %v781 = vmul.f32 %v717, %v717
        %v782 = vmul.f32 %v718, %v718
        %v783 = vmul.f32 %v719, %v719
        %v784 = vmul.f32 %v720, %v720
        %v785 = vmul.f32 %v721, %v721
        %v786 = vmul.f32 %v722, %v722
        %v787 = vmul.f32 %v723, %v723
        %v788 = vmul.f32 %v724, %v724
        %v789 = vmul.f32 %v725, %v725
        %v790 = vmul.f32 %v726, %v726
        %v791 = vmul.f32 %v727, %v727
        %v792 = vmul.f32 %v728, %v728
        %v793 = vmul.f32 %v729, %v729
        %v794 = vmul.f32 %v730, %v730
        %v795 = vmul.f32 %v731, %v731
        %v796 = vmul.f32 %v732, %v732
        %v797 = vmul.f32 %v733, %v733
        %v798 = vmul.f32 %v734, %v734
        %v799 = vmul.f32 %v735, %v735
        %v800 = vsel %vm415, %v736, 0.0
        %801 = vadd.xlane.f32.xlu0 %v800
        %v802 = vpop.xlane.xlu0 %801
        %v803 = vsel %vm415, %v737, 0.0
        %804 = vadd.xlane.f32.xlu0 %v803
        %v805 = vpop.xlane.xlu0 %804
        %v806 = vsel %vm415, %v738, 0.0
        %807 = vadd.xlane.f32.xlu0 %v806
        %v808 = vpop.xlane.xlu0 %807
        %v809 = vsel %vm415, %v739, 0.0
        %810 = vadd.xlane.f32.xlu0 %v809
        %v811 = vpop.xlane.xlu0 %810
        %v812 = vsel %vm415, %v740, 0.0
        %813 = vadd.xlane.f32.xlu0 %v812
        %v814 = vpop.xlane.xlu0 %813
        %v815 = vsel %vm415, %v741, 0.0
        %816 = vadd.xlane.f32.xlu0 %v815
        %v817 = vpop.xlane.xlu0 %816
        %v818 = vsel %vm415, %v742, 0.0
        %819 = vadd.xlane.f32.xlu0 %v818
        %v820 = vpop.xlane.xlu0 %819
        %v821 = vsel %vm415, %v743, 0.0
        %822 = vadd.xlane.f32.xlu0 %v821
        %v823 = vpop.xlane.xlu0 %822
        %v824 = vsel %vm415, %v744, 0.0
        %825 = vadd.xlane.f32.xlu0 %v824
        %v826 = vpop.xlane.xlu0 %825
        %v827 = vsel %vm415, %v745, 0.0
        %828 = vadd.xlane.f32.xlu0 %v827
        %v829 = vpop.xlane.xlu0 %828
        %v830 = vsel %vm415, %v746, 0.0
        %831 = vadd.xlane.f32.xlu0 %v830
        %v832 = vpop.xlane.xlu0 %831
        %v833 = vsel %vm415, %v747, 0.0
        %834 = vadd.xlane.f32.xlu0 %v833
        %v835 = vpop.xlane.xlu0 %834
        %v836 = vsel %vm415, %v748, 0.0
        %837 = vadd.xlane.f32.xlu0 %v836
        %v838 = vpop.xlane.xlu0 %837
        %v839 = vsel %vm415, %v749, 0.0
        %840 = vadd.xlane.f32.xlu0 %v839
        %v841 = vpop.xlane.xlu0 %840
        %v842 = vsel %vm415, %v750, 0.0
        %843 = vadd.xlane.f32.xlu0 %v842
        %v844 = vpop.xlane.xlu0 %843
        %v845 = vsel %vm415, %v751, 0.0
        %846 = vadd.xlane.f32.xlu0 %v845
        %v847 = vpop.xlane.xlu0 %846
        %v848 = vsel %vm415, %v752, 0.0
        %849 = vadd.xlane.f32.xlu0 %v848
        %v850 = vpop.xlane.xlu0 %849
        %v851 = vsel %vm415, %v753, 0.0
        %852 = vadd.xlane.f32.xlu0 %v851
        %v853 = vpop.xlane.xlu0 %852
        %v854 = vsel %vm415, %v754, 0.0
        %855 = vadd.xlane.f32.xlu0 %v854
        %v856 = vpop.xlane.xlu0 %855
        %v857 = vsel %vm415, %v755, 0.0
        %858 = vadd.xlane.f32.xlu0 %v857
        %v859 = vpop.xlane.xlu0 %858
        %v860 = vsel %vm415, %v756, 0.0
        %861 = vadd.xlane.f32.xlu0 %v860
        %v862 = vpop.xlane.xlu0 %861
        %v863 = vsel %vm415, %v757, 0.0
        %864 = vadd.xlane.f32.xlu0 %v863
        %v865 = vpop.xlane.xlu0 %864
        %v866 = vsel %vm415, %v758, 0.0
        %867 = vadd.xlane.f32.xlu0 %v866
        %v868 = vpop.xlane.xlu0 %867
        %v869 = vsel %vm415, %v759, 0.0
        %870 = vadd.xlane.f32.xlu0 %v869
        %v871 = vpop.xlane.xlu0 %870
        %v872 = vsel %vm415, %v760, 0.0
        %873 = vadd.xlane.f32.xlu0 %v872
        %v874 = vpop.xlane.xlu0 %873
        %v875 = vsel %vm415, %v761, 0.0
        %876 = vadd.xlane.f32.xlu0 %v875
        %v877 = vpop.xlane.xlu0 %876
        %v878 = vsel %vm415, %v762, 0.0
        %879 = vadd.xlane.f32.xlu0 %v878
        %v880 = vpop.xlane.xlu0 %879
        %v881 = vsel %vm415, %v763, 0.0
        %882 = vadd.xlane.f32.xlu0 %v881
        %v883 = vpop.xlane.xlu0 %882
        %v884 = vsel %vm415, %v764, 0.0
        %885 = vadd.xlane.f32.xlu0 %v884
        %v886 = vpop.xlane.xlu0 %885
        %v887 = vsel %vm415, %v765, 0.0
        %888 = vadd.xlane.f32.xlu0 %v887
        %v889 = vpop.xlane.xlu0 %888
        %v890 = vsel %vm415, %v766, 0.0
        %891 = vadd.xlane.f32.xlu0 %v890
        %v892 = vpop.xlane.xlu0 %891
        %v893 = vsel %vm415, %v767, 0.0
        %894 = vadd.xlane.f32.xlu0 %v893
        %v895 = vpop.xlane.xlu0 %894
        %v896 = vsel %vm415, %v768, 0.0
        %897 = vadd.xlane.f32.xlu0 %v896
        %v898 = vpop.xlane.xlu0 %897
        %v899 = vsel %vm415, %v769, 0.0
        %900 = vadd.xlane.f32.xlu0 %v899
        %v901 = vpop.xlane.xlu0 %900
        %v902 = vsel %vm415, %v770, 0.0
        %903 = vadd.xlane.f32.xlu0 %v902
        %v904 = vpop.xlane.xlu0 %903
        %v905 = vsel %vm415, %v771, 0.0
        %906 = vadd.xlane.f32.xlu0 %v905
        %v907 = vpop.xlane.xlu0 %906
        %v908 = vsel %vm415, %v772, 0.0
        %909 = vadd.xlane.f32.xlu0 %v908
        %v910 = vpop.xlane.xlu0 %909
        %v911 = vsel %vm415, %v773, 0.0
        %912 = vadd.xlane.f32.xlu0 %v911
        %v913 = vpop.xlane.xlu0 %912
        %v914 = vsel %vm415, %v774, 0.0
        %915 = vadd.xlane.f32.xlu0 %v914
        %v916 = vpop.xlane.xlu0 %915
        %v917 = vsel %vm415, %v775, 0.0
        %918 = vadd.xlane.f32.xlu0 %v917
        %v919 = vpop.xlane.xlu0 %918
        %v920 = vsel %vm415, %v776, 0.0
        %921 = vadd.xlane.f32.xlu0 %v920
        %v922 = vpop.xlane.xlu0 %921
        %v923 = vsel %vm415, %v777, 0.0
        %924 = vadd.xlane.f32.xlu0 %v923
        %v925 = vpop.xlane.xlu0 %924
        %v926 = vsel %vm415, %v778, 0.0
        %927 = vadd.xlane.f32.xlu0 %v926
        %v928 = vpop.xlane.xlu0 %927
        %v929 = vsel %vm415, %v779, 0.0
        %930 = vadd.xlane.f32.xlu0 %v929
        %v931 = vpop.xlane.xlu0 %930
        %v932 = vsel %vm415, %v780, 0.0
        %933 = vadd.xlane.f32.xlu0 %v932
        %v934 = vpop.xlane.xlu0 %933
        %v935 = vsel %vm415, %v781, 0.0
        %936 = vadd.xlane.f32.xlu0 %v935
        %v937 = vpop.xlane.xlu0 %936
        %v938 = vsel %vm415, %v782, 0.0
        %939 = vadd.xlane.f32.xlu0 %v938
        %v940 = vpop.xlane.xlu0 %939
        %v941 = vsel %vm415, %v783, 0.0
        %942 = vadd.xlane.f32.xlu0 %v941
        %v943 = vpop.xlane.xlu0 %942
        %v944 = vsel %vm415, %v784, 0.0
        %945 = vadd.xlane.f32.xlu0 %v944
        %v946 = vpop.xlane.xlu0 %945
        %v947 = vsel %vm415, %v785, 0.0
        %948 = vadd.xlane.f32.xlu0 %v947
        %v949 = vpop.xlane.xlu0 %948
        %v950 = vsel %vm415, %v786, 0.0
        %951 = vadd.xlane.f32.xlu0 %v950
        %v952 = vpop.xlane.xlu0 %951
        %v953 = vsel %vm415, %v787, 0.0
        %954 = vadd.xlane.f32.xlu0 %v953
        %v955 = vpop.xlane.xlu0 %954
        %v956 = vsel %vm415, %v788, 0.0
        %957 = vadd.xlane.f32.xlu0 %v956
        %v958 = vpop.xlane.xlu0 %957
        %v959 = vsel %vm415, %v789, 0.0
        %960 = vadd.xlane.f32.xlu0 %v959
        %v961 = vpop.xlane.xlu0 %960
        %v962 = vsel %vm415, %v790, 0.0
        %963 = vadd.xlane.f32.xlu0 %v962
        %v964 = vpop.xlane.xlu0 %963
        %v965 = vsel %vm415, %v791, 0.0
        %966 = vadd.xlane.f32.xlu0 %v965
        %v967 = vpop.xlane.xlu0 %966
        %v968 = vsel %vm415, %v792, 0.0
        %969 = vadd.xlane.f32.xlu0 %v968
        %v970 = vpop.xlane.xlu0 %969
        %v971 = vsel %vm415, %v793, 0.0
        %972 = vadd.xlane.f32.xlu0 %v971
        %v973 = vpop.xlane.xlu0 %972
        %v974 = vsel %vm415, %v794, 0.0
        %975 = vadd.xlane.f32.xlu0 %v974
        %v976 = vpop.xlane.xlu0 %975
        %v977 = vsel %vm415, %v795, 0.0
        %978 = vadd.xlane.f32.xlu0 %v977
        %v979 = vpop.xlane.xlu0 %978
        %v980 = vsel %vm415, %v796, 0.0
        %981 = vadd.xlane.f32.xlu0 %v980
        %v982 = vpop.xlane.xlu0 %981
        %v983 = vsel %vm415, %v797, 0.0
        %984 = vadd.xlane.f32.xlu0 %v983
        %v985 = vpop.xlane.xlu0 %984
        %v986 = vsel %vm415, %v798, 0.0
        %987 = vadd.xlane.f32.xlu0 %v986
        %v988 = vpop.xlane.xlu0 %987
        %v989 = vsel %vm415, %v799, 0.0
        %990 = vadd.xlane.f32.xlu0 %v989
        %v991 = vpop.xlane.xlu0 %990
        %v992 = vmul.f32 %v802, 0.03125
        %v993 = vmul.f32 %v805, 0.03125
        %v994 = vmul.f32 %v808, 0.03125
        %v995 = vmul.f32 %v811, 0.03125
        %v996 = vmul.f32 %v814, 0.03125
        %v997 = vmul.f32 %v817, 0.03125
        %v998 = vmul.f32 %v820, 0.03125
        %v999 = vmul.f32 %v823, 0.03125
        %v1000 = vmul.f32 %v826, 0.03125
        %v1001 = vmul.f32 %v829, 0.03125
        %v1002 = vmul.f32 %v832, 0.03125
        %v1003 = vmul.f32 %v835, 0.03125
        %v1004 = vmul.f32 %v838, 0.03125
        %v1005 = vmul.f32 %v841, 0.03125
        %v1006 = vmul.f32 %v844, 0.03125
        %v1007 = vmul.f32 %v847, 0.03125
        %v1008 = vmul.f32 %v850, 0.03125
        %v1009 = vmul.f32 %v853, 0.03125
        %v1010 = vmul.f32 %v856, 0.03125
        %v1011 = vmul.f32 %v859, 0.03125
        %v1012 = vmul.f32 %v862, 0.03125
        %v1013 = vmul.f32 %v865, 0.03125
        %v1014 = vmul.f32 %v868, 0.03125
        %v1015 = vmul.f32 %v871, 0.03125
        %v1016 = vmul.f32 %v874, 0.03125
        %v1017 = vmul.f32 %v877, 0.03125
        %v1018 = vmul.f32 %v880, 0.03125
        %v1019 = vmul.f32 %v883, 0.03125
        %v1020 = vmul.f32 %v886, 0.03125
        %v1021 = vmul.f32 %v889, 0.03125
        %v1022 = vmul.f32 %v892, 0.03125
        %v1023 = vmul.f32 %v895, 0.03125
        %v1024 = vmul.f32 %v898, 0.03125
        %v1025 = vmul.f32 %v901, 0.03125
        %v1026 = vmul.f32 %v904, 0.03125
        %v1027 = vmul.f32 %v907, 0.03125
        %v1028 = vmul.f32 %v910, 0.03125
        %v1029 = vmul.f32 %v913, 0.03125
        %v1030 = vmul.f32 %v916, 0.03125
        %v1031 = vmul.f32 %v919, 0.03125
        %v1032 = vmul.f32 %v922, 0.03125
        %v1033 = vmul.f32 %v925, 0.03125
        %v1034 = vmul.f32 %v928, 0.03125
        %v1035 = vmul.f32 %v931, 0.03125
        %v1036 = vmul.f32 %v934, 0.03125
        %v1037 = vmul.f32 %v937, 0.03125
        %v1038 = vmul.f32 %v940, 0.03125
        %v1039 = vmul.f32 %v943, 0.03125
        %v1040 = vmul.f32 %v946, 0.03125
        %v1041 = vmul.f32 %v949, 0.03125
        %v1042 = vmul.f32 %v952, 0.03125
        %v1043 = vmul.f32 %v955, 0.03125
        %v1044 = vmul.f32 %v958, 0.03125
        %v1045 = vmul.f32 %v961, 0.03125
        %v1046 = vmul.f32 %v964, 0.03125
        %v1047 = vmul.f32 %v967, 0.03125
        %v1048 = vmul.f32 %v970, 0.03125
        %v1049 = vmul.f32 %v973, 0.03125
        %v1050 = vmul.f32 %v976, 0.03125
        %v1051 = vmul.f32 %v979, 0.03125
        %v1052 = vmul.f32 %v982, 0.03125
        %v1053 = vmul.f32 %v985, 0.03125
        %v1054 = vmul.f32 %v988, 0.03125
        %v1055 = vmul.f32 %v991, 0.03125
        %v1056 = vadd.f32 %v992, 1e-05
        %v1057 = vadd.f32 %v993, 1e-05
        %v1058 = vadd.f32 %v994, 1e-05
        %v1059 = vadd.f32 %v995, 1e-05
        %v1060 = vadd.f32 %v996, 1e-05
        %v1061 = vadd.f32 %v997, 1e-05
        %v1062 = vadd.f32 %v998, 1e-05
        %v1063 = vadd.f32 %v999, 1e-05
        %v1064 = vadd.f32 %v1000, 1e-05
        %v1065 = vadd.f32 %v1001, 1e-05
        %v1066 = vadd.f32 %v1002, 1e-05
        %v1067 = vadd.f32 %v1003, 1e-05
        %v1068 = vadd.f32 %v1004, 1e-05
        %v1069 = vadd.f32 %v1005, 1e-05
        %v1070 = vadd.f32 %v1006, 1e-05
        %v1071 = vadd.f32 %v1007, 1e-05
        %v1072 = vadd.f32 %v1008, 1e-05
        %v1073 = vadd.f32 %v1009, 1e-05
        %v1074 = vadd.f32 %v1010, 1e-05
        %v1075 = vadd.f32 %v1011, 1e-05
        %v1076 = vadd.f32 %v1012, 1e-05
        %v1077 = vadd.f32 %v1013, 1e-05
        %v1078 = vadd.f32 %v1014, 1e-05
        %v1079 = vadd.f32 %v1015, 1e-05
        %v1080 = vadd.f32 %v1016, 1e-05
        %v1081 = vadd.f32 %v1017, 1e-05
        %v1082 = vadd.f32 %v1018, 1e-05
        %v1083 = vadd.f32 %v1019, 1e-05
        %v1084 = vadd.f32 %v1020, 1e-05
        %v1085 = vadd.f32 %v1021, 1e-05
        %v1086 = vadd.f32 %v1022, 1e-05
        %v1087 = vadd.f32 %v1023, 1e-05
        %v1088 = vadd.f32 %v1024, 1e-05
        %v1089 = vadd.f32 %v1025, 1e-05
        %v1090 = vadd.f32 %v1026, 1e-05
        %v1091 = vadd.f32 %v1027, 1e-05
        %v1092 = vadd.f32 %v1028, 1e-05
        %v1093 = vadd.f32 %v1029, 1e-05
        %v1094 = vadd.f32 %v1030, 1e-05
        %v1095 = vadd.f32 %v1031, 1e-05
        %v1096 = vadd.f32 %v1032, 1e-05
        %v1097 = vadd.f32 %v1033, 1e-05
        %v1098 = vadd.f32 %v1034, 1e-05
        %v1099 = vadd.f32 %v1035, 1e-05
        %v1100 = vadd.f32 %v1036, 1e-05
        %v1101 = vadd.f32 %v1037, 1e-05
        %v1102 = vadd.f32 %v1038, 1e-05
        %v1103 = vadd.f32 %v1039, 1e-05
        %v1104 = vadd.f32 %v1040, 1e-05
        %v1105 = vadd.f32 %v1041, 1e-05
        %v1106 = vadd.f32 %v1042, 1e-05
        %v1107 = vadd.f32 %v1043, 1e-05
        %v1108 = vadd.f32 %v1044, 1e-05
        %v1109 = vadd.f32 %v1045, 1e-05
        %v1110 = vadd.f32 %v1046, 1e-05
        %v1111 = vadd.f32 %v1047, 1e-05
        %v1112 = vadd.f32 %v1048, 1e-05
        %v1113 = vadd.f32 %v1049, 1e-05
        %v1114 = vadd.f32 %v1050, 1e-05
        %v1115 = vadd.f32 %v1051, 1e-05
        %v1116 = vadd.f32 %v1052, 1e-05
        %v1117 = vadd.f32 %v1053, 1e-05
        %v1118 = vadd.f32 %v1054, 1e-05
        %v1119 = vadd.f32 %v1055, 1e-05
        %v1120 = vrsqrt.pop %v1056
        %v1121 = vmul.f32 %v1120, %v1056
        %v1122 = vmul.f32 %v1121, %v1120
        %v1123 = vmul.f32 0.5, %v1122
        %v1124 = vsub.f32 1.5, %v1123
        %v1125 = vmul.f32 %v1120, %v1124
        %vm1126 = vweird.f32 %v1056
        %vm1127 = vweird.f32 %v1120
        %vm1128 = vmor %vm1126, %vm1127
        %v1129 = vsel %vm1128, %v1120, %v1125
        %v1130 = vrsqrt.pop %v1057
        %v1131 = vmul.f32 %v1130, %v1057
        %v1132 = vmul.f32 %v1131, %v1130
        %v1133 = vmul.f32 0.5, %v1132
        %v1134 = vsub.f32 1.5, %v1133
        %v1135 = vmul.f32 %v1130, %v1134
        %vm1136 = vweird.f32 %v1057
        %vm1137 = vweird.f32 %v1130
        %vm1138 = vmor %vm1136, %vm1137
        %v1139 = vsel %vm1138, %v1130, %v1135
        %v1140 = vrsqrt.pop %v1058
        %v1141 = vmul.f32 %v1140, %v1058
        %v1142 = vmul.f32 %v1141, %v1140
        %v1143 = vmul.f32 0.5, %v1142
        %v1144 = vsub.f32 1.5, %v1143
        %v1145 = vmul.f32 %v1140, %v1144
        %vm1146 = vweird.f32 %v1058
        %vm1147 = vweird.f32 %v1140
        %vm1148 = vmor %vm1146, %vm1147
        %v1149 = vsel %vm1148, %v1140, %v1145
        %v1150 = vrsqrt.pop %v1059
        %v1151 = vmul.f32 %v1150, %v1059
        %v1152 = vmul.f32 %v1151, %v1150
        %v1153 = vmul.f32 0.5, %v1152
        %v1154 = vsub.f32 1.5, %v1153
        %v1155 = vmul.f32 %v1150, %v1154
        %vm1156 = vweird.f32 %v1059
        %vm1157 = vweird.f32 %v1150
        %vm1158 = vmor %vm1156, %vm1157
        %v1159 = vsel %vm1158, %v1150, %v1155
        %v1160 = vrsqrt.pop %v1060
        %v1161 = vmul.f32 %v1160, %v1060
        %v1162 = vmul.f32 %v1161, %v1160
        %v1163 = vmul.f32 0.5, %v1162
        %v1164 = vsub.f32 1.5, %v1163
        %v1165 = vmul.f32 %v1160, %v1164
        %vm1166 = vweird.f32 %v1060
        %vm1167 = vweird.f32 %v1160
        %vm1168 = vmor %vm1166, %vm1167
        %v1169 = vsel %vm1168, %v1160, %v1165
        %v1170 = vrsqrt.pop %v1061
        %v1171 = vmul.f32 %v1170, %v1061
        %v1172 = vmul.f32 %v1171, %v1170
        %v1173 = vmul.f32 0.5, %v1172
        %v1174 = vsub.f32 1.5, %v1173
        %v1175 = vmul.f32 %v1170, %v1174
        %vm1176 = vweird.f32 %v1061
        %vm1177 = vweird.f32 %v1170
        %vm1178 = vmor %vm1176, %vm1177
        %v1179 = vsel %vm1178, %v1170, %v1175
        %v1180 = vrsqrt.pop %v1062
        %v1181 = vmul.f32 %v1180, %v1062
        %v1182 = vmul.f32 %v1181, %v1180
        %v1183 = vmul.f32 0.5, %v1182
        %v1184 = vsub.f32 1.5, %v1183
        %v1185 = vmul.f32 %v1180, %v1184
        %vm1186 = vweird.f32 %v1062
        %vm1187 = vweird.f32 %v1180
        %vm1188 = vmor %vm1186, %vm1187
        %v1189 = vsel %vm1188, %v1180, %v1185
        %v1190 = vrsqrt.pop %v1063
        %v1191 = vmul.f32 %v1190, %v1063
        %v1192 = vmul.f32 %v1191, %v1190
        %v1193 = vmul.f32 0.5, %v1192
        %v1194 = vsub.f32 1.5, %v1193
        %v1195 = vmul.f32 %v1190, %v1194
        %vm1196 = vweird.f32 %v1063
        %vm1197 = vweird.f32 %v1190
        %vm1198 = vmor %vm1196, %vm1197
        %v1199 = vsel %vm1198, %v1190, %v1195
        %v1200 = vrsqrt.pop %v1064
        %v1201 = vmul.f32 %v1200, %v1064
        %v1202 = vmul.f32 %v1201, %v1200
        %v1203 = vmul.f32 0.5, %v1202
        %v1204 = vsub.f32 1.5, %v1203
        %v1205 = vmul.f32 %v1200, %v1204
        %vm1206 = vweird.f32 %v1064
        %vm1207 = vweird.f32 %v1200
        %vm1208 = vmor %vm1206, %vm1207
        %v1209 = vsel %vm1208, %v1200, %v1205
        %v1210 = vrsqrt.pop %v1065
        %v1211 = vmul.f32 %v1210, %v1065
        %v1212 = vmul.f32 %v1211, %v1210
        %v1213 = vmul.f32 0.5, %v1212
        %v1214 = vsub.f32 1.5, %v1213
        %v1215 = vmul.f32 %v1210, %v1214
        %vm1216 = vweird.f32 %v1065
        %vm1217 = vweird.f32 %v1210
        %vm1218 = vmor %vm1216, %vm1217
        %v1219 = vsel %vm1218, %v1210, %v1215
        %v1220 = vrsqrt.pop %v1066
        %v1221 = vmul.f32 %v1220, %v1066
        %v1222 = vmul.f32 %v1221, %v1220
        %v1223 = vmul.f32 0.5, %v1222
        %v1224 = vsub.f32 1.5, %v1223
        %v1225 = vmul.f32 %v1220, %v1224
        %vm1226 = vweird.f32 %v1066
        %vm1227 = vweird.f32 %v1220
        %vm1228 = vmor %vm1226, %vm1227
        %v1229 = vsel %vm1228, %v1220, %v1225
        %v1230 = vrsqrt.pop %v1067
        %v1231 = vmul.f32 %v1230, %v1067
        %v1232 = vmul.f32 %v1231, %v1230
        %v1233 = vmul.f32 0.5, %v1232
        %v1234 = vsub.f32 1.5, %v1233
        %v1235 = vmul.f32 %v1230, %v1234
        %vm1236 = vweird.f32 %v1067
        %vm1237 = vweird.f32 %v1230
        %vm1238 = vmor %vm1236, %vm1237
        %v1239 = vsel %vm1238, %v1230, %v1235
        %v1240 = vrsqrt.pop %v1068
        %v1241 = vmul.f32 %v1240, %v1068
        %v1242 = vmul.f32 %v1241, %v1240
        %v1243 = vmul.f32 0.5, %v1242
        %v1244 = vsub.f32 1.5, %v1243
        %v1245 = vmul.f32 %v1240, %v1244
        %vm1246 = vweird.f32 %v1068
        %vm1247 = vweird.f32 %v1240
        %vm1248 = vmor %vm1246, %vm1247
        %v1249 = vsel %vm1248, %v1240, %v1245
        %v1250 = vrsqrt.pop %v1069
        %v1251 = vmul.f32 %v1250, %v1069
        %v1252 = vmul.f32 %v1251, %v1250
        %v1253 = vmul.f32 0.5, %v1252
        %v1254 = vsub.f32 1.5, %v1253
        %v1255 = vmul.f32 %v1250, %v1254
        %vm1256 = vweird.f32 %v1069
        %vm1257 = vweird.f32 %v1250
        %vm1258 = vmor %vm1256, %vm1257
        %v1259 = vsel %vm1258, %v1250, %v1255
        %v1260 = vrsqrt.pop %v1070
        %v1261 = vmul.f32 %v1260, %v1070
        %v1262 = vmul.f32 %v1261, %v1260
        %v1263 = vmul.f32 0.5, %v1262
        %v1264 = vsub.f32 1.5, %v1263
        %v1265 = vmul.f32 %v1260, %v1264
        %vm1266 = vweird.f32 %v1070
        %vm1267 = vweird.f32 %v1260
        %vm1268 = vmor %vm1266, %vm1267
        %v1269 = vsel %vm1268, %v1260, %v1265
        %v1270 = vrsqrt.pop %v1071
        %v1271 = vmul.f32 %v1270, %v1071
        %v1272 = vmul.f32 %v1271, %v1270
        %v1273 = vmul.f32 0.5, %v1272
        %v1274 = vsub.f32 1.5, %v1273
        %v1275 = vmul.f32 %v1270, %v1274
        %vm1276 = vweird.f32 %v1071
        %vm1277 = vweird.f32 %v1270
        %vm1278 = vmor %vm1276, %vm1277
        %v1279 = vsel %vm1278, %v1270, %v1275
        %v1280 = vrsqrt.pop %v1072
        %v1281 = vmul.f32 %v1280, %v1072
        %v1282 = vmul.f32 %v1281, %v1280
        %v1283 = vmul.f32 0.5, %v1282
        %v1284 = vsub.f32 1.5, %v1283
        %v1285 = vmul.f32 %v1280, %v1284
        %vm1286 = vweird.f32 %v1072
        %vm1287 = vweird.f32 %v1280
        %vm1288 = vmor %vm1286, %vm1287
        %v1289 = vsel %vm1288, %v1280, %v1285
        %v1290 = vrsqrt.pop %v1073
        %v1291 = vmul.f32 %v1290, %v1073
        %v1292 = vmul.f32 %v1291, %v1290
        %v1293 = vmul.f32 0.5, %v1292
        %v1294 = vsub.f32 1.5, %v1293
        %v1295 = vmul.f32 %v1290, %v1294
        %vm1296 = vweird.f32 %v1073
        %vm1297 = vweird.f32 %v1290
        %vm1298 = vmor %vm1296, %vm1297
        %v1299 = vsel %vm1298, %v1290, %v1295
        %v1300 = vrsqrt.pop %v1074
        %v1301 = vmul.f32 %v1300, %v1074
        %v1302 = vmul.f32 %v1301, %v1300
        %v1303 = vmul.f32 0.5, %v1302
        %v1304 = vsub.f32 1.5, %v1303
        %v1305 = vmul.f32 %v1300, %v1304
        %vm1306 = vweird.f32 %v1074
        %vm1307 = vweird.f32 %v1300
        %vm1308 = vmor %vm1306, %vm1307
        %v1309 = vsel %vm1308, %v1300, %v1305
        %v1310 = vrsqrt.pop %v1075
        %v1311 = vmul.f32 %v1310, %v1075
        %v1312 = vmul.f32 %v1311, %v1310
        %v1313 = vmul.f32 0.5, %v1312
        %v1314 = vsub.f32 1.5, %v1313
        %v1315 = vmul.f32 %v1310, %v1314
        %vm1316 = vweird.f32 %v1075
        %vm1317 = vweird.f32 %v1310
        %vm1318 = vmor %vm1316, %vm1317
        %v1319 = vsel %vm1318, %v1310, %v1315
        %v1320 = vrsqrt.pop %v1076
        %v1321 = vmul.f32 %v1320, %v1076
        %v1322 = vmul.f32 %v1321, %v1320
        %v1323 = vmul.f32 0.5, %v1322
        %v1324 = vsub.f32 1.5, %v1323
        %v1325 = vmul.f32 %v1320, %v1324
        %vm1326 = vweird.f32 %v1076
        %vm1327 = vweird.f32 %v1320
        %vm1328 = vmor %vm1326, %vm1327
        %v1329 = vsel %vm1328, %v1320, %v1325
        %v1330 = vrsqrt.pop %v1077
        %v1331 = vmul.f32 %v1330, %v1077
        %v1332 = vmul.f32 %v1331, %v1330
        %v1333 = vmul.f32 0.5, %v1332
        %v1334 = vsub.f32 1.5, %v1333
        %v1335 = vmul.f32 %v1330, %v1334
        %vm1336 = vweird.f32 %v1077
        %vm1337 = vweird.f32 %v1330
        %vm1338 = vmor %vm1336, %vm1337
        %v1339 = vsel %vm1338, %v1330, %v1335
        %v1340 = vrsqrt.pop %v1078
        %v1341 = vmul.f32 %v1340, %v1078
        %v1342 = vmul.f32 %v1341, %v1340
        %v1343 = vmul.f32 0.5, %v1342
        %v1344 = vsub.f32 1.5, %v1343
        %v1345 = vmul.f32 %v1340, %v1344
        %vm1346 = vweird.f32 %v1078
        %vm1347 = vweird.f32 %v1340
        %vm1348 = vmor %vm1346, %vm1347
        %v1349 = vsel %vm1348, %v1340, %v1345
        %v1350 = vrsqrt.pop %v1079
        %v1351 = vmul.f32 %v1350, %v1079
        %v1352 = vmul.f32 %v1351, %v1350
        %v1353 = vmul.f32 0.5, %v1352
        %v1354 = vsub.f32 1.5, %v1353
        %v1355 = vmul.f32 %v1350, %v1354
        %vm1356 = vweird.f32 %v1079
        %vm1357 = vweird.f32 %v1350
        %vm1358 = vmor %vm1356, %vm1357
        %v1359 = vsel %vm1358, %v1350, %v1355
        %v1360 = vrsqrt.pop %v1080
        %v1361 = vmul.f32 %v1360, %v1080
        %v1362 = vmul.f32 %v1361, %v1360
        %v1363 = vmul.f32 0.5, %v1362
        %v1364 = vsub.f32 1.5, %v1363
        %v1365 = vmul.f32 %v1360, %v1364
        %vm1366 = vweird.f32 %v1080
        %vm1367 = vweird.f32 %v1360
        %vm1368 = vmor %vm1366, %vm1367
        %v1369 = vsel %vm1368, %v1360, %v1365
        %v1370 = vrsqrt.pop %v1081
        %v1371 = vmul.f32 %v1370, %v1081
        %v1372 = vmul.f32 %v1371, %v1370
        %v1373 = vmul.f32 0.5, %v1372
        %v1374 = vsub.f32 1.5, %v1373
        %v1375 = vmul.f32 %v1370, %v1374
        %vm1376 = vweird.f32 %v1081
        %vm1377 = vweird.f32 %v1370
        %vm1378 = vmor %vm1376, %vm1377
        %v1379 = vsel %vm1378, %v1370, %v1375
        %v1380 = vrsqrt.pop %v1082
        %v1381 = vmul.f32 %v1380, %v1082
        %v1382 = vmul.f32 %v1381, %v1380
        %v1383 = vmul.f32 0.5, %v1382
        %v1384 = vsub.f32 1.5, %v1383
        %v1385 = vmul.f32 %v1380, %v1384
        %vm1386 = vweird.f32 %v1082
        %vm1387 = vweird.f32 %v1380
        %vm1388 = vmor %vm1386, %vm1387
        %v1389 = vsel %vm1388, %v1380, %v1385
        %v1390 = vrsqrt.pop %v1083
        %v1391 = vmul.f32 %v1390, %v1083
        %v1392 = vmul.f32 %v1391, %v1390
        %v1393 = vmul.f32 0.5, %v1392
        %v1394 = vsub.f32 1.5, %v1393
        %v1395 = vmul.f32 %v1390, %v1394
        %vm1396 = vweird.f32 %v1083
        %vm1397 = vweird.f32 %v1390
        %vm1398 = vmor %vm1396, %vm1397
        %v1399 = vsel %vm1398, %v1390, %v1395
        %v1400 = vrsqrt.pop %v1084
        %v1401 = vmul.f32 %v1400, %v1084
        %v1402 = vmul.f32 %v1401, %v1400
        %v1403 = vmul.f32 0.5, %v1402
        %v1404 = vsub.f32 1.5, %v1403
        %v1405 = vmul.f32 %v1400, %v1404
        %vm1406 = vweird.f32 %v1084
        %vm1407 = vweird.f32 %v1400
        %vm1408 = vmor %vm1406, %vm1407
        %v1409 = vsel %vm1408, %v1400, %v1405
        %v1410 = vrsqrt.pop %v1085
        %v1411 = vmul.f32 %v1410, %v1085
        %v1412 = vmul.f32 %v1411, %v1410
        %v1413 = vmul.f32 0.5, %v1412
        %v1414 = vsub.f32 1.5, %v1413
        %v1415 = vmul.f32 %v1410, %v1414
        %vm1416 = vweird.f32 %v1085
        %vm1417 = vweird.f32 %v1410
        %vm1418 = vmor %vm1416, %vm1417
        %v1419 = vsel %vm1418, %v1410, %v1415
        %v1420 = vrsqrt.pop %v1086
        %v1421 = vmul.f32 %v1420, %v1086
        %v1422 = vmul.f32 %v1421, %v1420
        %v1423 = vmul.f32 0.5, %v1422
        %v1424 = vsub.f32 1.5, %v1423
        %v1425 = vmul.f32 %v1420, %v1424
        %vm1426 = vweird.f32 %v1086
        %vm1427 = vweird.f32 %v1420
        %vm1428 = vmor %vm1426, %vm1427
        %v1429 = vsel %vm1428, %v1420, %v1425
        %v1430 = vrsqrt.pop %v1087
        %v1431 = vmul.f32 %v1430, %v1087
        %v1432 = vmul.f32 %v1431, %v1430
        %v1433 = vmul.f32 0.5, %v1432
        %v1434 = vsub.f32 1.5, %v1433
        %v1435 = vmul.f32 %v1430, %v1434
        %vm1436 = vweird.f32 %v1087
        %vm1437 = vweird.f32 %v1430
        %vm1438 = vmor %vm1436, %vm1437
        %v1439 = vsel %vm1438, %v1430, %v1435
        %v1440 = vrsqrt.pop %v1088
        %v1441 = vmul.f32 %v1440, %v1088
        %v1442 = vmul.f32 %v1441, %v1440
        %v1443 = vmul.f32 0.5, %v1442
        %v1444 = vsub.f32 1.5, %v1443
        %v1445 = vmul.f32 %v1440, %v1444
        %vm1446 = vweird.f32 %v1088
        %vm1447 = vweird.f32 %v1440
        %vm1448 = vmor %vm1446, %vm1447
        %v1449 = vsel %vm1448, %v1440, %v1445
        %v1450 = vrsqrt.pop %v1089
        %v1451 = vmul.f32 %v1450, %v1089
        %v1452 = vmul.f32 %v1451, %v1450
        %v1453 = vmul.f32 0.5, %v1452
        %v1454 = vsub.f32 1.5, %v1453
        %v1455 = vmul.f32 %v1450, %v1454
        %vm1456 = vweird.f32 %v1089
        %vm1457 = vweird.f32 %v1450
        %vm1458 = vmor %vm1456, %vm1457
        %v1459 = vsel %vm1458, %v1450, %v1455
        %v1460 = vrsqrt.pop %v1090
        %v1461 = vmul.f32 %v1460, %v1090
        %v1462 = vmul.f32 %v1461, %v1460
        %v1463 = vmul.f32 0.5, %v1462
        %v1464 = vsub.f32 1.5, %v1463
        %v1465 = vmul.f32 %v1460, %v1464
        %vm1466 = vweird.f32 %v1090
        %vm1467 = vweird.f32 %v1460
        %vm1468 = vmor %vm1466, %vm1467
        %v1469 = vsel %vm1468, %v1460, %v1465
        %v1470 = vrsqrt.pop %v1091
        %v1471 = vmul.f32 %v1470, %v1091
        %v1472 = vmul.f32 %v1471, %v1470
        %v1473 = vmul.f32 0.5, %v1472
        %v1474 = vsub.f32 1.5, %v1473
        %v1475 = vmul.f32 %v1470, %v1474
        %vm1476 = vweird.f32 %v1091
        %vm1477 = vweird.f32 %v1470
        %vm1478 = vmor %vm1476, %vm1477
        %v1479 = vsel %vm1478, %v1470, %v1475
        %v1480 = vrsqrt.pop %v1092
        %v1481 = vmul.f32 %v1480, %v1092
        %v1482 = vmul.f32 %v1481, %v1480
        %v1483 = vmul.f32 0.5, %v1482
        %v1484 = vsub.f32 1.5, %v1483
        %v1485 = vmul.f32 %v1480, %v1484
        %vm1486 = vweird.f32 %v1092
        %vm1487 = vweird.f32 %v1480
        %vm1488 = vmor %vm1486, %vm1487
        %v1489 = vsel %vm1488, %v1480, %v1485
        %v1490 = vrsqrt.pop %v1093
        %v1491 = vmul.f32 %v1490, %v1093
        %v1492 = vmul.f32 %v1491, %v1490
        %v1493 = vmul.f32 0.5, %v1492
        %v1494 = vsub.f32 1.5, %v1493
        %v1495 = vmul.f32 %v1490, %v1494
        %vm1496 = vweird.f32 %v1093
        %vm1497 = vweird.f32 %v1490
        %vm1498 = vmor %vm1496, %vm1497
        %v1499 = vsel %vm1498, %v1490, %v1495
        %v1500 = vrsqrt.pop %v1094
        %v1501 = vmul.f32 %v1500, %v1094
        %v1502 = vmul.f32 %v1501, %v1500
        %v1503 = vmul.f32 0.5, %v1502
        %v1504 = vsub.f32 1.5, %v1503
        %v1505 = vmul.f32 %v1500, %v1504
        %vm1506 = vweird.f32 %v1094
        %vm1507 = vweird.f32 %v1500
        %vm1508 = vmor %vm1506, %vm1507
        %v1509 = vsel %vm1508, %v1500, %v1505
        %v1510 = vrsqrt.pop %v1095
        %v1511 = vmul.f32 %v1510, %v1095
        %v1512 = vmul.f32 %v1511, %v1510
        %v1513 = vmul.f32 0.5, %v1512
        %v1514 = vsub.f32 1.5, %v1513
        %v1515 = vmul.f32 %v1510, %v1514
        %vm1516 = vweird.f32 %v1095
        %vm1517 = vweird.f32 %v1510
        %vm1518 = vmor %vm1516, %vm1517
        %v1519 = vsel %vm1518, %v1510, %v1515
        %v1520 = vrsqrt.pop %v1096
        %v1521 = vmul.f32 %v1520, %v1096
        %v1522 = vmul.f32 %v1521, %v1520
        %v1523 = vmul.f32 0.5, %v1522
        %v1524 = vsub.f32 1.5, %v1523
        %v1525 = vmul.f32 %v1520, %v1524
        %vm1526 = vweird.f32 %v1096
        %vm1527 = vweird.f32 %v1520
        %vm1528 = vmor %vm1526, %vm1527
        %v1529 = vsel %vm1528, %v1520, %v1525
        %v1530 = vrsqrt.pop %v1097
        %v1531 = vmul.f32 %v1530, %v1097
        %v1532 = vmul.f32 %v1531, %v1530
        %v1533 = vmul.f32 0.5, %v1532
        %v1534 = vsub.f32 1.5, %v1533
        %v1535 = vmul.f32 %v1530, %v1534
        %vm1536 = vweird.f32 %v1097
        %vm1537 = vweird.f32 %v1530
        %vm1538 = vmor %vm1536, %vm1537
        %v1539 = vsel %vm1538, %v1530, %v1535
        %v1540 = vrsqrt.pop %v1098
        %v1541 = vmul.f32 %v1540, %v1098
        %v1542 = vmul.f32 %v1541, %v1540
        %v1543 = vmul.f32 0.5, %v1542
        %v1544 = vsub.f32 1.5, %v1543
        %v1545 = vmul.f32 %v1540, %v1544
        %vm1546 = vweird.f32 %v1098
        %vm1547 = vweird.f32 %v1540
        %vm1548 = vmor %vm1546, %vm1547
        %v1549 = vsel %vm1548, %v1540, %v1545
        %v1550 = vrsqrt.pop %v1099
        %v1551 = vmul.f32 %v1550, %v1099
        %v1552 = vmul.f32 %v1551, %v1550
        %v1553 = vmul.f32 0.5, %v1552
        %v1554 = vsub.f32 1.5, %v1553
        %v1555 = vmul.f32 %v1550, %v1554
        %vm1556 = vweird.f32 %v1099
        %vm1557 = vweird.f32 %v1550
        %vm1558 = vmor %vm1556, %vm1557
        %v1559 = vsel %vm1558, %v1550, %v1555
        %v1560 = vrsqrt.pop %v1100
        %v1561 = vmul.f32 %v1560, %v1100
        %v1562 = vmul.f32 %v1561, %v1560
        %v1563 = vmul.f32 0.5, %v1562
        %v1564 = vsub.f32 1.5, %v1563
        %v1565 = vmul.f32 %v1560, %v1564
        %vm1566 = vweird.f32 %v1100
        %vm1567 = vweird.f32 %v1560
        %vm1568 = vmor %vm1566, %vm1567
        %v1569 = vsel %vm1568, %v1560, %v1565
        %v1570 = vrsqrt.pop %v1101
        %v1571 = vmul.f32 %v1570, %v1101
        %v1572 = vmul.f32 %v1571, %v1570
        %v1573 = vmul.f32 0.5, %v1572
        %v1574 = vsub.f32 1.5, %v1573
        %v1575 = vmul.f32 %v1570, %v1574
        %vm1576 = vweird.f32 %v1101
        %vm1577 = vweird.f32 %v1570
        %vm1578 = vmor %vm1576, %vm1577
        %v1579 = vsel %vm1578, %v1570, %v1575
        %v1580 = vrsqrt.pop %v1102
        %v1581 = vmul.f32 %v1580, %v1102
        %v1582 = vmul.f32 %v1581, %v1580
        %v1583 = vmul.f32 0.5, %v1582
        %v1584 = vsub.f32 1.5, %v1583
        %v1585 = vmul.f32 %v1580, %v1584
        %vm1586 = vweird.f32 %v1102
        %vm1587 = vweird.f32 %v1580
        %vm1588 = vmor %vm1586, %vm1587
        %v1589 = vsel %vm1588, %v1580, %v1585
        %v1590 = vrsqrt.pop %v1103
        %v1591 = vmul.f32 %v1590, %v1103
        %v1592 = vmul.f32 %v1591, %v1590
        %v1593 = vmul.f32 0.5, %v1592
        %v1594 = vsub.f32 1.5, %v1593
        %v1595 = vmul.f32 %v1590, %v1594
        %vm1596 = vweird.f32 %v1103
        %vm1597 = vweird.f32 %v1590
        %vm1598 = vmor %vm1596, %vm1597
        %v1599 = vsel %vm1598, %v1590, %v1595
        %v1600 = vrsqrt.pop %v1104
        %v1601 = vmul.f32 %v1600, %v1104
        %v1602 = vmul.f32 %v1601, %v1600
        %v1603 = vmul.f32 0.5, %v1602
        %v1604 = vsub.f32 1.5, %v1603
        %v1605 = vmul.f32 %v1600, %v1604
        %vm1606 = vweird.f32 %v1104
        %vm1607 = vweird.f32 %v1600
        %vm1608 = vmor %vm1606, %vm1607
        %v1609 = vsel %vm1608, %v1600, %v1605
        %v1610 = vrsqrt.pop %v1105
        %v1611 = vmul.f32 %v1610, %v1105
        %v1612 = vmul.f32 %v1611, %v1610
        %v1613 = vmul.f32 0.5, %v1612
        %v1614 = vsub.f32 1.5, %v1613
        %v1615 = vmul.f32 %v1610, %v1614
        %vm1616 = vweird.f32 %v1105
        %vm1617 = vweird.f32 %v1610
        %vm1618 = vmor %vm1616, %vm1617
        %v1619 = vsel %vm1618, %v1610, %v1615
        %v1620 = vrsqrt.pop %v1106
        %v1621 = vmul.f32 %v1620, %v1106
        %v1622 = vmul.f32 %v1621, %v1620
        %v1623 = vmul.f32 0.5, %v1622
        %v1624 = vsub.f32 1.5, %v1623
        %v1625 = vmul.f32 %v1620, %v1624
        %vm1626 = vweird.f32 %v1106
        %vm1627 = vweird.f32 %v1620
        %vm1628 = vmor %vm1626, %vm1627
        %v1629 = vsel %vm1628, %v1620, %v1625
        %v1630 = vrsqrt.pop %v1107
        %v1631 = vmul.f32 %v1630, %v1107
        %v1632 = vmul.f32 %v1631, %v1630
        %v1633 = vmul.f32 0.5, %v1632
        %v1634 = vsub.f32 1.5, %v1633
        %v1635 = vmul.f32 %v1630, %v1634
        %vm1636 = vweird.f32 %v1107
        %vm1637 = vweird.f32 %v1630
        %vm1638 = vmor %vm1636, %vm1637
        %v1639 = vsel %vm1638, %v1630, %v1635
        %v1640 = vrsqrt.pop %v1108
        %v1641 = vmul.f32 %v1640, %v1108
        %v1642 = vmul.f32 %v1641, %v1640
        %v1643 = vmul.f32 0.5, %v1642
        %v1644 = vsub.f32 1.5, %v1643
        %v1645 = vmul.f32 %v1640, %v1644
        %vm1646 = vweird.f32 %v1108
        %vm1647 = vweird.f32 %v1640
        %vm1648 = vmor %vm1646, %vm1647
        %v1649 = vsel %vm1648, %v1640, %v1645
        %v1650 = vrsqrt.pop %v1109
        %v1651 = vmul.f32 %v1650, %v1109
        %v1652 = vmul.f32 %v1651, %v1650
        %v1653 = vmul.f32 0.5, %v1652
        %v1654 = vsub.f32 1.5, %v1653
        %v1655 = vmul.f32 %v1650, %v1654
        %vm1656 = vweird.f32 %v1109
        %vm1657 = vweird.f32 %v1650
        %vm1658 = vmor %vm1656, %vm1657
        %v1659 = vsel %vm1658, %v1650, %v1655
        %v1660 = vrsqrt.pop %v1110
        %v1661 = vmul.f32 %v1660, %v1110
        %v1662 = vmul.f32 %v1661, %v1660
        %v1663 = vmul.f32 0.5, %v1662
        %v1664 = vsub.f32 1.5, %v1663
        %v1665 = vmul.f32 %v1660, %v1664
        %vm1666 = vweird.f32 %v1110
        %vm1667 = vweird.f32 %v1660
        %vm1668 = vmor %vm1666, %vm1667
        %v1669 = vsel %vm1668, %v1660, %v1665
        %v1670 = vrsqrt.pop %v1111
        %v1671 = vmul.f32 %v1670, %v1111
        %v1672 = vmul.f32 %v1671, %v1670
        %v1673 = vmul.f32 0.5, %v1672
        %v1674 = vsub.f32 1.5, %v1673
        %v1675 = vmul.f32 %v1670, %v1674
        %vm1676 = vweird.f32 %v1111
        %vm1677 = vweird.f32 %v1670
        %vm1678 = vmor %vm1676, %vm1677
        %v1679 = vsel %vm1678, %v1670, %v1675
        %v1680 = vrsqrt.pop %v1112
        %v1681 = vmul.f32 %v1680, %v1112
        %v1682 = vmul.f32 %v1681, %v1680
        %v1683 = vmul.f32 0.5, %v1682
        %v1684 = vsub.f32 1.5, %v1683
        %v1685 = vmul.f32 %v1680, %v1684
        %vm1686 = vweird.f32 %v1112
        %vm1687 = vweird.f32 %v1680
        %vm1688 = vmor %vm1686, %vm1687
        %v1689 = vsel %vm1688, %v1680, %v1685
        %v1690 = vrsqrt.pop %v1113
        %v1691 = vmul.f32 %v1690, %v1113
        %v1692 = vmul.f32 %v1691, %v1690
        %v1693 = vmul.f32 0.5, %v1692
        %v1694 = vsub.f32 1.5, %v1693
        %v1695 = vmul.f32 %v1690, %v1694
        %vm1696 = vweird.f32 %v1113
        %vm1697 = vweird.f32 %v1690
        %vm1698 = vmor %vm1696, %vm1697
        %v1699 = vsel %vm1698, %v1690, %v1695
        %v1700 = vrsqrt.pop %v1114
        %v1701 = vmul.f32 %v1700, %v1114
        %v1702 = vmul.f32 %v1701, %v1700
        %v1703 = vmul.f32 0.5, %v1702
        %v1704 = vsub.f32 1.5, %v1703
        %v1705 = vmul.f32 %v1700, %v1704
        %vm1706 = vweird.f32 %v1114
        %vm1707 = vweird.f32 %v1700
        %vm1708 = vmor %vm1706, %vm1707
        %v1709 = vsel %vm1708, %v1700, %v1705
        %v1710 = vrsqrt.pop %v1115
        %v1711 = vmul.f32 %v1710, %v1115
        %v1712 = vmul.f32 %v1711, %v1710
        %v1713 = vmul.f32 0.5, %v1712
        %v1714 = vsub.f32 1.5, %v1713
        %v1715 = vmul.f32 %v1710, %v1714
        %vm1716 = vweird.f32 %v1115
        %vm1717 = vweird.f32 %v1710
        %vm1718 = vmor %vm1716, %vm1717
        %v1719 = vsel %vm1718, %v1710, %v1715
        %v1720 = vrsqrt.pop %v1116
        %v1721 = vmul.f32 %v1720, %v1116
        %v1722 = vmul.f32 %v1721, %v1720
        %v1723 = vmul.f32 0.5, %v1722
        %v1724 = vsub.f32 1.5, %v1723
        %v1725 = vmul.f32 %v1720, %v1724
        %vm1726 = vweird.f32 %v1116
        %vm1727 = vweird.f32 %v1720
        %vm1728 = vmor %vm1726, %vm1727
        %v1729 = vsel %vm1728, %v1720, %v1725
        %v1730 = vrsqrt.pop %v1117
        %v1731 = vmul.f32 %v1730, %v1117
        %v1732 = vmul.f32 %v1731, %v1730
        %v1733 = vmul.f32 0.5, %v1732
        %v1734 = vsub.f32 1.5, %v1733
        %v1735 = vmul.f32 %v1730, %v1734
        %vm1736 = vweird.f32 %v1117
        %vm1737 = vweird.f32 %v1730
        %vm1738 = vmor %vm1736, %vm1737
        %v1739 = vsel %vm1738, %v1730, %v1735
        %v1740 = vrsqrt.pop %v1118
        %v1741 = vmul.f32 %v1740, %v1118
        %v1742 = vmul.f32 %v1741, %v1740
        %v1743 = vmul.f32 0.5, %v1742
        %v1744 = vsub.f32 1.5, %v1743
        %v1745 = vmul.f32 %v1740, %v1744
        %vm1746 = vweird.f32 %v1118
        %vm1747 = vweird.f32 %v1740
        %vm1748 = vmor %vm1746, %vm1747
        %v1749 = vsel %vm1748, %v1740, %v1745
        %v1750 = vrsqrt.pop %v1119
        %v1751 = vmul.f32 %v1750, %v1119
        %v1752 = vmul.f32 %v1751, %v1750
        %v1753 = vmul.f32 0.5, %v1752
        %v1754 = vsub.f32 1.5, %v1753
        %v1755 = vmul.f32 %v1750, %v1754
        %vm1756 = vweird.f32 %v1119
        %vm1757 = vweird.f32 %v1750
        %vm1758 = vmor %vm1756, %vm1757
        %v1759 = vsel %vm1758, %v1750, %v1755
        %v1760 = vmul.f32 %v672, %v1129
        %v1761 = vmul.f32 %v673, %v1139
        %v1762 = vmul.f32 %v674, %v1149
        %v1763 = vmul.f32 %v675, %v1159
        %v1764 = vmul.f32 %v676, %v1169
        %v1765 = vmul.f32 %v677, %v1179
        %v1766 = vmul.f32 %v678, %v1189
        %v1767 = vmul.f32 %v679, %v1199
        %v1768 = vmul.f32 %v680, %v1209
        %v1769 = vmul.f32 %v681, %v1219
        %v1770 = vmul.f32 %v682, %v1229
        %v1771 = vmul.f32 %v683, %v1239
        %v1772 = vmul.f32 %v684, %v1249
        %v1773 = vmul.f32 %v685, %v1259
        %v1774 = vmul.f32 %v686, %v1269
        %v1775 = vmul.f32 %v687, %v1279
        %v1776 = vmul.f32 %v688, %v1289
        %v1777 = vmul.f32 %v689, %v1299
        %v1778 = vmul.f32 %v690, %v1309
        %v1779 = vmul.f32 %v691, %v1319
        %v1780 = vmul.f32 %v692, %v1329
        %v1781 = vmul.f32 %v693, %v1339
        %v1782 = vmul.f32 %v694, %v1349
        %v1783 = vmul.f32 %v695, %v1359
        %v1784 = vmul.f32 %v696, %v1369
        %v1785 = vmul.f32 %v697, %v1379
        %v1786 = vmul.f32 %v698, %v1389
        %v1787 = vmul.f32 %v699, %v1399
        %v1788 = vmul.f32 %v700, %v1409
        %v1789 = vmul.f32 %v701, %v1419
        %v1790 = vmul.f32 %v702, %v1429
        %v1791 = vmul.f32 %v703, %v1439
        %v1792 = vmul.f32 %v704, %v1449
        %v1793 = vmul.f32 %v705, %v1459
        %v1794 = vmul.f32 %v706, %v1469
        %v1795 = vmul.f32 %v707, %v1479
        %v1796 = vmul.f32 %v708, %v1489
        %v1797 = vmul.f32 %v709, %v1499
        %v1798 = vmul.f32 %v710, %v1509
        %v1799 = vmul.f32 %v711, %v1519
        %v1800 = vmul.f32 %v712, %v1529
        %v1801 = vmul.f32 %v713, %v1539
        %v1802 = vmul.f32 %v714, %v1549
        %v1803 = vmul.f32 %v715, %v1559
        %v1804 = vmul.f32 %v716, %v1569
        %v1805 = vmul.f32 %v717, %v1579
        %v1806 = vmul.f32 %v718, %v1589
        %v1807 = vmul.f32 %v719, %v1599
        %v1808 = vmul.f32 %v720, %v1609
        %v1809 = vmul.f32 %v721, %v1619
        %v1810 = vmul.f32 %v722, %v1629
        %v1811 = vmul.f32 %v723, %v1639
        %v1812 = vmul.f32 %v724, %v1649
        %v1813 = vmul.f32 %v725, %v1659
        %v1814 = vmul.f32 %v726, %v1669
        %v1815 = vmul.f32 %v727, %v1679
        %v1816 = vmul.f32 %v728, %v1689
        %v1817 = vmul.f32 %v729, %v1699
        %v1818 = vmul.f32 %v730, %v1709
        %v1819 = vmul.f32 %v731, %v1719
        %v1820 = vmul.f32 %v732, %v1729
        %v1821 = vmul.f32 %v733, %v1739
        %v1822 = vmul.f32 %v734, %v1749
        %v1823 = vmul.f32 %v735, %v1759
        %v1825 = vperm.slane %v413, 0
        %v1827 = vmul.f32 %v1760, %v1825
        %v1828 = vmul.f32 %v1761, %v1825
        %v1829 = vmul.f32 %v1762, %v1825
        %v1830 = vmul.f32 %v1763, %v1825
        %v1831 = vmul.f32 %v1764, %v1825
        %v1832 = vmul.f32 %v1765, %v1825
        %v1833 = vmul.f32 %v1766, %v1825
        %v1834 = vmul.f32 %v1767, %v1825
        %v1835 = vmul.f32 %v1768, %v1825
        %v1836 = vmul.f32 %v1769, %v1825
        %v1837 = vmul.f32 %v1770, %v1825
        %v1838 = vmul.f32 %v1771, %v1825
        %v1839 = vmul.f32 %v1772, %v1825
        %v1840 = vmul.f32 %v1773, %v1825
        %v1841 = vmul.f32 %v1774, %v1825
        %v1842 = vmul.f32 %v1775, %v1825
        %v1843 = vmul.f32 %v1776, %v1825
        %v1844 = vmul.f32 %v1777, %v1825
        %v1845 = vmul.f32 %v1778, %v1825
        %v1846 = vmul.f32 %v1779, %v1825
        %v1847 = vmul.f32 %v1780, %v1825
        %v1848 = vmul.f32 %v1781, %v1825
        %v1849 = vmul.f32 %v1782, %v1825
        %v1850 = vmul.f32 %v1783, %v1825
        %v1851 = vmul.f32 %v1784, %v1825
        %v1852 = vmul.f32 %v1785, %v1825
        %v1853 = vmul.f32 %v1786, %v1825
        %v1854 = vmul.f32 %v1787, %v1825
        %v1855 = vmul.f32 %v1788, %v1825
        %v1856 = vmul.f32 %v1789, %v1825
        %v1857 = vmul.f32 %v1790, %v1825
        %v1858 = vmul.f32 %v1791, %v1825
        %v1859 = vmul.f32 %v1792, %v1825
        %v1860 = vmul.f32 %v1793, %v1825
        %v1861 = vmul.f32 %v1794, %v1825
        %v1862 = vmul.f32 %v1795, %v1825
        %v1863 = vmul.f32 %v1796, %v1825
        %v1864 = vmul.f32 %v1797, %v1825
        %v1865 = vmul.f32 %v1798, %v1825
        %v1866 = vmul.f32 %v1799, %v1825
        %v1867 = vmul.f32 %v1800, %v1825
        %v1868 = vmul.f32 %v1801, %v1825
        %v1869 = vmul.f32 %v1802, %v1825
        %v1870 = vmul.f32 %v1803, %v1825
        %v1871 = vmul.f32 %v1804, %v1825
        %v1872 = vmul.f32 %v1805, %v1825
        %v1873 = vmul.f32 %v1806, %v1825
        %v1874 = vmul.f32 %v1807, %v1825
        %v1875 = vmul.f32 %v1808, %v1825
        %v1876 = vmul.f32 %v1809, %v1825
        %v1877 = vmul.f32 %v1810, %v1825
        %v1878 = vmul.f32 %v1811, %v1825
        %v1879 = vmul.f32 %v1812, %v1825
        %v1880 = vmul.f32 %v1813, %v1825
        %v1881 = vmul.f32 %v1814, %v1825
        %v1882 = vmul.f32 %v1815, %v1825
        %v1883 = vmul.f32 %v1816, %v1825
        %v1884 = vmul.f32 %v1817, %v1825
        %v1885 = vmul.f32 %v1818, %v1825
        %v1886 = vmul.f32 %v1819, %v1825
        %v1887 = vmul.f32 %v1820, %v1825
        %v1888 = vmul.f32 %v1821, %v1825
        %v1889 = vmul.f32 %v1822, %v1825
        %v1890 = vmul.f32 %v1823, %v1825
        %v1892 = vperm.slane %v414, 0
        %v1894 = vadd.f32 %v1827, %v1892
        %v1895 = vadd.f32 %v1828, %v1892
        %v1896 = vadd.f32 %v1829, %v1892
        %v1897 = vadd.f32 %v1830, %v1892
        %v1898 = vadd.f32 %v1831, %v1892
        %v1899 = vadd.f32 %v1832, %v1892
        %v1900 = vadd.f32 %v1833, %v1892
        %v1901 = vadd.f32 %v1834, %v1892
        %v1902 = vadd.f32 %v1835, %v1892
        %v1903 = vadd.f32 %v1836, %v1892
        %v1904 = vadd.f32 %v1837, %v1892
        %v1905 = vadd.f32 %v1838, %v1892
        %v1906 = vadd.f32 %v1839, %v1892
        %v1907 = vadd.f32 %v1840, %v1892
        %v1908 = vadd.f32 %v1841, %v1892
        %v1909 = vadd.f32 %v1842, %v1892
        %v1910 = vadd.f32 %v1843, %v1892
        %v1911 = vadd.f32 %v1844, %v1892
        %v1912 = vadd.f32 %v1845, %v1892
        %v1913 = vadd.f32 %v1846, %v1892
        %v1914 = vadd.f32 %v1847, %v1892
        %v1915 = vadd.f32 %v1848, %v1892
        %v1916 = vadd.f32 %v1849, %v1892
        %v1917 = vadd.f32 %v1850, %v1892
        %v1918 = vadd.f32 %v1851, %v1892
        %v1919 = vadd.f32 %v1852, %v1892
        %v1920 = vadd.f32 %v1853, %v1892
        %v1921 = vadd.f32 %v1854, %v1892
        %v1922 = vadd.f32 %v1855, %v1892
        %v1923 = vadd.f32 %v1856, %v1892
        %v1924 = vadd.f32 %v1857, %v1892
        %v1925 = vadd.f32 %v1858, %v1892
        %v1926 = vadd.f32 %v1859, %v1892
        %v1927 = vadd.f32 %v1860, %v1892
        %v1928 = vadd.f32 %v1861, %v1892
        %v1929 = vadd.f32 %v1862, %v1892
        %v1930 = vadd.f32 %v1863, %v1892
        %v1931 = vadd.f32 %v1864, %v1892
        %v1932 = vadd.f32 %v1865, %v1892
        %v1933 = vadd.f32 %v1866, %v1892
        %v1934 = vadd.f32 %v1867, %v1892
        %v1935 = vadd.f32 %v1868, %v1892
        %v1936 = vadd.f32 %v1869, %v1892
        %v1937 = vadd.f32 %v1870, %v1892
        %v1938 = vadd.f32 %v1871, %v1892
        %v1939 = vadd.f32 %v1872, %v1892
        %v1940 = vadd.f32 %v1873, %v1892
        %v1941 = vadd.f32 %v1874, %v1892
        %v1942 = vadd.f32 %v1875, %v1892
        %v1943 = vadd.f32 %v1876, %v1892
        %v1944 = vadd.f32 %v1877, %v1892
        %v1945 = vadd.f32 %v1878, %v1892
        %v1946 = vadd.f32 %v1879, %v1892
        %v1947 = vadd.f32 %v1880, %v1892
        %v1948 = vadd.f32 %v1881, %v1892
        %v1949 = vadd.f32 %v1882, %v1892
        %v1950 = vadd.f32 %v1883, %v1892
        %v1951 = vadd.f32 %v1884, %v1892
        %v1952 = vadd.f32 %v1885, %v1892
        %v1953 = vadd.f32 %v1886, %v1892
        %v1954 = vadd.f32 %v1887, %v1892
        %v1955 = vadd.f32 %v1888, %v1892
        %v1956 = vadd.f32 %v1889, %v1892
        %v1957 = vadd.f32 %v1890, %v1892
        %v1958 = vpack.c.bf16 %v1895, %v1894
        %v1959 = vpack.c.bf16 %v1897, %v1896
        %v1960 = vpack.c.bf16 %v1899, %v1898
        %v1961 = vpack.c.bf16 %v1901, %v1900
        %v1962 = vpack.c.bf16 %v1903, %v1902
        %v1963 = vpack.c.bf16 %v1905, %v1904
        %v1964 = vpack.c.bf16 %v1907, %v1906
        %v1965 = vpack.c.bf16 %v1909, %v1908
        %v1966 = vpack.c.bf16 %v1911, %v1910
        %v1967 = vpack.c.bf16 %v1913, %v1912
        %v1968 = vpack.c.bf16 %v1915, %v1914
        %v1969 = vpack.c.bf16 %v1917, %v1916
        %v1970 = vpack.c.bf16 %v1919, %v1918
        %v1971 = vpack.c.bf16 %v1921, %v1920
        %v1972 = vpack.c.bf16 %v1923, %v1922
        %v1973 = vpack.c.bf16 %v1925, %v1924
        %v1974 = vpack.c.bf16 %v1927, %v1926
        %v1975 = vpack.c.bf16 %v1929, %v1928
        %v1976 = vpack.c.bf16 %v1931, %v1930
        %v1977 = vpack.c.bf16 %v1933, %v1932
        %v1978 = vpack.c.bf16 %v1935, %v1934
        %v1979 = vpack.c.bf16 %v1937, %v1936
        %v1980 = vpack.c.bf16 %v1939, %v1938
        %v1981 = vpack.c.bf16 %v1941, %v1940
        %v1982 = vpack.c.bf16 %v1943, %v1942
        %v1983 = vpack.c.bf16 %v1945, %v1944
        %v1984 = vpack.c.bf16 %v1947, %v1946
        %v1985 = vpack.c.bf16 %v1949, %v1948
        %v1986 = vpack.c.bf16 %v1951, %v1950
        %v1987 = vpack.c.bf16 %v1953, %v1952
        %v1988 = vpack.c.bf16 %v1955, %v1954
        %v1989 = vpack.c.bf16 %v1957, %v1956
        %v1990 = vld [vmem:[%s3] sm:$0xf]
        %v1991 = vld [vmem:[%s3 + $0x4] sm:$0xf]
        %v1992 = vld [vmem:[%s3 + $0x8] sm:$0xf]
        %v1993 = vld [vmem:[%s3 + $0xc] sm:$0xf]
        %v1994 = vld [vmem:[%s4] sm:$0x1]
        %v1996 = vperm.slane %v1994, 0
        %v2002 = vunpack.c.l.b16 %v1990
        %v2003 = vunpack.c.l.b16 %v1991
        %v2004 = vunpack.c.l.b16 %v1992
        %v2005 = vunpack.c.l.b16 %v1993
        %v2006 = vpack.c.b16 %v2003, %v2002
        %v2007 = vpack.c.b16 %v2005, %v2004
        %v2011 = vsel %vm415, %v1958, 0
        %v2014 = vsel %vm415, %v1959, 0
        %v2017 = vsel %vm415, %v1960, 0
        %v2020 = vsel %vm415, %v1961, 0
        %v2023 = vsel %vm415, %v1962, 0
        %v2026 = vsel %vm415, %v1963, 0
        %v2029 = vsel %vm415, %v1964, 0
        %v2032 = vsel %vm415, %v1965, 0
        %v2035 = vsel %vm415, %v1966, 0
        %v2038 = vsel %vm415, %v1967, 0
        %v2041 = vsel %vm415, %v1968, 0
        %v2044 = vsel %vm415, %v1969, 0
        %v2047 = vsel %vm415, %v1970, 0
        %v2050 = vsel %vm415, %v1971, 0
        %v2053 = vsel %vm415, %v1972, 0
        %v2056 = vsel %vm415, %v1973, 0
        %v2059 = vsel %vm415, %v1974, 0
        %v2062 = vsel %vm415, %v1975, 0
        %v2065 = vsel %vm415, %v1976, 0
        %v2068 = vsel %vm415, %v1977, 0
        %v2071 = vsel %vm415, %v1978, 0
        %v2074 = vsel %vm415, %v1979, 0
        %v2077 = vsel %vm415, %v1980, 0
        %v2080 = vsel %vm415, %v1981, 0
        %v2083 = vsel %vm415, %v1982, 0
        %v2086 = vsel %vm415, %v1983, 0
        %v2089 = vsel %vm415, %v1984, 0
        %v2092 = vsel %vm415, %v1985, 0
        %v2095 = vsel %vm415, %v1986, 0
        %v2098 = vsel %vm415, %v1987, 0
        %v2101 = vsel %vm415, %v1988, 0
        %v2104 = vsel %vm415, %v1989, 0
        %2106 = vmatpush.bf16.msra.mxu0 0
        %2107 = vmatpush.bf16.msra.mxu0 0
        %2108 = vmatpush.bf16.msra.mxu0 0
        %2109 = vmatpush.bf16.msra.mxu0 0
        %2110 = vmatpush.bf16.msra.mxu0 0
        %2111 = vmatpush.bf16.msra.mxu0 0
        %2112 = vmatpush.bf16.msra.mxu0 %v2007
        %2113 = vmatpush.bf16.msra.mxu0 %v2006
        %2114 = vmatmul.bf16.gmra.mxu0 %v2011
        %v2115 = vpop.f32.mrf.mxu0
        %v2116 = vadd.f32 %v1996, %v2115
        %v2117 = vpop.f32.mrf.mxu0
        %v2118 = vadd.f32 %v1996, %v2117
        %2119 = vmatmul.bf16.gmra.mxu0 %v2014
        %v2120 = vpop.f32.mrf.mxu0
        %v2121 = vadd.f32 %v1996, %v2120
        %v2122 = vpop.f32.mrf.mxu0
        %v2123 = vadd.f32 %v1996, %v2122
        %2124 = vmatmul.bf16.gmra.mxu0 %v2017
        %v2125 = vpop.f32.mrf.mxu0
        %v2126 = vadd.f32 %v1996, %v2125
        %v2127 = vpop.f32.mrf.mxu0
        %v2128 = vadd.f32 %v1996, %v2127
        %2129 = vmatmul.bf16.gmra.mxu0 %v2020
        %v2130 = vpop.f32.mrf.mxu0
        %v2131 = vadd.f32 %v1996, %v2130
        %v2132 = vpop.f32.mrf.mxu0
        %v2133 = vadd.f32 %v1996, %v2132
        %2134 = vmatmul.bf16.gmra.mxu0 %v2023
        %v2135 = vpop.f32.mrf.mxu0
        %v2136 = vadd.f32 %v1996, %v2135
        %v2137 = vpop.f32.mrf.mxu0
        %v2138 = vadd.f32 %v1996, %v2137
        %2139 = vmatmul.bf16.gmra.mxu0 %v2026
        %v2140 = vpop.f32.mrf.mxu0
        %v2141 = vadd.f32 %v1996, %v2140
        %v2142 = vpop.f32.mrf.mxu0
        %v2143 = vadd.f32 %v1996, %v2142
        %2144 = vmatmul.bf16.gmra.mxu0 %v2029
        %v2145 = vpop.f32.mrf.mxu0
        %v2146 = vadd.f32 %v1996, %v2145
        %v2147 = vpop.f32.mrf.mxu0
        %v2148 = vadd.f32 %v1996, %v2147
        %2149 = vmatmul.bf16.gmra.mxu0 %v2032
        %v2150 = vpop.f32.mrf.mxu0
        %v2151 = vadd.f32 %v1996, %v2150
        %v2152 = vpop.f32.mrf.mxu0
        %v2153 = vadd.f32 %v1996, %v2152
        %2154 = vmatmul.bf16.gmra.mxu0 %v2035
        %v2155 = vpop.f32.mrf.mxu0
        %v2156 = vadd.f32 %v1996, %v2155
        %v2157 = vpop.f32.mrf.mxu0
        %v2158 = vadd.f32 %v1996, %v2157
        %2159 = vmatmul.bf16.gmra.mxu0 %v2038
        %v2160 = vpop.f32.mrf.mxu0
        %v2161 = vadd.f32 %v1996, %v2160
        %v2162 = vpop.f32.mrf.mxu0
        %v2163 = vadd.f32 %v1996, %v2162
        %2164 = vmatmul.bf16.gmra.mxu0 %v2041
        %v2165 = vpop.f32.mrf.mxu0
        %v2166 = vadd.f32 %v1996, %v2165
        %v2167 = vpop.f32.mrf.mxu0
        %v2168 = vadd.f32 %v1996, %v2167
        %2169 = vmatmul.bf16.gmra.mxu0 %v2044
        %v2170 = vpop.f32.mrf.mxu0
        %v2171 = vadd.f32 %v1996, %v2170
        %v2172 = vpop.f32.mrf.mxu0
        %v2173 = vadd.f32 %v1996, %v2172
        %2174 = vmatmul.bf16.gmra.mxu0 %v2047
        %v2175 = vpop.f32.mrf.mxu0
        %v2176 = vadd.f32 %v1996, %v2175
        %v2177 = vpop.f32.mrf.mxu0
        %v2178 = vadd.f32 %v1996, %v2177
        %2179 = vmatmul.bf16.gmra.mxu0 %v2050
        %v2180 = vpop.f32.mrf.mxu0
        %v2181 = vadd.f32 %v1996, %v2180
        %v2182 = vpop.f32.mrf.mxu0
        %v2183 = vadd.f32 %v1996, %v2182
        %2184 = vmatmul.bf16.gmra.mxu0 %v2053
        %v2185 = vpop.f32.mrf.mxu0
        %v2186 = vadd.f32 %v1996, %v2185
        %v2187 = vpop.f32.mrf.mxu0
        %v2188 = vadd.f32 %v1996, %v2187
        %2189 = vmatmul.bf16.gmra.mxu0 %v2056
        %v2190 = vpop.f32.mrf.mxu0
        %v2191 = vadd.f32 %v1996, %v2190
        %v2192 = vpop.f32.mrf.mxu0
        %v2193 = vadd.f32 %v1996, %v2192
        %2194 = vmatmul.bf16.gmra.mxu0 %v2059
        %v2195 = vpop.f32.mrf.mxu0
        %v2196 = vadd.f32 %v1996, %v2195
        %v2197 = vpop.f32.mrf.mxu0
        %v2198 = vadd.f32 %v1996, %v2197
        %2199 = vmatmul.bf16.gmra.mxu0 %v2062
        %v2200 = vpop.f32.mrf.mxu0
        %v2201 = vadd.f32 %v1996, %v2200
        %v2202 = vpop.f32.mrf.mxu0
        %v2203 = vadd.f32 %v1996, %v2202
        %2204 = vmatmul.bf16.gmra.mxu0 %v2065
        %v2205 = vpop.f32.mrf.mxu0
        %v2206 = vadd.f32 %v1996, %v2205
        %v2207 = vpop.f32.mrf.mxu0
        %v2208 = vadd.f32 %v1996, %v2207
        %2209 = vmatmul.bf16.gmra.mxu0 %v2068
        %v2210 = vpop.f32.mrf.mxu0
        %v2211 = vadd.f32 %v1996, %v2210
        %v2212 = vpop.f32.mrf.mxu0
        %v2213 = vadd.f32 %v1996, %v2212
        %2214 = vmatmul.bf16.gmra.mxu0 %v2071
        %v2215 = vpop.f32.mrf.mxu0
        %v2216 = vadd.f32 %v1996, %v2215
        %v2217 = vpop.f32.mrf.mxu0
        %v2218 = vadd.f32 %v1996, %v2217
        %2219 = vmatmul.bf16.gmra.mxu0 %v2074
        %v2220 = vpop.f32.mrf.mxu0
        %v2221 = vadd.f32 %v1996, %v2220
        %v2222 = vpop.f32.mrf.mxu0
        %v2223 = vadd.f32 %v1996, %v2222
        %2224 = vmatmul.bf16.gmra.mxu0 %v2077
        %v2225 = vpop.f32.mrf.mxu0
        %v2226 = vadd.f32 %v1996, %v2225
        %v2227 = vpop.f32.mrf.mxu0
        %v2228 = vadd.f32 %v1996, %v2227
        %2229 = vmatmul.bf16.gmra.mxu0 %v2080
        %v2230 = vpop.f32.mrf.mxu0
        %v2231 = vadd.f32 %v1996, %v2230
        %v2232 = vpop.f32.mrf.mxu0
        %v2233 = vadd.f32 %v1996, %v2232
        %2234 = vmatmul.bf16.gmra.mxu0 %v2083
        %v2235 = vpop.f32.mrf.mxu0
        %v2236 = vadd.f32 %v1996, %v2235
        %v2237 = vpop.f32.mrf.mxu0
        %v2238 = vadd.f32 %v1996, %v2237
        %2239 = vmatmul.bf16.gmra.mxu0 %v2086
        %v2240 = vpop.f32.mrf.mxu0
        %v2241 = vadd.f32 %v1996, %v2240
        %v2242 = vpop.f32.mrf.mxu0
        %v2243 = vadd.f32 %v1996, %v2242
        %2244 = vmatmul.bf16.gmra.mxu0 %v2089
        %v2245 = vpop.f32.mrf.mxu0
        %v2246 = vadd.f32 %v1996, %v2245
        %v2247 = vpop.f32.mrf.mxu0
        %v2248 = vadd.f32 %v1996, %v2247
        %2249 = vmatmul.bf16.gmra.mxu0 %v2092
        %v2250 = vpop.f32.mrf.mxu0
        %v2251 = vadd.f32 %v1996, %v2250
        %v2252 = vpop.f32.mrf.mxu0
        %v2253 = vadd.f32 %v1996, %v2252
        %2254 = vmatmul.bf16.gmra.mxu0 %v2095
        %v2255 = vpop.f32.mrf.mxu0
        %v2256 = vadd.f32 %v1996, %v2255
        %v2257 = vpop.f32.mrf.mxu0
        %v2258 = vadd.f32 %v1996, %v2257
        %2259 = vmatmul.bf16.gmra.mxu0 %v2098
        %v2260 = vpop.f32.mrf.mxu0
        %v2261 = vadd.f32 %v1996, %v2260
        %v2262 = vpop.f32.mrf.mxu0
        %v2263 = vadd.f32 %v1996, %v2262
        %2264 = vmatmul.bf16.gmra.mxu0 %v2101
        %v2265 = vpop.f32.mrf.mxu0
        %v2266 = vadd.f32 %v1996, %v2265
        %v2267 = vpop.f32.mrf.mxu0
        %v2268 = vadd.f32 %v1996, %v2267
        %2269 = vmatmul.bf16.gmra.mxu0 %v2104
        %v2270 = vpop.f32.mrf.mxu0
        %v2271 = vadd.f32 %v1996, %v2270
        %v2272 = vpop.f32.mrf.mxu0
        %v2273 = vadd.f32 %v1996, %v2272
        %2274 = vdwg.mxu0
        %v2275 = vpack.c.bf16 %v2116, %v2116
        %v2276 = vpack.c.bf16 %v2118, %v2118
        %v2277 = vpack.c.bf16 %v2121, %v2121
        %v2278 = vpack.c.bf16 %v2123, %v2123
        %v2279 = vpack.c.bf16 %v2126, %v2126
        %v2280 = vpack.c.bf16 %v2128, %v2128
        %v2281 = vpack.c.bf16 %v2131, %v2131
        %v2282 = vpack.c.bf16 %v2133, %v2133
        %v2283 = vpack.c.bf16 %v2136, %v2136
        %v2284 = vpack.c.bf16 %v2138, %v2138
        %v2285 = vpack.c.bf16 %v2141, %v2141
        %v2286 = vpack.c.bf16 %v2143, %v2143
        %v2287 = vpack.c.bf16 %v2146, %v2146
        %v2288 = vpack.c.bf16 %v2148, %v2148
        %v2289 = vpack.c.bf16 %v2151, %v2151
        %v2290 = vpack.c.bf16 %v2153, %v2153
        %v2291 = vpack.c.bf16 %v2156, %v2156
        %v2292 = vpack.c.bf16 %v2158, %v2158
        %v2293 = vpack.c.bf16 %v2161, %v2161
        %v2294 = vpack.c.bf16 %v2163, %v2163
        %v2295 = vpack.c.bf16 %v2166, %v2166
        %v2296 = vpack.c.bf16 %v2168, %v2168
        %v2297 = vpack.c.bf16 %v2171, %v2171
        %v2298 = vpack.c.bf16 %v2173, %v2173
        %v2299 = vpack.c.bf16 %v2176, %v2176
        %v2300 = vpack.c.bf16 %v2178, %v2178
        %v2301 = vpack.c.bf16 %v2181, %v2181
        %v2302 = vpack.c.bf16 %v2183, %v2183
        %v2303 = vpack.c.bf16 %v2186, %v2186
        %v2304 = vpack.c.bf16 %v2188, %v2188
        %v2305 = vpack.c.bf16 %v2191, %v2191
        %v2306 = vpack.c.bf16 %v2193, %v2193
        %v2307 = vpack.c.bf16 %v2196, %v2196
        %v2308 = vpack.c.bf16 %v2198, %v2198
        %v2309 = vpack.c.bf16 %v2201, %v2201
        %v2310 = vpack.c.bf16 %v2203, %v2203
        %v2311 = vpack.c.bf16 %v2206, %v2206
        %v2312 = vpack.c.bf16 %v2208, %v2208
        %v2313 = vpack.c.bf16 %v2211, %v2211
        %v2314 = vpack.c.bf16 %v2213, %v2213
        %v2315 = vpack.c.bf16 %v2216, %v2216
        %v2316 = vpack.c.bf16 %v2218, %v2218
        %v2317 = vpack.c.bf16 %v2221, %v2221
        %v2318 = vpack.c.bf16 %v2223, %v2223
        %v2319 = vpack.c.bf16 %v2226, %v2226
        %v2320 = vpack.c.bf16 %v2228, %v2228
        %v2321 = vpack.c.bf16 %v2231, %v2231
        %v2322 = vpack.c.bf16 %v2233, %v2233
        %v2323 = vpack.c.bf16 %v2236, %v2236
        %v2324 = vpack.c.bf16 %v2238, %v2238
        %v2325 = vpack.c.bf16 %v2241, %v2241
        %v2326 = vpack.c.bf16 %v2243, %v2243
        %v2327 = vpack.c.bf16 %v2246, %v2246
        %v2328 = vpack.c.bf16 %v2248, %v2248
        %v2329 = vpack.c.bf16 %v2251, %v2251
        %v2330 = vpack.c.bf16 %v2253, %v2253
        %v2331 = vpack.c.bf16 %v2256, %v2256
        %v2332 = vpack.c.bf16 %v2258, %v2258
        %v2333 = vpack.c.bf16 %v2261, %v2261
        %v2334 = vpack.c.bf16 %v2263, %v2263
        %v2335 = vpack.c.bf16 %v2266, %v2266
        %v2336 = vpack.c.bf16 %v2268, %v2268
        %v2337 = vpack.c.bf16 %v2271, %v2271
        %v2338 = vpack.c.bf16 %v2273, %v2273
        %vm2339 = vcmask 257024
        %2340 = vst.msk [vmem:[%s254] sm:$0xf] %vm2339, %v2275
        %2341 = vst.msk [vmem:[%s254 + $0x4] sm:$0xf] %vm2339, %v2276
        %2342 = vst.msk [vmem:[%s254 + $0x8] sm:$0xf] %vm2339, %v2277
        %2343 = vst.msk [vmem:[%s254 + $0xc] sm:$0xf] %vm2339, %v2278
        %2344 = vst.msk [vmem:[%s254 + $0x10] sm:$0xf] %vm2339, %v2279
        %2345 = vst.msk [vmem:[%s254 + $0x14] sm:$0xf] %vm2339, %v2280
        %2346 = vst.msk [vmem:[%s254 + $0x18] sm:$0xf] %vm2339, %v2281
        %2347 = vst.msk [vmem:[%s254 + $0x1c] sm:$0xf] %vm2339, %v2282
        %2348 = vst.msk [vmem:[%s254 + $0x20] sm:$0xf] %vm2339, %v2283
        %2349 = vst.msk [vmem:[%s254 + $0x24] sm:$0xf] %vm2339, %v2284
        %2350 = vst.msk [vmem:[%s254 + $0x28] sm:$0xf] %vm2339, %v2285
        %2351 = vst.msk [vmem:[%s254 + $0x2c] sm:$0xf] %vm2339, %v2286
        %2352 = vst.msk [vmem:[%s254 + $0x30] sm:$0xf] %vm2339, %v2287
        %2353 = vst.msk [vmem:[%s254 + $0x34] sm:$0xf] %vm2339, %v2288
        %2354 = vst.msk [vmem:[%s254 + $0x38] sm:$0xf] %vm2339, %v2289
        %2355 = vst.msk [vmem:[%s254 + $0x3c] sm:$0xf] %vm2339, %v2290
        %2356 = vst.msk [vmem:[%s254 + $0x40] sm:$0xf] %vm2339, %v2291
        %2357 = vst.msk [vmem:[%s254 + $0x44] sm:$0xf] %vm2339, %v2292
        %2358 = vst.msk [vmem:[%s254 + $0x48] sm:$0xf] %vm2339, %v2293
        %2359 = vst.msk [vmem:[%s254 + $0x4c] sm:$0xf] %vm2339, %v2294
        %2360 = vst.msk [vmem:[%s254 + $0x50] sm:$0xf] %vm2339, %v2295
        %2361 = vst.msk [vmem:[%s254 + $0x54] sm:$0xf] %vm2339, %v2296
        %2362 = vst.msk [vmem:[%s254 + $0x58] sm:$0xf] %vm2339, %v2297
        %2363 = vst.msk [vmem:[%s254 + $0x5c] sm:$0xf] %vm2339, %v2298
        %2364 = vst.msk [vmem:[%s254 + $0x60] sm:$0xf] %vm2339, %v2299
        %2365 = vst.msk [vmem:[%s254 + $0x64] sm:$0xf] %vm2339, %v2300
        %2366 = vst.msk [vmem:[%s254 + $0x68] sm:$0xf] %vm2339, %v2301
        %2367 = vst.msk [vmem:[%s254 + $0x6c] sm:$0xf] %vm2339, %v2302
        %2368 = vst.msk [vmem:[%s254 + $0x70] sm:$0xf] %vm2339, %v2303
        %2369 = vst.msk [vmem:[%s254 + $0x74] sm:$0xf] %vm2339, %v2304
        %2370 = vst.msk [vmem:[%s254 + $0x78] sm:$0xf] %vm2339, %v2305
        %2371 = vst.msk [vmem:[%s254 + $0x7c] sm:$0xf] %vm2339, %v2306
        %2372 = vst.msk [vmem:[%s254 + $0x80] sm:$0xf] %vm2339, %v2307
        %2373 = vst.msk [vmem:[%s254 + $0x84] sm:$0xf] %vm2339, %v2308
        %2374 = vst.msk [vmem:[%s254 + $0x88] sm:$0xf] %vm2339, %v2309
        %2375 = vst.msk [vmem:[%s254 + $0x8c] sm:$0xf] %vm2339, %v2310
        %2376 = vst.msk [vmem:[%s254 + $0x90] sm:$0xf] %vm2339, %v2311
        %2377 = vst.msk [vmem:[%s254 + $0x94] sm:$0xf] %vm2339, %v2312
        %2378 = vst.msk [vmem:[%s254 + $0x98] sm:$0xf] %vm2339, %v2313
        %2379 = vst.msk [vmem:[%s254 + $0x9c] sm:$0xf] %vm2339, %v2314
        %2380 = vst.msk [vmem:[%s254 + $0xa0] sm:$0xf] %vm2339, %v2315
        %2381 = vst.msk [vmem:[%s254 + $0xa4] sm:$0xf] %vm2339, %v2316
        %2382 = vst.msk [vmem:[%s254 + $0xa8] sm:$0xf] %vm2339, %v2317
        %2383 = vst.msk [vmem:[%s254 + $0xac] sm:$0xf] %vm2339, %v2318
        %2384 = vst.msk [vmem:[%s254 + $0xb0] sm:$0xf] %vm2339, %v2319
        %2385 = vst.msk [vmem:[%s254 + $0xb4] sm:$0xf] %vm2339, %v2320
        %2386 = vst.msk [vmem:[%s254 + $0xb8] sm:$0xf] %vm2339, %v2321
        %2387 = vst.msk [vmem:[%s254 + $0xbc] sm:$0xf] %vm2339, %v2322
        %2388 = vst.msk [vmem:[%s254 + $0xc0] sm:$0xf] %vm2339, %v2323
        %2389 = vst.msk [vmem:[%s254 + $0xc4] sm:$0xf] %vm2339, %v2324
        %2390 = vst.msk [vmem:[%s254 + $0xc8] sm:$0xf] %vm2339, %v2325
        %2391 = vst.msk [vmem:[%s254 + $0xcc] sm:$0xf] %vm2339, %v2326
        %2392 = vst.msk [vmem:[%s254 + $0xd0] sm:$0xf] %vm2339, %v2327
        %2393 = vst.msk [vmem:[%s254 + $0xd4] sm:$0xf] %vm2339, %v2328
        %2394 = vst.msk [vmem:[%s254 + $0xd8] sm:$0xf] %vm2339, %v2329
        %2395 = vst.msk [vmem:[%s254 + $0xdc] sm:$0xf] %vm2339, %v2330
        %2396 = vst.msk [vmem:[%s254 + $0xe0] sm:$0xf] %vm2339, %v2331
        %2397 = vst.msk [vmem:[%s254 + $0xe4] sm:$0xf] %vm2339, %v2332
        %2398 = vst.msk [vmem:[%s254 + $0xe8] sm:$0xf] %vm2339, %v2333
        %2399 = vst.msk [vmem:[%s254 + $0xec] sm:$0xf] %vm2339, %v2334
        %2400 = vst.msk [vmem:[%s254 + $0xf0] sm:$0xf] %vm2339, %v2335
        %2401 = vst.msk [vmem:[%s254 + $0xf4] sm:$0xf] %vm2339, %v2336
        %2402 = vst.msk [vmem:[%s254 + $0xf8] sm:$0xf] %vm2339, %v2337
        %2403 = vst.msk [vmem:[%s254 + $0xfc] sm:$0xf] %vm2339, %v2338
        %v2404 = vmul.f32 %v413, 0.03125
        %vm2405 = vcmask 253952
        %v2406 = vsel %vm2405, %v414, 0.0
        %2407 = vadd.xlane.f32.xlu0 %v2406
        %v2408 = vpop.xlane.xlu0 %2407
        %v2409 = vmul.f32 %v2408, 0.03125
        %v2411 = vsel %vm415, %v2404, 0
        %v2414 = vsel %vm415, %v1760, 0
        %v2417 = vsel %vm415, %v1761, 0
        %v2420 = vsel %vm415, %v1762, 0
        %v2423 = vsel %vm415, %v1763, 0
        %v2426 = vsel %vm415, %v1764, 0
        %v2429 = vsel %vm415, %v1765, 0
        %v2432 = vsel %vm415, %v1766, 0
        %v2435 = vsel %vm415, %v1767, 0
        %v2438 = vsel %vm415, %v1768, 0
        %v2441 = vsel %vm415, %v1769, 0
        %v2444 = vsel %vm415, %v1770, 0
        %v2447 = vsel %vm415, %v1771, 0
        %v2450 = vsel %vm415, %v1772, 0
        %v2453 = vsel %vm415, %v1773, 0
        %v2456 = vsel %vm415, %v1774, 0
        %v2459 = vsel %vm415, %v1775, 0
        %v2462 = vsel %vm415, %v1776, 0
        %v2465 = vsel %vm415, %v1777, 0
        %v2468 = vsel %vm415, %v1778, 0
        %v2471 = vsel %vm415, %v1779, 0
        %v2474 = vsel %vm415, %v1780, 0
        %v2477 = vsel %vm415, %v1781, 0
        %v2480 = vsel %vm415, %v1782, 0
        %v2483 = vsel %vm415, %v1783, 0
        %v2486 = vsel %vm415, %v1784, 0
        %v2489 = vsel %vm415, %v1785, 0
        %v2492 = vsel %vm415, %v1786, 0
        %v2495 = vsel %vm415, %v1787, 0
        %v2498 = vsel %vm415, %v1788, 0
        %v2501 = vsel %vm415, %v1789, 0
        %v2504 = vsel %vm415, %v1790, 0
        %v2507 = vsel %vm415, %v1791, 0
        %v2510 = vsel %vm415, %v1792, 0
        %v2513 = vsel %vm415, %v1793, 0
        %v2516 = vsel %vm415, %v1794, 0
        %v2519 = vsel %vm415, %v1795, 0
        %v2522 = vsel %vm415, %v1796, 0
        %v2525 = vsel %vm415, %v1797, 0
        %v2528 = vsel %vm415, %v1798, 0
        %v2531 = vsel %vm415, %v1799, 0
        %v2534 = vsel %vm415, %v1800, 0
        %v2537 = vsel %vm415, %v1801, 0
        %v2540 = vsel %vm415, %v1802, 0
        %v2543 = vsel %vm415, %v1803, 0
        %v2546 = vsel %vm415, %v1804, 0
        %v2549 = vsel %vm415, %v1805, 0
        %v2552 = vsel %vm415, %v1806, 0
        %v2555 = vsel %vm415, %v1807, 0
        %v2558 = vsel %vm415, %v1808, 0
        %v2561 = vsel %vm415, %v1809, 0
        %v2564 = vsel %vm415, %v1810, 0
        %v2567 = vsel %vm415, %v1811, 0
        %v2570 = vsel %vm415, %v1812, 0
        %v2573 = vsel %vm415, %v1813, 0
        %v2576 = vsel %vm415, %v1814, 0
        %v2579 = vsel %vm415, %v1815, 0
        %v2582 = vsel %vm415, %v1816, 0
        %v2585 = vsel %vm415, %v1817, 0
        %v2588 = vsel %vm415, %v1818, 0
        %v2591 = vsel %vm415, %v1819, 0
        %v2594 = vsel %vm415, %v1820, 0
        %v2597 = vsel %vm415, %v1821, 0
        %v2600 = vsel %vm415, %v1822, 0
        %v2603 = vsel %vm415, %v1823, 0
        %2605 = vmatpush.xpose.msra.mxu0 %v2459
        %2606 = vmatpush.xpose.msra.mxu0 %v2456
        %2607 = vmatpush.xpose.msra.mxu0 %v2453
        %2608 = vmatpush.xpose.msra.mxu0 %v2450
        %2609 = vmatpush.xpose.msra.mxu0 %v2447
        %2610 = vmatpush.xpose.msra.mxu0 %v2444
        %2611 = vmatpush.xpose.msra.mxu0 %v2441
        %2612 = vmatpush.xpose.msra.mxu0 %v2438
        %2613 = vmatpush.xpose.msra.mxu0 %v2435
        %2614 = vmatpush.xpose.msra.mxu0 %v2432
        %2615 = vmatpush.xpose.msra.mxu0 %v2429
        %2616 = vmatpush.xpose.msra.mxu0 %v2426
        %2617 = vmatpush.xpose.msra.mxu0 %v2423
        %2618 = vmatpush.xpose.msra.mxu0 %v2420
        %2619 = vmatpush.xpose.msra.mxu0 %v2417
        %2620 = vmatpush.xpose.msra.mxu0 %v2414
        %2621 = vmatmul.f32.gmra.mxu0 %v2411
        %v2622 = vpop.f32.mrf.mxu0
        %v2623 = vadd.f32 %v2409, %v2622
        %2624 = vdwg.mxu0
        %2625 = vmatpush.xpose.msra.mxu0 %v2507
        %2626 = vmatpush.xpose.msra.mxu0 %v2504
        %2627 = vmatpush.xpose.msra.mxu0 %v2501
        %2628 = vmatpush.xpose.msra.mxu0 %v2498
        %2629 = vmatpush.xpose.msra.mxu0 %v2495
        %2630 = vmatpush.xpose.msra.mxu0 %v2492
        %2631 = vmatpush.xpose.msra.mxu0 %v2489
        %2632 = vmatpush.xpose.msra.mxu0 %v2486
        %2633 = vmatpush.xpose.msra.mxu0 %v2483
        %2634 = vmatpush.xpose.msra.mxu0 %v2480
        %2635 = vmatpush.xpose.msra.mxu0 %v2477
        %2636 = vmatpush.xpose.msra.mxu0 %v2474
        %2637 = vmatpush.xpose.msra.mxu0 %v2471
        %2638 = vmatpush.xpose.msra.mxu0 %v2468
        %2639 = vmatpush.xpose.msra.mxu0 %v2465
        %2640 = vmatpush.xpose.msra.mxu0 %v2462
        %2641 = vmatmul.f32.gmra.mxu0 %v2411
        %v2642 = vpop.f32.mrf.mxu0
        %v2643 = vadd.f32 %v2409, %v2642
        %2644 = vdwg.mxu0
        %2645 = vmatpush.xpose.msra.mxu0 %v2555
        %2646 = vmatpush.xpose.msra.mxu0 %v2552
        %2647 = vmatpush.xpose.msra.mxu0 %v2549
        %2648 = vmatpush.xpose.msra.mxu0 %v2546
        %2649 = vmatpush.xpose.msra.mxu0 %v2543
        %2650 = vmatpush.xpose.msra.mxu0 %v2540
        %2651 = vmatpush.xpose.msra.mxu0 %v2537
        %2652 = vmatpush.xpose.msra.mxu0 %v2534
        %2653 = vmatpush.xpose.msra.mxu0 %v2531
        %2654 = vmatpush.xpose.msra.mxu0 %v2528
        %2655 = vmatpush.xpose.msra.mxu0 %v2525
        %2656 = vmatpush.xpose.msra.mxu0 %v2522
        %2657 = vmatpush.xpose.msra.mxu0 %v2519
        %2658 = vmatpush.xpose.msra.mxu0 %v2516
        %2659 = vmatpush.xpose.msra.mxu0 %v2513
        %2660 = vmatpush.xpose.msra.mxu0 %v2510
        %2661 = vmatmul.f32.gmra.mxu0 %v2411
        %v2662 = vpop.f32.mrf.mxu0
        %v2663 = vadd.f32 %v2409, %v2662
        %2664 = vdwg.mxu0
        %2665 = vmatpush.xpose.msra.mxu0 %v2603
        %2666 = vmatpush.xpose.msra.mxu0 %v2600
        %2667 = vmatpush.xpose.msra.mxu0 %v2597
        %2668 = vmatpush.xpose.msra.mxu0 %v2594
        %2669 = vmatpush.xpose.msra.mxu0 %v2591
        %2670 = vmatpush.xpose.msra.mxu0 %v2588
        %2671 = vmatpush.xpose.msra.mxu0 %v2585
        %2672 = vmatpush.xpose.msra.mxu0 %v2582
        %2673 = vmatpush.xpose.msra.mxu0 %v2579
        %2674 = vmatpush.xpose.msra.mxu0 %v2576
        %2675 = vmatpush.xpose.msra.mxu0 %v2573
        %2676 = vmatpush.xpose.msra.mxu0 %v2570
        %2677 = vmatpush.xpose.msra.mxu0 %v2567
        %2678 = vmatpush.xpose.msra.mxu0 %v2564
        %2679 = vmatpush.xpose.msra.mxu0 %v2561
        %2680 = vmatpush.xpose.msra.mxu0 %v2558
        %2681 = vmatmul.f32.gmra.mxu0 %v2411
        %v2682 = vpop.f32.mrf.mxu0
        %v2683 = vadd.f32 %v2409, %v2682
        %2684 = vdwg.mxu0
        %v2689 = vrot.slane %v2643, 7
        %v2690 = vrot.slane %v2663, 6
        %v2691 = vrot.slane %v2683, 5
        %vm2692 = vcmask 1040384
        %v2693 = vsel %vm2692, %v2623, %v2689
        %vm2694 = vcmask 1042434
        %v2695 = vsel %vm2694, %v2690, %v2691
        %vm2696 = vcmask 1041408
        %v2697 = vsel %vm2696, %v2693, %v2695
        %v2699 = vlaneseq
        %vm2700 = vcmp.ge.s32.totalorder %v2699, 0
        %vm2701 = vcmp.lt.s32.totalorder %v2699, 512
        %vm2702 = vmand %vm2700, %vm2701
        %2703 = vst.msk [vmem:[%s260] sm:$0xf] %vm2702, %v2697
        %s2704 = sand.u32 %s136, 1
        %s2705 = sand.u32 %s136, 1
        %s2706 = smul.addr %s2705, 256
        %s2707 = scalar_lea.vmem [#allocation2], %s2706
        %s2708 = sand.u32 %s162, 1
        %s2709 = sand.u32 %s162, 1
        %s2710 = smul.addr %s2709, 4
        %s2711 = scalar_lea.vmem [#allocation3], %s2710
        // Predicated region
        $region41: #{prenorm_fn.1} parent=39 // pred_check
          %p2712 = pneg %p146
        $region42: #{prenorm_fn.1} parent=39 // pred_check_branch
          %2714 = sbr.rel (%p2712) target = $region44
        $region43: #{prenorm_fn.1} parent=39 // pred_region
          %s2715 = smul.u32 64, %s18
          %s2716 = ssub.s32 65, %s2715
          %p2717 = scmp.lt.s32.totalorder %s2716, 64
          %s2718 = scalar_select %p2717, %s2716, 64
          %s2719 = smul.u32 4, %s2718
          %p2720 = scmp.ne.s32.totalorder 0, %s2719
          %s2721 = smul.addr %s2715, 4
          %s2722 = scalar_lea.vmem %s5, %s2721
          // Predicated region
          $region45: #{prenorm_fn.1} parent=43 // pred_check
            %p2723 = pneg %p2720
          $region46: #{prenorm_fn.1} parent=43 // pred_check_branch
            %2725 = sbr.rel (%p2723) target = $region48
          $region47: #{prenorm_fn.1} parent=43 // pred_region
            // Predicated region
            $region49: #{prenorm_fn.1} parent=47 // pred_check
              _
            $region50: #{prenorm_fn.1} parent=47 // pred_check_branch
              %2727 = sbr.rel target = $region52
            $region51: #{prenorm_fn.1} parent=47 // pred_region
              // Predicated region
              $region71: #{prenorm_fn.1} parent=51 // pred_check
                _
              $region72: #{prenorm_fn.1} parent=51 // pred_check_branch
                %2839 = sbr.rel (0) target = $region74
              $region73: #{prenorm_fn.1} parent=51 // pred_region
                %s2841 = ssub.s32 16, 1
                %s2842 = sshrl.u32 %s2718, 5
                // While loop
                $region75: #{prenorm_fn.1} parent=73 // loop_pre_header
                  _
                $region76: #{prenorm_fn.1} parent=73 // loop_header
                  %s2844 = sphi 0, %s2846
                  %p2845 = scmp.ge.s32.totalorder %s2844, %s2842
                  %s2849 = sphi 0, %s2918
                  %s2850 = sphi %s2707, %s2921
                  %s2851 = sphi %s2722, %s2922
                $region77: #{prenorm_fn.1} parent=73 // loop_header_branch
                  %2848 = sbr.rel (%p2845) target = $region81
                $region78: #{prenorm_fn.1} parent=73 // loop_body
                  %v2852 = vld [vmem:[%s2850] sm:%s2841]
                  %2853 = vst [vmem:[%s2851] sm:%s2841] %v2852
                  %v2854 = vld [vmem:[%s2850 + $0x4] sm:%s2841]
                  %2855 = vst [vmem:[%s2851 + $0x4] sm:%s2841] %v2854
                  %v2856 = vld [vmem:[%s2850 + $0x8] sm:%s2841]
                  %2857 = vst [vmem:[%s2851 + $0x8] sm:%s2841] %v2856
                  %v2858 = vld [vmem:[%s2850 + $0xc] sm:%s2841]
                  %2859 = vst [vmem:[%s2851 + $0xc] sm:%s2841] %v2858
                  %v2860 = vld [vmem:[%s2850 + $0x10] sm:%s2841]
                  %2861 = vst [vmem:[%s2851 + $0x10] sm:%s2841] %v2860
                  %v2862 = vld [vmem:[%s2850 + $0x14] sm:%s2841]
                  %2863 = vst [vmem:[%s2851 + $0x14] sm:%s2841] %v2862
                  %v2864 = vld [vmem:[%s2850 + $0x18] sm:%s2841]
                  %2865 = vst [vmem:[%s2851 + $0x18] sm:%s2841] %v2864
                  %v2866 = vld [vmem:[%s2850 + $0x1c] sm:%s2841]
                  %2867 = vst [vmem:[%s2851 + $0x1c] sm:%s2841] %v2866
                  %v2868 = vld [vmem:[%s2850 + $0x20] sm:%s2841]
                  %2869 = vst [vmem:[%s2851 + $0x20] sm:%s2841] %v2868
                  %v2870 = vld [vmem:[%s2850 + $0x24] sm:%s2841]
                  %2871 = vst [vmem:[%s2851 + $0x24] sm:%s2841] %v2870
                  %v2872 = vld [vmem:[%s2850 + $0x28] sm:%s2841]
                  %2873 = vst [vmem:[%s2851 + $0x28] sm:%s2841] %v2872
                  %v2874 = vld [vmem:[%s2850 + $0x2c] sm:%s2841]
                  %2875 = vst [vmem:[%s2851 + $0x2c] sm:%s2841] %v2874
                  %v2876 = vld [vmem:[%s2850 + $0x30] sm:%s2841]
                  %2877 = vst [vmem:[%s2851 + $0x30] sm:%s2841] %v2876
                  %v2878 = vld [vmem:[%s2850 + $0x34] sm:%s2841]
                  %2879 = vst [vmem:[%s2851 + $0x34] sm:%s2841] %v2878
                  %v2880 = vld [vmem:[%s2850 + $0x38] sm:%s2841]
                  %2881 = vst [vmem:[%s2851 + $0x38] sm:%s2841] %v2880
                  %v2882 = vld [vmem:[%s2850 + $0x3c] sm:%s2841]
                  %2883 = vst [vmem:[%s2851 + $0x3c] sm:%s2841] %v2882
                  %v2884 = vld [vmem:[%s2850 + $0x40] sm:%s2841]
                  %2885 = vst [vmem:[%s2851 + $0x40] sm:%s2841] %v2884
                  %v2886 = vld [vmem:[%s2850 + $0x44] sm:%s2841]
                  %2887 = vst [vmem:[%s2851 + $0x44] sm:%s2841] %v2886
                  %v2888 = vld [vmem:[%s2850 + $0x48] sm:%s2841]
                  %2889 = vst [vmem:[%s2851 + $0x48] sm:%s2841] %v2888
                  %v2890 = vld [vmem:[%s2850 + $0x4c] sm:%s2841]
                  %2891 = vst [vmem:[%s2851 + $0x4c] sm:%s2841] %v2890
                  %v2892 = vld [vmem:[%s2850 + $0x50] sm:%s2841]
                  %2893 = vst [vmem:[%s2851 + $0x50] sm:%s2841] %v2892
                  %v2894 = vld [vmem:[%s2850 + $0x54] sm:%s2841]
                  %2895 = vst [vmem:[%s2851 + $0x54] sm:%s2841] %v2894
                  %v2896 = vld [vmem:[%s2850 + $0x58] sm:%s2841]
                  %2897 = vst [vmem:[%s2851 + $0x58] sm:%s2841] %v2896
                  %v2898 = vld [vmem:[%s2850 + $0x5c] sm:%s2841]
                  %2899 = vst [vmem:[%s2851 + $0x5c] sm:%s2841] %v2898
                  %v2900 = vld [vmem:[%s2850 + $0x60] sm:%s2841]
                  %2901 = vst [vmem:[%s2851 + $0x60] sm:%s2841] %v2900
                  %v2902 = vld [vmem:[%s2850 + $0x64] sm:%s2841]
                  %2903 = vst [vmem:[%s2851 + $0x64] sm:%s2841] %v2902
                  %v2904 = vld [vmem:[%s2850 + $0x68] sm:%s2841]
                  %2905 = vst [vmem:[%s2851 + $0x68] sm:%s2841] %v2904
                  %v2906 = vld [vmem:[%s2850 + $0x6c] sm:%s2841]
                  %2907 = vst [vmem:[%s2851 + $0x6c] sm:%s2841] %v2906
                  %v2908 = vld [vmem:[%s2850 + $0x70] sm:%s2841]
                  %2909 = vst [vmem:[%s2851 + $0x70] sm:%s2841] %v2908
                  %v2910 = vld [vmem:[%s2850 + $0x74] sm:%s2841]
                  %2911 = vst [vmem:[%s2851 + $0x74] sm:%s2841] %v2910
                  %v2912 = vld [vmem:[%s2850 + $0x78] sm:%s2841]
                  %2913 = vst [vmem:[%s2851 + $0x78] sm:%s2841] %v2912
                  %v2914 = vld [vmem:[%s2850 + $0x7c] sm:%s2841]
                  %2915 = vst [vmem:[%s2851 + $0x7c] sm:%s2841] %v2914
                  %s2916 = sadd.s32 1, %s2849
                  %p2917 = scmp.ge.s32.totalorder %s2916, %s2842
                  %s2918 = scalar_select %p2917, 0, %s2916
                  %s2919 = smul.u32 %s2918, 128
                  %s2920 = smul.u32 %s2918, 128
                  %s2921 = scalar_lea.vmem %s2707, %s2919 [#allocation2]
                  %s2922 = scalar_lea.vmem %s2722, %s2920
                $region79: #{prenorm_fn.1} parent=73 // loop_footer
                  %s2846 = sadd.s32 %s2844, 1
                $region80: #{prenorm_fn.1} parent=73 // loop_footer_branch
                  %2843 = sbr.rel target = $region76
                $region81: #{prenorm_fn.1} parent=73 // loop_exit
                  _
                %s2923 = sshrl.u32 %s2718, 5
                %s2924 = sand.u32 %s2718, 31
                %s2925 = smul.u32 %s2923, 32
                %s2926 = smul.u32 4, %s2925
                %s2927 = scalar_lea.vmem %s2707, %s2926 [#allocation2]
                %s2928 = smul.u32 4, %s2925
                %s2929 = scalar_lea.vmem %s2722, %s2928
                // While loop
                $region82: #{prenorm_fn.1} parent=73 // loop_pre_header
                  _
                $region83: #{prenorm_fn.1} parent=73 // loop_header
                  %s2931 = sphi 0, %s2933
                  %p2932 = scmp.ge.s32.totalorder %s2931, %s2924
                  %s2936 = sphi 0, %s2943
                  %s2937 = sphi %s2927, %s2946
                  %s2938 = sphi %s2929, %s2947
                $region84: #{prenorm_fn.1} parent=73 // loop_header_branch
                  %2935 = sbr.rel (%p2932) target = $region88
                $region85: #{prenorm_fn.1} parent=73 // loop_body
                  %v2939 = vld [vmem:[%s2937] sm:%s2841]
                  %2940 = vst [vmem:[%s2938] sm:%s2841] %v2939
                  %s2941 = sadd.s32 1, %s2936
                  %p2942 = scmp.ge.s32.totalorder %s2941, %s2924
                  %s2943 = scalar_select %p2942, 0, %s2941
                  %s2944 = smul.u32 %s2943, 4
                  %s2945 = smul.u32 %s2943, 4
                  %s2946 = scalar_lea.vmem %s2927, %s2944 [#allocation2]
                  %s2947 = scalar_lea.vmem %s2929, %s2945
                $region86: #{prenorm_fn.1} parent=73 // loop_footer
                  %s2933 = sadd.s32 %s2931, 1
                $region87: #{prenorm_fn.1} parent=73 // loop_footer_branch
                  %2930 = sbr.rel target = $region83
                $region88: #{prenorm_fn.1} parent=73 // loop_exit
                  _
              $region74: #{prenorm_fn.1} parent=51 // pred_fallthru
                _
            $region52: #{prenorm_fn.1} parent=47 // pred_fallthru
              _
            // Predicated region
            $region53: #{prenorm_fn.1} parent=47 // pred_check
              _
            $region54: #{prenorm_fn.1} parent=47 // pred_check_branch
              %2729 = sbr.rel (0) target = $region56
            $region55: #{prenorm_fn.1} parent=47 // pred_region
              %s2731 = ssub.s32 16, 1
              %s2732 = sshrl.u32 %s2718, 5
              // While loop
              $region57: #{prenorm_fn.1} parent=55 // loop_pre_header
                _
              $region58: #{prenorm_fn.1} parent=55 // loop_header
                %s2734 = sphi 0, %s2736
                %p2735 = scmp.ge.s32.totalorder %s2734, %s2732
                %s2739 = sphi 0, %s2808
                %s2740 = sphi %s2707, %s2811
                %s2741 = sphi %s2722, %s2812
              $region59: #{prenorm_fn.1} parent=55 // loop_header_branch
                %2738 = sbr.rel (%p2735) target = $region63
              $region60: #{prenorm_fn.1} parent=55 // loop_body
                %v2742 = vld [vmem:[%s2740] sm:%s2731]
                %2743 = vst [vmem:[%s2741] sm:%s2731] %v2742
                %v2744 = vld [vmem:[%s2740 + $0x4] sm:%s2731]
                %2745 = vst [vmem:[%s2741 + $0x4] sm:%s2731] %v2744
                %v2746 = vld [vmem:[%s2740 + $0x8] sm:%s2731]
                %2747 = vst [vmem:[%s2741 + $0x8] sm:%s2731] %v2746
                %v2748 = vld [vmem:[%s2740 + $0xc] sm:%s2731]
                %2749 = vst [vmem:[%s2741 + $0xc] sm:%s2731] %v2748
                %v2750 = vld [vmem:[%s2740 + $0x10] sm:%s2731]
                %2751 = vst [vmem:[%s2741 + $0x10] sm:%s2731] %v2750
                %v2752 = vld [vmem:[%s2740 + $0x14] sm:%s2731]
                %2753 = vst [vmem:[%s2741 + $0x14] sm:%s2731] %v2752
                %v2754 = vld [vmem:[%s2740 + $0x18] sm:%s2731]
                %2755 = vst [vmem:[%s2741 + $0x18] sm:%s2731] %v2754
                %v2756 = vld [vmem:[%s2740 + $0x1c] sm:%s2731]
                %2757 = vst [vmem:[%s2741 + $0x1c] sm:%s2731] %v2756
                %v2758 = vld [vmem:[%s2740 + $0x20] sm:%s2731]
                %2759 = vst [vmem:[%s2741 + $0x20] sm:%s2731] %v2758
                %v2760 = vld [vmem:[%s2740 + $0x24] sm:%s2731]
                %2761 = vst [vmem:[%s2741 + $0x24] sm:%s2731] %v2760
                %v2762 = vld [vmem:[%s2740 + $0x28] sm:%s2731]
                %2763 = vst [vmem:[%s2741 + $0x28] sm:%s2731] %v2762
                %v2764 = vld [vmem:[%s2740 + $0x2c] sm:%s2731]
                %2765 = vst [vmem:[%s2741 + $0x2c] sm:%s2731] %v2764
                %v2766 = vld [vmem:[%s2740 + $0x30] sm:%s2731]
                %2767 = vst [vmem:[%s2741 + $0x30] sm:%s2731] %v2766
                %v2768 = vld [vmem:[%s2740 + $0x34] sm:%s2731]
                %2769 = vst [vmem:[%s2741 + $0x34] sm:%s2731] %v2768
                %v2770 = vld [vmem:[%s2740 + $0x38] sm:%s2731]
                %2771 = vst [vmem:[%s2741 + $0x38] sm:%s2731] %v2770
                %v2772 = vld [vmem:[%s2740 + $0x3c] sm:%s2731]
                %2773 = vst [vmem:[%s2741 + $0x3c] sm:%s2731] %v2772
                %v2774 = vld [vmem:[%s2740 + $0x40] sm:%s2731]
                %2775 = vst [vmem:[%s2741 + $0x40] sm:%s2731] %v2774
                %v2776 = vld [vmem:[%s2740 + $0x44] sm:%s2731]
                %2777 = vst [vmem:[%s2741 + $0x44] sm:%s2731] %v2776
                %v2778 = vld [vmem:[%s2740 + $0x48] sm:%s2731]
                %2779 = vst [vmem:[%s2741 + $0x48] sm:%s2731] %v2778
                %v2780 = vld [vmem:[%s2740 + $0x4c] sm:%s2731]
                %2781 = vst [vmem:[%s2741 + $0x4c] sm:%s2731] %v2780
                %v2782 = vld [vmem:[%s2740 + $0x50] sm:%s2731]
                %2783 = vst [vmem:[%s2741 + $0x50] sm:%s2731] %v2782
                %v2784 = vld [vmem:[%s2740 + $0x54] sm:%s2731]
                %2785 = vst [vmem:[%s2741 + $0x54] sm:%s2731] %v2784
                %v2786 = vld [vmem:[%s2740 + $0x58] sm:%s2731]
                %2787 = vst [vmem:[%s2741 + $0x58] sm:%s2731] %v2786
                %v2788 = vld [vmem:[%s2740 + $0x5c] sm:%s2731]
                %2789 = vst [vmem:[%s2741 + $0x5c] sm:%s2731] %v2788
                %v2790 = vld [vmem:[%s2740 + $0x60] sm:%s2731]
                %2791 = vst [vmem:[%s2741 + $0x60] sm:%s2731] %v2790
                %v2792 = vld [vmem:[%s2740 + $0x64] sm:%s2731]
                %2793 = vst [vmem:[%s2741 + $0x64] sm:%s2731] %v2792
                %v2794 = vld [vmem:[%s2740 + $0x68] sm:%s2731]
                %2795 = vst [vmem:[%s2741 + $0x68] sm:%s2731] %v2794
                %v2796 = vld [vmem:[%s2740 + $0x6c] sm:%s2731]
                %2797 = vst [vmem:[%s2741 + $0x6c] sm:%s2731] %v2796
                %v2798 = vld [vmem:[%s2740 + $0x70] sm:%s2731]
                %2799 = vst [vmem:[%s2741 + $0x70] sm:%s2731] %v2798
                %v2800 = vld [vmem:[%s2740 + $0x74] sm:%s2731]
                %2801 = vst [vmem:[%s2741 + $0x74] sm:%s2731] %v2800
                %v2802 = vld [vmem:[%s2740 + $0x78] sm:%s2731]
                %2803 = vst [vmem:[%s2741 + $0x78] sm:%s2731] %v2802
                %v2804 = vld [vmem:[%s2740 + $0x7c] sm:%s2731]
                %2805 = vst [vmem:[%s2741 + $0x7c] sm:%s2731] %v2804
                %s2806 = sadd.s32 1, %s2739
                %p2807 = scmp.ge.s32.totalorder %s2806, %s2732
                %s2808 = scalar_select %p2807, 0, %s2806
                %s2809 = smul.u32 %s2808, 128
                %s2810 = smul.u32 %s2808, 128
                %s2811 = scalar_lea.vmem %s2707, %s2809 [#allocation2]
                %s2812 = scalar_lea.vmem %s2722, %s2810
              $region61: #{prenorm_fn.1} parent=55 // loop_footer
                %s2736 = sadd.s32 %s2734, 1
              $region62: #{prenorm_fn.1} parent=55 // loop_footer_branch
                %2733 = sbr.rel target = $region58
              $region63: #{prenorm_fn.1} parent=55 // loop_exit
                _
              %s2813 = sshrl.u32 %s2718, 5
              %s2814 = sand.u32 %s2718, 31
              %s2815 = smul.u32 %s2813, 32
              %s2816 = smul.u32 4, %s2815
              %s2817 = scalar_lea.vmem %s2707, %s2816 [#allocation2]
              %s2818 = smul.u32 4, %s2815
              %s2819 = scalar_lea.vmem %s2722, %s2818
              // While loop
              $region64: #{prenorm_fn.1} parent=55 // loop_pre_header
                _
              $region65: #{prenorm_fn.1} parent=55 // loop_header
                %s2821 = sphi 0, %s2823
                %p2822 = scmp.ge.s32.totalorder %s2821, %s2814
                %s2826 = sphi 0, %s2833
                %s2827 = sphi %s2817, %s2836
                %s2828 = sphi %s2819, %s2837
              $region66: #{prenorm_fn.1} parent=55 // loop_header_branch
                %2825 = sbr.rel (%p2822) target = $region70
              $region67: #{prenorm_fn.1} parent=55 // loop_body
                %v2829 = vld [vmem:[%s2827] sm:%s2731]
                %2830 = vst [vmem:[%s2828] sm:%s2731] %v2829
                %s2831 = sadd.s32 1, %s2826
                %p2832 = scmp.ge.s32.totalorder %s2831, %s2814
                %s2833 = scalar_select %p2832, 0, %s2831
                %s2834 = smul.u32 %s2833, 4
                %s2835 = smul.u32 %s2833, 4
                %s2836 = scalar_lea.vmem %s2817, %s2834 [#allocation2]
                %s2837 = scalar_lea.vmem %s2819, %s2835
              $region68: #{prenorm_fn.1} parent=55 // loop_footer
                %s2823 = sadd.s32 %s2821, 1
              $region69: #{prenorm_fn.1} parent=55 // loop_footer_branch
                %2820 = sbr.rel target = $region65
              $region70: #{prenorm_fn.1} parent=55 // loop_exit
                _
            $region56: #{prenorm_fn.1} parent=47 // pred_fallthru
              _
          $region48: #{prenorm_fn.1} parent=43 // pred_fallthru
            _
          %2948 = vnop
        $region44: #{prenorm_fn.1} parent=39 // pred_fallthru
          _
        // Predicated region
        $region89: #{prenorm_fn.1} parent=39 // pred_check
          %p2949 = pneg %p172
        $region90: #{prenorm_fn.1} parent=39 // pred_check_branch
          %2951 = sbr.rel (%p2949) target = $region92
        $region91: #{prenorm_fn.1} parent=39 // pred_region
          %s2952 = smul.u32 4, %s18
          %s2953 = ssub.s32 5, %s2952
          %p2954 = scmp.lt.s32.totalorder %s2953, 4
          %s2955 = scalar_select %p2954, %s2953, 4
          %p2956 = scmp.ne.s32.totalorder 0, %s2955
          %s2957 = scalar_lea.vmem %s6, %s2952
          // Predicated region
          $region93: #{prenorm_fn.1} parent=91 // pred_check
            %p2958 = pneg %p2956
          $region94: #{prenorm_fn.1} parent=91 // pred_check_branch
            %2960 = sbr.rel (%p2958) target = $region96
          $region95: #{prenorm_fn.1} parent=91 // pred_region
            %p2961 = scmp.lt.u32.totalorder %s2955, 8
            %p2962 = pneg %p2961
            // Predicated region
            $region97: #{prenorm_fn.1} parent=95 // pred_check
              _
            $region98: #{prenorm_fn.1} parent=95 // pred_check_branch
              %2964 = sbr.rel (%p2961) target = $region100
            $region99: #{prenorm_fn.1} parent=95 // pred_region
              %s2980 = sand.u32 %s2955, 7
              %p2981 = scmp.eq.s32.totalorder %s2980, 0
              // Predicated region
              $region112: #{prenorm_fn.1} parent=99 // pred_check
                %p2982 = pneg %p2981
              $region113: #{prenorm_fn.1} parent=99 // pred_check_branch
                %2984 = sbr.rel (%p2982) target = $region115
              $region114: #{prenorm_fn.1} parent=99 // pred_region
                %s2985 = sshrl.u32 %s2955, 3
                %s2986 = sshrl.u32 %s2985, 5
                // While loop
                $region116: #{prenorm_fn.1} parent=114 // loop_pre_header
                  _
                $region117: #{prenorm_fn.1} parent=114 // loop_header
                  %s2988 = sphi 0, %s2990
                  %p2989 = scmp.ge.s32.totalorder %s2988, %s2986
                  %s2993 = sphi 0, %s3062
                  %s2994 = sphi %s2711, %s3065
                  %s2995 = sphi %s2957, %s3066
                $region118: #{prenorm_fn.1} parent=114 // loop_header_branch
                  %2992 = sbr.rel (%p2989) target = $region122
                $region119: #{prenorm_fn.1} parent=114 // loop_body
                  %v2996 = vld [vmem:[%s2994] sm:$0xff]
                  %2997 = vst [vmem:[%s2995] sm:$0xff] %v2996
                  %v2998 = vld [vmem:[%s2994 + $0x8] sm:$0xff]
                  %2999 = vst [vmem:[%s2995 + $0x8] sm:$0xff] %v2998
                  %v3000 = vld [vmem:[%s2994 + $0x10] sm:$0xff]
                  %3001 = vst [vmem:[%s2995 + $0x10] sm:$0xff] %v3000
                  %v3002 = vld [vmem:[%s2994 + $0x18] sm:$0xff]
                  %3003 = vst [vmem:[%s2995 + $0x18] sm:$0xff] %v3002
                  %v3004 = vld [vmem:[%s2994 + $0x20] sm:$0xff]
                  %3005 = vst [vmem:[%s2995 + $0x20] sm:$0xff] %v3004
                  %v3006 = vld [vmem:[%s2994 + $0x28] sm:$0xff]
                  %3007 = vst [vmem:[%s2995 + $0x28] sm:$0xff] %v3006
                  %v3008 = vld [vmem:[%s2994 + $0x30] sm:$0xff]
                  %3009 = vst [vmem:[%s2995 + $0x30] sm:$0xff] %v3008
                  %v3010 = vld [vmem:[%s2994 + $0x38] sm:$0xff]
                  %3011 = vst [vmem:[%s2995 + $0x38] sm:$0xff] %v3010
                  %v3012 = vld [vmem:[%s2994 + $0x40] sm:$0xff]
                  %3013 = vst [vmem:[%s2995 + $0x40] sm:$0xff] %v3012
                  %v3014 = vld [vmem:[%s2994 + $0x48] sm:$0xff]
                  %3015 = vst [vmem:[%s2995 + $0x48] sm:$0xff] %v3014
                  %v3016 = vld [vmem:[%s2994 + $0x50] sm:$0xff]
                  %3017 = vst [vmem:[%s2995 + $0x50] sm:$0xff] %v3016
                  %v3018 = vld [vmem:[%s2994 + $0x58] sm:$0xff]
                  %3019 = vst [vmem:[%s2995 + $0x58] sm:$0xff] %v3018
                  %v3020 = vld [vmem:[%s2994 + $0x60] sm:$0xff]
                  %3021 = vst [vmem:[%s2995 + $0x60] sm:$0xff] %v3020
                  %v3022 = vld [vmem:[%s2994 + $0x68] sm:$0xff]
                  %3023 = vst [vmem:[%s2995 + $0x68] sm:$0xff] %v3022
                  %v3024 = vld [vmem:[%s2994 + $0x70] sm:$0xff]
                  %3025 = vst [vmem:[%s2995 + $0x70] sm:$0xff] %v3024
                  %v3026 = vld [vmem:[%s2994 + $0x78] sm:$0xff]
                  %3027 = vst [vmem:[%s2995 + $0x78] sm:$0xff] %v3026
                  %v3028 = vld [vmem:[%s2994 + $0x80] sm:$0xff]
                  %3029 = vst [vmem:[%s2995 + $0x80] sm:$0xff] %v3028
                  %v3030 = vld [vmem:[%s2994 + $0x88] sm:$0xff]
                  %3031 = vst [vmem:[%s2995 + $0x88] sm:$0xff] %v3030
                  %v3032 = vld [vmem:[%s2994 + $0x90] sm:$0xff]
                  %3033 = vst [vmem:[%s2995 + $0x90] sm:$0xff] %v3032
                  %v3034 = vld [vmem:[%s2994 + $0x98] sm:$0xff]
                  %3035 = vst [vmem:[%s2995 + $0x98] sm:$0xff] %v3034
                  %v3036 = vld [vmem:[%s2994 + $0xa0] sm:$0xff]
                  %3037 = vst [vmem:[%s2995 + $0xa0] sm:$0xff] %v3036
                  %v3038 = vld [vmem:[%s2994 + $0xa8] sm:$0xff]
                  %3039 = vst [vmem:[%s2995 + $0xa8] sm:$0xff] %v3038
                  %v3040 = vld [vmem:[%s2994 + $0xb0] sm:$0xff]
                  %3041 = vst [vmem:[%s2995 + $0xb0] sm:$0xff] %v3040
                  %v3042 = vld [vmem:[%s2994 + $0xb8] sm:$0xff]
                  %3043 = vst [vmem:[%s2995 + $0xb8] sm:$0xff] %v3042
                  %v3044 = vld [vmem:[%s2994 + $0xc0] sm:$0xff]
                  %3045 = vst [vmem:[%s2995 + $0xc0] sm:$0xff] %v3044
                  %v3046 = vld [vmem:[%s2994 + $0xc8] sm:$0xff]
                  %3047 = vst [vmem:[%s2995 + $0xc8] sm:$0xff] %v3046
                  %v3048 = vld [vmem:[%s2994 + $0xd0] sm:$0xff]
                  %3049 = vst [vmem:[%s2995 + $0xd0] sm:$0xff] %v3048
                  %v3050 = vld [vmem:[%s2994 + $0xd8] sm:$0xff]
                  %3051 = vst [vmem:[%s2995 + $0xd8] sm:$0xff] %v3050
                  %v3052 = vld [vmem:[%s2994 + $0xe0] sm:$0xff]
                  %3053 = vst [vmem:[%s2995 + $0xe0] sm:$0xff] %v3052
                  %v3054 = vld [vmem:[%s2994 + $0xe8] sm:$0xff]
                  %3055 = vst [vmem:[%s2995 + $0xe8] sm:$0xff] %v3054
                  %v3056 = vld [vmem:[%s2994 + $0xf0] sm:$0xff]
                  %3057 = vst [vmem:[%s2995 + $0xf0] sm:$0xff] %v3056
                  %v3058 = vld [vmem:[%s2994 + $0xf8] sm:$0xff]
                  %3059 = vst [vmem:[%s2995 + $0xf8] sm:$0xff] %v3058
                  %s3060 = sadd.s32 1, %s2993
                  %p3061 = scmp.ge.s32.totalorder %s3060, %s2986
                  %s3062 = scalar_select %p3061, 0, %s3060
                  %s3063 = smul.u32 %s3062, 256
                  %s3064 = smul.u32 %s3062, 256
                  %s3065 = scalar_lea.vmem %s2711, %s3063 [#allocation3]
                  %s3066 = scalar_lea.vmem %s2957, %s3064
                $region120: #{prenorm_fn.1} parent=114 // loop_footer
                  %s2990 = sadd.s32 %s2988, 1
                $region121: #{prenorm_fn.1} parent=114 // loop_footer_branch
                  %2987 = sbr.rel target = $region117
                $region122: #{prenorm_fn.1} parent=114 // loop_exit
                  _
                %s3067 = sshrl.u32 %s2985, 5
                %s3068 = sand.u32 %s2985, 31
                %s3069 = smul.u32 %s3067, 32
                %s3070 = smul.u32 8, %s3069
                %s3071 = scalar_lea.vmem %s2711, %s3070 [#allocation3]
                %s3072 = smul.u32 8, %s3069
                %s3073 = scalar_lea.vmem %s2957, %s3072
                // While loop
                $region123: #{prenorm_fn.1} parent=114 // loop_pre_header
                  _
                $region124: #{prenorm_fn.1} parent=114 // loop_header
                  %s3075 = sphi 0, %s3077
                  %p3076 = scmp.ge.s32.totalorder %s3075, %s3068
                  %s3080 = sphi 0, %s3087
                  %s3081 = sphi %s3071, %s3090
                  %s3082 = sphi %s3073, %s3091
                $region125: #{prenorm_fn.1} parent=114 // loop_header_branch
                  %3079 = sbr.rel (%p3076) target = $region129
                $region126: #{prenorm_fn.1} parent=114 // loop_body
                  %v3083 = vld [vmem:[%s3081] sm:$0xff]
                  %3084 = vst [vmem:[%s3082] sm:$0xff] %v3083
                  %s3085 = sadd.s32 1, %s3080
                  %p3086 = scmp.ge.s32.totalorder %s3085, %s3068
                  %s3087 = scalar_select %p3086, 0, %s3085
                  %s3088 = smul.u32 %s3087, 8
                  %s3089 = smul.u32 %s3087, 8
                  %s3090 = scalar_lea.vmem %s3071, %s3088 [#allocation3]
                  %s3091 = scalar_lea.vmem %s3073, %s3089
                $region127: #{prenorm_fn.1} parent=114 // loop_footer
                  %s3077 = sadd.s32 %s3075, 1
                $region128: #{prenorm_fn.1} parent=114 // loop_footer_branch
                  %3074 = sbr.rel target = $region124
                $region129: #{prenorm_fn.1} parent=114 // loop_exit
                  _
              $region115: #{prenorm_fn.1} parent=99 // pred_fallthru
                _
              %p3092 = pneg %p2981
              // Predicated region
              $region130: #{prenorm_fn.1} parent=99 // pred_check
                _
              $region131: #{prenorm_fn.1} parent=99 // pred_check_branch
                %3094 = sbr.rel (%p2981) target = $region133
              $region132: #{prenorm_fn.1} parent=99 // pred_region
                %s3095 = sand.u32 %s2955, 7
                %s3096 = ssub.s32 %s2955, %s3095
                %s3097 = scalar_lea.vmem %s2711, %s3096 [#allocation3]
                %s3098 = ssub.s32 %s2955, %s3095
                %s3099 = scalar_lea.vmem %s2957, %s3098
                %s3100 = sshrl.u32 %s2955, 3
                %s3101 = sshrl.u32 %s3100, 5
                // While loop
                $region134: #{prenorm_fn.1} parent=132 // loop_pre_header
                  _
                $region135: #{prenorm_fn.1} parent=132 // loop_header
                  %s3103 = sphi 0, %s3105
                  %p3104 = scmp.ge.s32.totalorder %s3103, %s3101
                  %s3108 = sphi 0, %s3177
                  %s3109 = sphi %s2711, %s3180
                  %s3110 = sphi %s2957, %s3181
                $region136: #{prenorm_fn.1} parent=132 // loop_header_branch
                  %3107 = sbr.rel (%p3104) target = $region140
                $region137: #{prenorm_fn.1} parent=132 // loop_body
                  %v3111 = vld [vmem:[%s3109] sm:$0xff]
                  %3112 = vst [vmem:[%s3110] sm:$0xff] %v3111
                  %v3113 = vld [vmem:[%s3109 + $0x8] sm:$0xff]
                  %3114 = vst [vmem:[%s3110 + $0x8] sm:$0xff] %v3113
                  %v3115 = vld [vmem:[%s3109 + $0x10] sm:$0xff]
                  %3116 = vst [vmem:[%s3110 + $0x10] sm:$0xff] %v3115
                  %v3117 = vld [vmem:[%s3109 + $0x18] sm:$0xff]
                  %3118 = vst [vmem:[%s3110 + $0x18] sm:$0xff] %v3117
                  %v3119 = vld [vmem:[%s3109 + $0x20] sm:$0xff]
                  %3120 = vst [vmem:[%s3110 + $0x20] sm:$0xff] %v3119
                  %v3121 = vld [vmem:[%s3109 + $0x28] sm:$0xff]
                  %3122 = vst [vmem:[%s3110 + $0x28] sm:$0xff] %v3121
                  %v3123 = vld [vmem:[%s3109 + $0x30] sm:$0xff]
                  %3124 = vst [vmem:[%s3110 + $0x30] sm:$0xff] %v3123
                  %v3125 = vld [vmem:[%s3109 + $0x38] sm:$0xff]
                  %3126 = vst [vmem:[%s3110 + $0x38] sm:$0xff] %v3125
                  %v3127 = vld [vmem:[%s3109 + $0x40] sm:$0xff]
                  %3128 = vst [vmem:[%s3110 + $0x40] sm:$0xff] %v3127
                  %v3129 = vld [vmem:[%s3109 + $0x48] sm:$0xff]
                  %3130 = vst [vmem:[%s3110 + $0x48] sm:$0xff] %v3129
                  %v3131 = vld [vmem:[%s3109 + $0x50] sm:$0xff]
                  %3132 = vst [vmem:[%s3110 + $0x50] sm:$0xff] %v3131
                  %v3133 = vld [vmem:[%s3109 + $0x58] sm:$0xff]
                  %3134 = vst [vmem:[%s3110 + $0x58] sm:$0xff] %v3133
                  %v3135 = vld [vmem:[%s3109 + $0x60] sm:$0xff]
                  %3136 = vst [vmem:[%s3110 + $0x60] sm:$0xff] %v3135
                  %v3137 = vld [vmem:[%s3109 + $0x68] sm:$0xff]
                  %3138 = vst [vmem:[%s3110 + $0x68] sm:$0xff] %v3137
                  %v3139 = vld [vmem:[%s3109 + $0x70] sm:$0xff]
                  %3140 = vst [vmem:[%s3110 + $0x70] sm:$0xff] %v3139
                  %v3141 = vld [vmem:[%s3109 + $0x78] sm:$0xff]
                  %3142 = vst [vmem:[%s3110 + $0x78] sm:$0xff] %v3141
                  %v3143 = vld [vmem:[%s3109 + $0x80] sm:$0xff]
                  %3144 = vst [vmem:[%s3110 + $0x80] sm:$0xff] %v3143
                  %v3145 = vld [vmem:[%s3109 + $0x88] sm:$0xff]
                  %3146 = vst [vmem:[%s3110 + $0x88] sm:$0xff] %v3145
                  %v3147 = vld [vmem:[%s3109 + $0x90] sm:$0xff]
                  %3148 = vst [vmem:[%s3110 + $0x90] sm:$0xff] %v3147
                  %v3149 = vld [vmem:[%s3109 + $0x98] sm:$0xff]
                  %3150 = vst [vmem:[%s3110 + $0x98] sm:$0xff] %v3149
                  %v3151 = vld [vmem:[%s3109 + $0xa0] sm:$0xff]
                  %3152 = vst [vmem:[%s3110 + $0xa0] sm:$0xff] %v3151
                  %v3153 = vld [vmem:[%s3109 + $0xa8] sm:$0xff]
                  %3154 = vst [vmem:[%s3110 + $0xa8] sm:$0xff] %v3153
                  %v3155 = vld [vmem:[%s3109 + $0xb0] sm:$0xff]
                  %3156 = vst [vmem:[%s3110 + $0xb0] sm:$0xff] %v3155
                  %v3157 = vld [vmem:[%s3109 + $0xb8] sm:$0xff]
                  %3158 = vst [vmem:[%s3110 + $0xb8] sm:$0xff] %v3157
                  %v3159 = vld [vmem:[%s3109 + $0xc0] sm:$0xff]
                  %3160 = vst [vmem:[%s3110 + $0xc0] sm:$0xff] %v3159
                  %v3161 = vld [vmem:[%s3109 + $0xc8] sm:$0xff]
                  %3162 = vst [vmem:[%s3110 + $0xc8] sm:$0xff] %v3161
                  %v3163 = vld [vmem:[%s3109 + $0xd0] sm:$0xff]
                  %3164 = vst [vmem:[%s3110 + $0xd0] sm:$0xff] %v3163
                  %v3165 = vld [vmem:[%s3109 + $0xd8] sm:$0xff]
                  %3166 = vst [vmem:[%s3110 + $0xd8] sm:$0xff] %v3165
                  %v3167 = vld [vmem:[%s3109 + $0xe0] sm:$0xff]
                  %3168 = vst [vmem:[%s3110 + $0xe0] sm:$0xff] %v3167
                  %v3169 = vld [vmem:[%s3109 + $0xe8] sm:$0xff]
                  %3170 = vst [vmem:[%s3110 + $0xe8] sm:$0xff] %v3169
                  %v3171 = vld [vmem:[%s3109 + $0xf0] sm:$0xff]
                  %3172 = vst [vmem:[%s3110 + $0xf0] sm:$0xff] %v3171
                  %v3173 = vld [vmem:[%s3109 + $0xf8] sm:$0xff]
                  %3174 = vst [vmem:[%s3110 + $0xf8] sm:$0xff] %v3173
                  %s3175 = sadd.s32 1, %s3108
                  %p3176 = scmp.ge.s32.totalorder %s3175, %s3101
                  %s3177 = scalar_select %p3176, 0, %s3175
                  %s3178 = smul.u32 %s3177, 256
                  %s3179 = smul.u32 %s3177, 256
                  %s3180 = scalar_lea.vmem %s2711, %s3178 [#allocation3]
                  %s3181 = scalar_lea.vmem %s2957, %s3179
                $region138: #{prenorm_fn.1} parent=132 // loop_footer
                  %s3105 = sadd.s32 %s3103, 1
                $region139: #{prenorm_fn.1} parent=132 // loop_footer_branch
                  %3102 = sbr.rel target = $region135
                $region140: #{prenorm_fn.1} parent=132 // loop_exit
                  _
                %s3182 = sshrl.u32 %s3100, 5
                %s3183 = sand.u32 %s3100, 31
                %s3184 = smul.u32 %s3182, 32
                %s3185 = smul.u32 8, %s3184
                %s3186 = scalar_lea.vmem %s2711, %s3185 [#allocation3]
                %s3187 = smul.u32 8, %s3184
                %s3188 = scalar_lea.vmem %s2957, %s3187
                // While loop
                $region141: #{prenorm_fn.1} parent=132 // loop_pre_header
                  _
                $region142: #{prenorm_fn.1} parent=132 // loop_header
                  %s3190 = sphi 0, %s3192
                  %p3191 = scmp.ge.s32.totalorder %s3190, %s3183
                  %s3195 = sphi 0, %s3202
                  %s3196 = sphi %s3186, %s3205
                  %s3197 = sphi %s3188, %s3206
                $region143: #{prenorm_fn.1} parent=132 // loop_header_branch
                  %3194 = sbr.rel (%p3191) target = $region147
                $region144: #{prenorm_fn.1} parent=132 // loop_body
                  %v3198 = vld [vmem:[%s3196] sm:$0xff]
                  %3199 = vst [vmem:[%s3197] sm:$0xff] %v3198
                  %s3200 = sadd.s32 1, %s3195
                  %p3201 = scmp.ge.s32.totalorder %s3200, %s3183
                  %s3202 = scalar_select %p3201, 0, %s3200
                  %s3203 = smul.u32 %s3202, 8
                  %s3204 = smul.u32 %s3202, 8
                  %s3205 = scalar_lea.vmem %s3186, %s3203 [#allocation3]
                  %s3206 = scalar_lea.vmem %s3188, %s3204
                $region145: #{prenorm_fn.1} parent=132 // loop_footer
                  %s3192 = sadd.s32 %s3190, 1
                $region146: #{prenorm_fn.1} parent=132 // loop_footer_branch
                  %3189 = sbr.rel target = $region142
                $region147: #{prenorm_fn.1} parent=132 // loop_exit
                  _
                %s3207 = sshll.u32 1, %s3095
                %s3208 = ssub.s32 %s3207, 1
                loop: start=0, step=1, limit=1
                $region148: #{prenorm_fn.1} parent=132 // loop_pre_header
                  _
                $region149: #{prenorm_fn.1} parent=132 // loop_header
                  %s3210 = sphi 0, %s3214
                  %p3211 = scmp.ge.s32.totalorder %s3210, 1
                  %s3215 = sphi %s3097, %s3097
                  %s3216 = sphi %s3099, %s3099
                $region150: #{prenorm_fn.1} parent=132 // loop_header_branch
                  %3213 = sbr.rel (%p3211) target = $region154
                $region151: #{prenorm_fn.1} parent=132 // loop_body
                  %v3217 = vld [vmem:[%s3215] sm:%s3208]
                  %3218 = vst [vmem:[%s3216] sm:%s3208] %v3217
                $region152: #{prenorm_fn.1} parent=132 // loop_footer
                  %s3214 = sadd.s32 1, %s3210
                $region153: #{prenorm_fn.1} parent=132 // loop_footer_branch
                  %3209 = sbr.rel target = $region149
                $region154: #{prenorm_fn.1} parent=132 // loop_exit
                  _
              $region133: #{prenorm_fn.1} parent=99 // pred_fallthru
                _
            $region100: #{prenorm_fn.1} parent=95 // pred_fallthru
              _
            // Predicated region
            $region101: #{prenorm_fn.1} parent=95 // pred_check
              %p2965 = pneg %p2961
            $region102: #{prenorm_fn.1} parent=95 // pred_check_branch
              %2967 = sbr.rel (%p2965) target = $region104
            $region103: #{prenorm_fn.1} parent=95 // pred_region
              %s2968 = sshll.u32 1, %s2955
              %s2969 = ssub.s32 %s2968, 1
              loop: start=0, step=1, limit=1
              $region105: #{prenorm_fn.1} parent=103 // loop_pre_header
                _
              $region106: #{prenorm_fn.1} parent=103 // loop_header
                %s2971 = sphi 0, %s2975
                %p2972 = scmp.ge.s32.totalorder %s2971, 1
                %s2976 = sphi %s2711, %s2711
                %s2977 = sphi %s2957, %s2957
              $region107: #{prenorm_fn.1} parent=103 // loop_header_branch
                %2974 = sbr.rel (%p2972) target = $region111
              $region108: #{prenorm_fn.1} parent=103 // loop_body
                %v2978 = vld [vmem:[%s2976] sm:%s2969]
                %2979 = vst [vmem:[%s2977] sm:%s2969] %v2978
              $region109: #{prenorm_fn.1} parent=103 // loop_footer
                %s2975 = sadd.s32 1, %s2971
              $region110: #{prenorm_fn.1} parent=103 // loop_footer_branch
                %2970 = sbr.rel target = $region106
              $region111: #{prenorm_fn.1} parent=103 // loop_exit
                _
            $region104: #{prenorm_fn.1} parent=95 // pred_fallthru
              _
          $region96: #{prenorm_fn.1} parent=91 // pred_fallthru
            _
          %3219 = vnop
        $region92: #{prenorm_fn.1} parent=39 // pred_fallthru
          _
      $region40: #{prenorm_fn.1} parent=5 // pred_fallthru
        _
      %p3220 = scmp.le.s32.totalorder 2, %s13
      // Predicated region
      $region155: #{prenorm_fn.1} parent=5 // pred_check
        %p3221 = pneg %p3220
      $region156: #{prenorm_fn.1} parent=5 // pred_check_branch
        %3223 = sbr.rel (%p3221) target = $region158
      $region157: #{prenorm_fn.1} parent=5 // pred_region
        %s3224 = ssub.s32 %s13, 2
        // Predicated region
        $region159: #{prenorm_fn.1} parent=157 // pred_check
          %p3225 = pneg %p152
        $region160: #{prenorm_fn.1} parent=157 // pred_check_branch
          %3227 = sbr.rel (%p3225) target = $region162
        $region161: #{prenorm_fn.1} parent=157 // pred_region
          %s3228 = sand.u32 %s137, 1
          %s3229 = sand.u32 %s137, 1
          %s3230 = smul.addr %s3229, 256
          %s3231 = scalar_lea.vmem [#allocation2], %s3230
        $region162: #{prenorm_fn.1} parent=157 // pred_fallthru
          _
        // Predicated region
        $region163: #{prenorm_fn.1} parent=157 // pred_check
          %p3232 = pneg %p178
        $region164: #{prenorm_fn.1} parent=157 // pred_check_branch
          %3234 = sbr.rel (%p3232) target = $region166
        $region165: #{prenorm_fn.1} parent=157 // pred_region
          %s3235 = sand.u32 %s163, 1
          %s3236 = sand.u32 %s163, 1
          %s3237 = smul.addr %s3236, 4
          %s3238 = scalar_lea.vmem [#allocation3], %s3237
        $region166: #{prenorm_fn.1} parent=157 // pred_fallthru
          _
      $region158: #{prenorm_fn.1} parent=5 // pred_fallthru
        _
    $region6: #{prenorm_fn.1} parent=1 // loop_footer
      %s17 = sadd.s32 1, %s13
    $region7: #{prenorm_fn.1} parent=1 // loop_footer_branch
      %12 = sbr.rel target = $region3
    $region8: #{prenorm_fn.1} parent=1 // loop_exit
      _

</llo_original>
